<compile_context>
chip_gen: v6e
topology: v6e:2x2x1
jax: 0.10.0
libtpu: 0.0.40
codegen_flags: <defaults>
</compile_context>

<pallas_src>
import functools

import jax
import jax.numpy as jnp
from jax import lax
from jax.experimental import pallas as pl
from jax.experimental.pallas import tpu as pltpu

# ---------------- configuration (module hyper-parameters) ----------------
IN_CHANNELS = 2
OUT_CHANNELS = 3
PATCH_MARGIN = (1, 1)
PATCH_SCALES = (1,)
PATCH_MLP_DEPTH = 4
PATCH_MLP_WIDTH = 32
REC_DEPTH = 8          # patch_reconstructor_depth (>= 2)
REC_WIDTH = 8          # patch_reconstructor_width

PATCH_H = 1 + 2 * PATCH_MARGIN[0]
PATCH_W = 1 + 2 * PATCH_MARGIN[1]
OUT_FEATURES = OUT_CHANNELS * PATCH_H * PATCH_W * len(PATCH_SCALES)  # 27

# ---------------- packed weight-slab layout (rows, all zero-padded) --------
_W = PATCH_MLP_WIDTH            # 32, also the padded row count per block
R_W1 = 0 * _W                   # W1^T  (32, 2)   rows   0: 32
R_W2 = 1 * _W                   # W2^T  (32, 32)  rows  32: 64
R_W3 = 2 * _W                   # W3^T  (32, 32)  rows  64: 96
R_W4 = 3 * _W                   # W4^T  (27, 32)  rows  96:123 (padded to 128)
R_B = 4 * _W                    # biases (32, 4)  rows 128:160 (col j = layer j)
R_REC = 5 * _W                  # collapsed rec^T (3,27) at rows 187:190
                                # (i.e. local rows 27:30 of the 32-row block)
SLAB_ROWS = R_REC + _W          # 192
SLAB_COLS = _W                  # 32

OUT_ROWS = 32                   # fused output: 27 patches + 3 pixels + 2 pad


# ------------------------------- kernel ----------------------------------
def mlp_kernel(x_ref, w_ref, o_ref):
    """One batch tile, transposed (batch-on-lanes) layout.

    x_ref : (IN_CHANNELS, tile_n)   coordinates (batch on lanes), f32
    w_ref : (SLAB_ROWS, SLAB_COLS)  packed weights/biases (fetched every step,
                                    constant index_map), f32
    o_ref : (OUT_ROWS, tile_n)      rows 0:27 = patches, 27:30 = pixels, bf16
    """
    x = x_ref[...].astype(jnp.float32)                      # (2, tile_n)

    bias = w_ref[R_B:R_B + _W, 0:PATCH_MLP_DEPTH]           # (32, 4)

    # --- layer 1 (K = 2): pure VPU broadcast FMAs, no MXU padding ---
    w1 = w_ref[R_W1:R_W1 + _W, 0:IN_CHANNELS]               # (32, 2)
    h = bias[:, 0:1]                                        # (32, 1) -> bcast
    for c in range(IN_CHANNELS):
        h = h + w1[:, c:c + 1] * x[c:c + 1, :]              # (32, tile_n)
    h = jnp.maximum(h, 0.0)

    # --- layers 2..3: (32,32) @ (32,tile_n) on MXU, bias, ReLU ---
    h = jnp.dot(w_ref[R_W2:R_W2 + _W, :], h,
                preferred_element_type=jnp.float32) + bias[:, 1:2]
    h = jnp.maximum(h, 0.0)
    h = jnp.dot(w_ref[R_W3:R_W3 + _W, :], h,
                preferred_element_type=jnp.float32) + bias[:, 2:3]
    h = jnp.maximum(h, 0.0)

    # --- final MLP layer (27 rows padded to 32; pad rows of W4/b4 are 0) ---
    h = jnp.dot(w_ref[R_W4:R_W4 + _W, :], h,
                preferred_element_type=jnp.float32) + bias[:, 3:4]
    patches = jax.nn.sigmoid(h)                   # (32,tile_n); rows 27:32=0.5

    # --- collapsed reconstructor: one (32,32)@(32,tile_n) matmul whose
    #     weights live on rows 27:30 (cols 0:27) of the block, so the pixel
    #     rows come out already aligned with their output-slab rows.  Padded
    #     columns 27:32 are zero, so the 0.5 pad rows of `patches` contribute
    #     nothing. ---
    rec_big = w_ref[R_REC:R_REC + _W, :]                    # (32, 32)
    pix = jax.nn.sigmoid(jnp.dot(rec_big, patches,
                                 preferred_element_type=jnp.float32))

    # --- fused, lane-dense output slab via row select: ONE unmasked store ---
    rows = lax.broadcasted_iota(jnp.int32, patches.shape, 0)
    out = jnp.where(rows < OUT_FEATURES, patches,
                    jnp.where(rows < OUT_FEATURES + OUT_CHANNELS, pix, 0.0))
    o_ref[...] = out.astype(o_ref.dtype)


# ------------------------ wrapper-side parameter packing ------------------
def collapse_reconstructor(rec_ws):
    """Valid ONLY because the reconstructor is linear=True, bias=False:
    the 8-layer chain collapses exactly to a single (27, 3) matrix."""
    # TODO(synk): guard on linear/bias config flags if the reconstructor ever
    # gains nonlinearities or biases — the collapse would then be invalid.
    w = rec_ws[0]
    for wi in rec_ws[1:]:
        w = w @ wi
    return w


def pack_params(mlp_ws, mlp_bs, rec_ws):
    """Pack transposed weights + biases + collapsed reconstructor into a
    single zero-padded (SLAB_ROWS, SLAB_COLS) f32 slab.

    Call ONCE (outside the per-forward jit path) and reuse the result."""
    slab = jnp.zeros((SLAB_ROWS, SLAB_COLS), jnp.float32)
    for off, w in zip((R_W1, R_W2, R_W3, R_W4), mlp_ws):
        wt = w.T.astype(jnp.float32)                        # (out, in)
        slab = slab.at[off:off + wt.shape[0], 0:wt.shape[1]].set(wt)
    for j, b in enumerate(mlp_bs):
        bj = jnp.reshape(b, (-1,)).astype(jnp.float32)
        slab = slab.at[R_B:R_B + bj.shape[0], j].set(bj)
    rec_t = collapse_reconstructor(rec_ws).T.astype(jnp.float32)   # (3, 27)
    slab = slab.at[R_REC + OUT_FEATURES:R_REC + OUT_FEATURES + OUT_CHANNELS,
                   0:OUT_FEATURES].set(rec_t)
    return slab


# ------------------------------ forward -----------------------------------
@functools.partial(jax.jit, static_argnames=("tile_n",))
def mlp_forward(x, slab, tile_n):
    """x: (N, IN_CHANNELS) f32 coordinates; slab: packed params.
    Returns (patches, pixels) in the torch-facing shapes."""
    n = x.shape[0]
    assert n % tile_n == 0, "N must be a multiple of tile_n"
    assert tile_n % 128 == 0, "tile_n is the lane dim -> multiple of 128"
    grid = (n // tile_n,)

    x_t = x.astype(jnp.float32).T                           # (IN_CHANNELS, N)

    out_t = pl.pallas_call(
        mlp_kernel,
        out_shape=jax.ShapeDtypeStruct((OUT_ROWS, n), jnp.bfloat16),
        grid_spec=pltpu.PrefetchScalarGridSpec(
            num_scalar_prefetch=0,
            grid=grid,
            in_specs=[
                pl.BlockSpec((IN_CHANNELS, tile_n), lambda i: (0, i)),
                pl.BlockSpec((SLAB_ROWS, SLAB_COLS), lambda i: (0, 0)),
            ],
            out_specs=pl.BlockSpec((OUT_ROWS, tile_n), lambda i: (0, i)),
        ),
        compiler_params=pltpu.CompilerParams(
            dimension_semantics=("parallel",),
        ),
    )(x_t, slab)

    # Single transpose back to batch-major, then cheap slices/reshape.
    out = out_t.T.astype(jnp.float32)                       # (N, 32)
    patches_flat = out[:, 0:OUT_FEATURES]                   # (N, 27)
    pixels = out[:, OUT_FEATURES:OUT_FEATURES + OUT_CHANNELS]   # (N, 3)
    patches = patches_flat.reshape(n, OUT_CHANNELS, PATCH_H, PATCH_W)
    return patches, pixels


# ------------------------- plain-JAX reference ----------------------------
def ref_forward(x, mlp_ws, mlp_bs, rec_ws):
    h = x
    for i, (w, b) in enumerate(zip(mlp_ws, mlp_bs)):
        h = h @ w + b
        if i < len(mlp_ws) - 1:
            h = jnp.maximum(h, 0.0)
    patches_flat = jax.nn.sigmoid(h)
    r = patches_flat
    for w in rec_ws:                       # full (non-collapsed) chain
        r = r @ w
    pixels = jax.nn.sigmoid(r)
    return (patches_flat.reshape(x.shape[0], OUT_CHANNELS, PATCH_H, PATCH_W),
            pixels)


# ------------------------- deterministic params ----------------------------
def init_params(key):
    # Patch MLP dims: in -> width -> width -> width -> out_features
    dims = [IN_CHANNELS] + [PATCH_MLP_WIDTH] * (PATCH_MLP_DEPTH - 1) + [OUT_FEATURES]
    mlp_ws, mlp_bs = [], []
    for i in range(PATCH_MLP_DEPTH):
        key, kw, kb = jax.random.split(key, 3)
        fan_in = dims[i]
        mlp_ws.append(jax.random.normal(kw, (dims[i], dims[i + 1]), jnp.float32)
                      / jnp.sqrt(fan_in))
        mlp_bs.append(0.01 * jax.random.normal(kb, (1, dims[i + 1]), jnp.float32))

    # Reconstructor dims: out_features -> width x (depth-1) -> channels
    rdims = [OUT_FEATURES] + [REC_WIDTH] * (REC_DEPTH - 1) + [OUT_CHANNELS]
    rec_ws = []
    for i in range(REC_DEPTH):
        key, kw = jax.random.split(key)
        rec_ws.append(jax.random.normal(kw, (rdims[i], rdims[i + 1]), jnp.float32)
                      / jnp.sqrt(rdims[i]))
    return tuple(mlp_ws), tuple(mlp_bs), tuple(rec_ws)


# --------------------------------- main ------------------------------------
if __name__ == "__main__":
    key = jax.random.PRNGKey(0)
    key, kx = jax.random.split(key)

    N = 4096          # 64x64 coordinate grid worth of points
    # 2 grid steps: exploits both TensorCores on v7x via "parallel";
    # only ~0.7 us of total step overhead on single-TC v5e/v6e.
    TILE_N = N // 2   # 2048 (lane dim, multiple of 128)

    x = jax.random.uniform(kx, (N, IN_CHANNELS), jnp.float32)
    mlp_ws, mlp_bs, rec_ws = init_params(key)

    # Parameter packing hoisted OUT of the per-forward path: done once here.
    slab = jax.block_until_ready(pack_params(mlp_ws, mlp_bs, rec_ws))

    patches, pixels = mlp_forward(x, slab, tile_n=TILE_N)
    jax.block_until_ready((patches, pixels))

    # correctness check against plain-JAX reference (non-collapsed chain)
    ref_patches, ref_pixels = ref_forward(x, mlp_ws, mlp_bs, rec_ws)
    assert patches.shape == (N, OUT_CHANNELS, PATCH_H, PATCH_W)
    assert pixels.shape == (N, OUT_CHANNELS)
    # bf16 output store: post-sigmoid values in [0,1], abs error ~4e-3 << 1e-2
    assert jnp.allclose(patches, ref_patches, atol=1e-2, rtol=1e-2)
    assert jnp.allclose(pixels, ref_pixels, atol=1e-2, rtol=1e-2)

    print("KERNEL_OK")
</pallas_src>

<mosaic_0001>
module attributes {stable_mosaic.version = 11 : i64} {
  func.func @mlp_kernel(%arg0: i32, %arg1: memref<2x2048xf32, #tpu.memory_space<vmem>>, %arg2: memref<192x32xf32, #tpu.memory_space<vmem>>, %arg3: memref<32x2048xbf16, #tpu.memory_space<vmem>>) attributes {dimension_semantics = [#tpu.dimension_semantics<parallel>], iteration_bounds = array<i64: 2>, scalar_prefetch = 0 : i64, scratch_operands = 0 : i64, tpu.core_type = #tpu.core_type<tc>, window_params = [{transform_indices = @transform_0, window_bounds = array<i64: 2, 2048>}, {pipeline_mode = #tpu.pipeline_mode<synchronous>, transform_indices = @transform_1, window_bounds = array<i64: 192, 32>}, {transform_indices = @transform_2, window_bounds = array<i64: 32, 2048>}]} {
    %c0 = arith.constant 0 : index
    %c0_0 = arith.constant 0 : index
    %0 = vector.load %arg1[%c0, %c0_0] : memref<2x2048xf32, #tpu.memory_space<vmem>>, vector<2x2048xf32>
    %c128 = arith.constant 128 : index
    %c0_1 = arith.constant 0 : index
    %1 = vector.load %arg2[%c128, %c0_1] : memref<192x32xf32, #tpu.memory_space<vmem>>, vector<32x4xf32>
    %c0_2 = arith.constant 0 : index
    %c0_3 = arith.constant 0 : index
    %2 = vector.load %arg2[%c0_2, %c0_3] : memref<192x32xf32, #tpu.memory_space<vmem>>, vector<32x2xf32>
    %3 = vector.extract_strided_slice %1 {offsets = [0, 0], sizes = [32, 1], strides = [1, 1]} : vector<32x4xf32> to vector<32x1xf32>
    %4 = vector.extract_strided_slice %2 {offsets = [0, 0], sizes = [32, 1], strides = [1, 1]} : vector<32x2xf32> to vector<32x1xf32>
    %5 = vector.extract_strided_slice %0 {offsets = [0, 0], sizes = [1, 2048], strides = [1, 1]} : vector<2x2048xf32> to vector<1x2048xf32>
    %6 = vector.broadcast %4 : vector<32x1xf32> to vector<32x2048xf32>
    %7 = vector.broadcast %5 : vector<1x2048xf32> to vector<32x2048xf32>
    %8 = arith.mulf %6, %7 : vector<32x2048xf32>
    %9 = vector.broadcast %3 : vector<32x1xf32> to vector<32x2048xf32>
    %10 = arith.addf %9, %8 : vector<32x2048xf32>
    %11 = vector.extract_strided_slice %2 {offsets = [0, 1], sizes = [32, 1], strides = [1, 1]} : vector<32x2xf32> to vector<32x1xf32>
    %12 = vector.extract_strided_slice %0 {offsets = [1, 0], sizes = [1, 2048], strides = [1, 1]} : vector<2x2048xf32> to vector<1x2048xf32>
    %13 = vector.broadcast %11 : vector<32x1xf32> to vector<32x2048xf32>
    %14 = vector.broadcast %12 : vector<1x2048xf32> to vector<32x2048xf32>
    %15 = arith.mulf %13, %14 : vector<32x2048xf32>
    %16 = arith.addf %10, %15 : vector<32x2048xf32>
    %cst = arith.constant 0.000000e+00 : f32
    %17 = vector.broadcast %cst : f32 to vector<32x2048xf32>
    %18 = arith.maximumf %16, %17 : vector<32x2048xf32>
    %c32 = arith.constant 32 : index
    %c0_4 = arith.constant 0 : index
    %19 = vector.load %arg2[%c32, %c0_4] : memref<192x32xf32, #tpu.memory_space<vmem>>, vector<32x32xf32>
    %cst_5 = arith.constant dense<0.000000e+00> : vector<32x2048xf32>
    %20 = tpu.matmul %19, %18, %cst_5 {dimension_numbers = #tpu.dot_dimension_numbers<[1], [0], [0], [1], [0, 0, 1, 1], [], []>} : vector<32x32xf32>, vector<32x2048xf32>, vector<32x2048xf32> -> vector<32x2048xf32>
    %21 = vector.extract_strided_slice %1 {offsets = [0, 1], sizes = [32, 1], strides = [1, 1]} : vector<32x4xf32> to vector<32x1xf32>
    %22 = vector.broadcast %21 : vector<32x1xf32> to vector<32x2048xf32>
    %23 = arith.addf %20, %22 : vector<32x2048xf32>
    %cst_6 = arith.constant 0.000000e+00 : f32
    %24 = vector.broadcast %cst_6 : f32 to vector<32x2048xf32>
    %25 = arith.maximumf %23, %24 : vector<32x2048xf32>
    %c64 = arith.constant 64 : index
    %c0_7 = arith.constant 0 : index
    %26 = vector.load %arg2[%c64, %c0_7] : memref<192x32xf32, #tpu.memory_space<vmem>>, vector<32x32xf32>
    %cst_8 = arith.constant dense<0.000000e+00> : vector<32x2048xf32>
    %27 = tpu.matmul %26, %25, %cst_8 {dimension_numbers = #tpu.dot_dimension_numbers<[1], [0], [0], [1], [0, 0, 1, 1], [], []>} : vector<32x32xf32>, vector<32x2048xf32>, vector<32x2048xf32> -> vector<32x2048xf32>
    %28 = vector.extract_strided_slice %1 {offsets = [0, 2], sizes = [32, 1], strides = [1, 1]} : vector<32x4xf32> to vector<32x1xf32>
    %29 = vector.broadcast %28 : vector<32x1xf32> to vector<32x2048xf32>
    %30 = arith.addf %27, %29 : vector<32x2048xf32>
    %cst_9 = arith.constant 0.000000e+00 : f32
    %31 = vector.broadcast %cst_9 : f32 to vector<32x2048xf32>
    %32 = arith.maximumf %30, %31 : vector<32x2048xf32>
    %c96 = arith.constant 96 : index
    %c0_10 = arith.constant 0 : index
    %33 = vector.load %arg2[%c96, %c0_10] : memref<192x32xf32, #tpu.memory_space<vmem>>, vector<32x32xf32>
    %cst_11 = arith.constant dense<0.000000e+00> : vector<32x2048xf32>
    %34 = tpu.matmul %33, %32, %cst_11 {dimension_numbers = #tpu.dot_dimension_numbers<[1], [0], [0], [1], [0, 0, 1, 1], [], []>} : vector<32x32xf32>, vector<32x2048xf32>, vector<32x2048xf32> -> vector<32x2048xf32>
    %35 = vector.extract_strided_slice %1 {offsets = [0, 3], sizes = [32, 1], strides = [1, 1]} : vector<32x4xf32> to vector<32x1xf32>
    %36 = vector.broadcast %35 : vector<32x1xf32> to vector<32x2048xf32>
    %37 = arith.addf %34, %36 : vector<32x2048xf32>
    %38 = arith.negf %37 : vector<32x2048xf32>
    %39 = math.exp %38 : vector<32x2048xf32>
    %cst_12 = arith.constant 1.000000e+00 : f32
    %40 = vector.broadcast %cst_12 : f32 to vector<32x2048xf32>
    %41 = arith.addf %40, %39 : vector<32x2048xf32>
    %42 = arith.divf %40, %41 : vector<32x2048xf32>
    %c160 = arith.constant 160 : index
    %c0_13 = arith.constant 0 : index
    %43 = vector.load %arg2[%c160, %c0_13] : memref<192x32xf32, #tpu.memory_space<vmem>>, vector<32x32xf32>
    %cst_14 = arith.constant dense<0.000000e+00> : vector<32x2048xf32>
    %44 = tpu.matmul %43, %42, %cst_14 {dimension_numbers = #tpu.dot_dimension_numbers<[1], [0], [0], [1], [0, 0, 1, 1], [], []>} : vector<32x32xf32>, vector<32x2048xf32>, vector<32x2048xf32> -> vector<32x2048xf32>
    %45 = arith.negf %44 : vector<32x2048xf32>
    %46 = math.exp %45 : vector<32x2048xf32>
    %cst_15 = arith.constant 1.000000e+00 : f32
    %47 = vector.broadcast %cst_15 : f32 to vector<32x2048xf32>
    %48 = arith.addf %47, %46 : vector<32x2048xf32>
    %49 = arith.divf %47, %48 : vector<32x2048xf32>
    %50 = tpu.iota {dimensions = array<i32: 0>} : vector<32x2048xi32>
    %c27_i32 = arith.constant 27 : i32
    %51 = vector.broadcast %c27_i32 : i32 to vector<32x2048xi32>
    %52 = arith.cmpi slt, %50, %51 : vector<32x2048xi32>
    %c30_i32 = arith.constant 30 : i32
    %53 = vector.broadcast %c30_i32 : i32 to vector<32x2048xi32>
    %54 = arith.cmpi slt, %50, %53 : vector<32x2048xi32>
    %cst_16 = arith.constant 0.000000e+00 : f32
    %55 = vector.broadcast %cst_16 : f32 to vector<32x2048xf32>
    %56 = arith.select %54, %49, %55 : vector<32x2048xi1>, vector<32x2048xf32>
    %57 = arith.select %52, %42, %56 : vector<32x2048xi1>, vector<32x2048xf32>
    %58 = arith.truncf %57 : vector<32x2048xf32> to vector<32x2048xbf16>
    %c0_17 = arith.constant 0 : index
    %c0_18 = arith.constant 0 : index
    %59 = vector.load %arg3[%c0_17, %c0_18] : memref<32x2048xbf16, #tpu.memory_space<vmem>>, vector<32x2048xbf16>
    tpu.vector_store %arg3[%c0_17, %c0_18], %58 {strides = array<i32>} : memref<32x2048xbf16, #tpu.memory_space<vmem>>, vector<32x2048xbf16>,
    return
  }
  func.func @transform_0(%arg0: i32) -> (i32, i32) {
    %c0_i32 = arith.constant 0 : i32
    %c0_i32_0 = arith.constant 0 : i32
    return %c0_i32, %arg0 : i32, i32
  }
  func.func @transform_1(%arg0: i32) -> (i32, i32) {
    %c0_i32 = arith.constant 0 : i32
    %c0_i32_0 = arith.constant 0 : i32
    %c0_i32_1 = arith.constant 0 : i32
    return %c0_i32, %c0_i32_0 : i32, i32
  }
  func.func @transform_2(%arg0: i32) -> (i32, i32) {
    %c0_i32 = arith.constant 0 : i32
    %c0_i32_0 = arith.constant 0 : i32
    return %c0_i32, %arg0 : i32, i32
  }
}

</mosaic_0001>

<llo_original>
// kernel: mlp_forward.1
$region0: #{mlp_forward.1}
  #allocation0 [shape = 'u32[]', space=smem, size = 0x4, offset = 0x4, fixed_abs, tag = 'smem constant byte address 0x4 - core index']
  #allocation1 [shape = 'u32[144,128]{1,0:T(1,128)}', space=vmem, size = 0x12000, scoped, tag = 'internal scratch']
  %s0 = inlined_call_operand.vmem [shape: f32[2,4096], index: 0, kind: input, shape index: {}]
  %s1 = inlined_call_operand.vmem [shape: f32[192,32], index: 1, kind: input, shape index: {}]
  %s2 = inlined_call_operand.vmem [shape: bf16[32,4096], index: 2, kind: output, shape index: {}]
  %s3 = sld [smem:[#allocation0]]
  $region60: #{mlp_forward.1} parent=0
    _
  %s5 = ssub.s32 1, %s3
  %s6 = scalar_select 0, %s5, %s3
  $region1: #{mlp_forward.1} parent=0
    #allocation2 [shape = 'u8[262144]{0}', space=vmem, size = 0x40000, scoped, tag = 'output window, operand 0']
    loop: start=0, step=1, limit=4
    $region2: #{mlp_forward.1} parent=1 // loop_pre_header
      _
    $region3: #{mlp_forward.1} parent=1 // loop_header
      %s8 = sphi 0, %s12
      %p9 = scmp.ge.s32.totalorder %s8, 4
      %s18 = sphi 0, %s20
      %s21 = sphi 0, %s18
      %s22 = sphi 0, %s21
      %s38 = sphi 0, %s22
      %s42 = sphi 0, %s42
      %s44 = sphi 0, %s42
      %s45 = sphi 0, %s44
      %s59 = sphi 0, %s45
      %s65 = sphi 0, %s67
      %s68 = sphi 0, %s65
      %s69 = sphi 0, %s68
      %s85 = sphi 0, %s69
    $region4: #{mlp_forward.1} parent=1 // loop_header_branch
      %11 = sbr.rel (%p9) target = $region8
    $region5: #{mlp_forward.1} parent=1 // loop_body
      %s13 = ssub.s32 %s8, 1
      %s14 = ssub.s32 %s8, 2
      %s15 = sadd.s32 %s8, 1
      %s16 = ssub.s32 %s8, %s15
      %p17 = scmp.eq.s32.totalorder %s16, 0
      %s19 = sadd.s32 %s18, 1
      %s20 = scalar_select %p17, %s18, %s19
      %p23 = pneg %p17
      %p24 = scmp.eq.s32.totalorder %s8, 1
      %p25 = por %p23, %p24
      %p26 = scmp.ne.s32.totalorder %s18, %s21
      %p27 = scmp.eq.s32.totalorder %s8, 0
      %p28 = por %p26, %p27
      %p29 = scmp.ne.s32.totalorder %s18, %s21
      %p30 = scmp.eq.s32.totalorder %s13, 1
      %p31 = por %p29, %p30
      %p32 = scmp.ne.s32.totalorder %s21, %s22
      %p33 = scmp.eq.s32.totalorder %s13, 0
      %p34 = por %p32, %p33
      %p35 = scmp.ne.s32.totalorder %s21, %s22
      %p36 = scmp.eq.s32.totalorder %s14, 1
      %p37 = por %p35, %p36
      %p39 = scmp.ne.s32.totalorder %s22, %s38
      %p40 = scmp.eq.s32.totalorder %s14, 0
      %p41 = por %p39, %p40
      %s43 = sadd.s32 %s42, 1
      %p46 = scmp.eq.s32.totalorder %s8, 1
      %p47 = scmp.ne.s32.totalorder %s42, %s44
      %p48 = scmp.eq.s32.totalorder %s8, 0
      %p49 = por %p47, %p48
      %p50 = scmp.ne.s32.totalorder %s42, %s44
      %p51 = scmp.eq.s32.totalorder %s13, 1
      %p52 = por %p50, %p51
      %p53 = scmp.ne.s32.totalorder %s44, %s45
      %p54 = scmp.eq.s32.totalorder %s13, 0
      %p55 = por %p53, %p54
      %p56 = scmp.ne.s32.totalorder %s44, %s45
      %p57 = scmp.eq.s32.totalorder %s14, 1
      %p58 = por %p56, %p57
      %p60 = scmp.ne.s32.totalorder %s45, %s59
      %p61 = scmp.eq.s32.totalorder %s14, 0
      %p62 = por %p60, %p61
      %s63 = ssub.s32 %s8, %s15
      %p64 = scmp.eq.s32.totalorder %s63, 0
      %s66 = sadd.s32 %s65, 1
      %s67 = scalar_select %p64, %s65, %s66
      %p70 = pneg %p64
      %p71 = scmp.eq.s32.totalorder %s8, 1
      %p72 = por %p70, %p71
      %p73 = scmp.ne.s32.totalorder %s65, %s68
      %p74 = scmp.eq.s32.totalorder %s8, 0
      %p75 = por %p73, %p74
      %p76 = scmp.ne.s32.totalorder %s65, %s68
      %p77 = scmp.eq.s32.totalorder %s13, 1
      %p78 = por %p76, %p77
      %p79 = scmp.ne.s32.totalorder %s68, %s69
      %p80 = scmp.eq.s32.totalorder %s13, 0
      %p81 = por %p79, %p80
      %p82 = scmp.ne.s32.totalorder %s68, %s69
      %p83 = scmp.eq.s32.totalorder %s14, 1
      %p84 = por %p82, %p83
      %p86 = scmp.ne.s32.totalorder %s69, %s85
      %p87 = scmp.eq.s32.totalorder %s14, 0
      %p88 = por %p86, %p87
      %p89 = scmp.le.s32.totalorder 1, %s8
      %p90 = scmp.lt.s32.totalorder %s8, 3
      %p91 = pnand %p89, %p90
      %p92 = pneg %p91
      // Predicated region
      $region9: #{mlp_forward.1} parent=5 // pred_check
        _
      $region10: #{mlp_forward.1} parent=5 // pred_check_branch
        %94 = sbr.rel (%p91) target = $region12
      $region11: #{mlp_forward.1} parent=5 // pred_region
        %s95 = ssub.s32 %s8, 1
        // Predicated region
        $region13: #{mlp_forward.1} parent=11 // pred_check
          %p96 = pneg %p55
        $region14: #{mlp_forward.1} parent=11 // pred_check_branch
          %98 = sbr.rel (%p96) target = $region16
        $region15: #{mlp_forward.1} parent=11 // pred_region
          _
        $region16: #{mlp_forward.1} parent=11 // pred_fallthru
          _
      $region12: #{mlp_forward.1} parent=5 // pred_fallthru
        _
      %p99 = scmp.lt.s32.totalorder %s8, 2
      // Predicated region
      $region17: #{mlp_forward.1} parent=5 // pred_check
        %p100 = pneg %p99
      $region18: #{mlp_forward.1} parent=5 // pred_check_branch
        %102 = sbr.rel (%p100) target = $region20
      $region19: #{mlp_forward.1} parent=5 // pred_region
        // Predicated region
        $region21: #{mlp_forward.1} parent=19 // pred_check
          %p103 = pneg %p28
        $region22: #{mlp_forward.1} parent=19 // pred_check_branch
          %105 = sbr.rel (%p103) target = $region24
        $region23: #{mlp_forward.1} parent=19 // pred_region
          %s106 = smul.u32 16, %s8
          %p107 = scmp.lt.s32.totalorder %s106, 31
          %s108 = scalar_select %p107, %s106, 31
          %s109 = smul.addr %s108, 2
          %s110 = scalar_lea.vmem %s0, %s109
          %s111 = smul.u32 16, %s8
        $region24: #{mlp_forward.1} parent=19 // pred_fallthru
          _
      $region20: #{mlp_forward.1} parent=5 // pred_fallthru
        _
      %p112 = scmp.le.s32.totalorder 1, %s8
      %p113 = scmp.lt.s32.totalorder %s8, 3
      %p114 = pnand %p112, %p113
      %p115 = pneg %p114
      // Predicated region
      $region25: #{mlp_forward.1} parent=5 // pred_check
        _
      $region26: #{mlp_forward.1} parent=5 // pred_check_branch
        %117 = sbr.rel (%p114) target = $region28
      $region27: #{mlp_forward.1} parent=5 // pred_region
        %s118 = ssub.s32 %s8, 1
        %s119 = smul.u32 16, %s13
        %p120 = scmp.lt.s32.totalorder %s119, 31
        %s121 = scalar_select %p120, %s119, 31
        %s122 = smul.addr %s121, 2
        %s123 = scalar_lea.vmem %s0, %s122
        %p124 = pneg %p34
        %p125 = pneg %p31
        %p126 = pneg %p55
        %p127 = pneg %p52
        %p128 = pneg %p81
        %p129 = pneg %p78
        %s130 = sand.u32 %s68, 1
        %s131 = sand.u32 %s68, 1
        %s132 = smul.addr %s131, 256
        %s133 = scalar_lea.vmem [#allocation2], %s132
        %s134 = smul.u32 16, %s13
        %p135 = scmp.lt.s32.totalorder %s134, 31
        %s136 = scalar_select %p135, %s134, 31
        %s137 = smul.addr %s136, 2
        %s138 = scalar_lea.vmem %s0, %s137
        %s139 = smul.u32 16, %s13
        %s140 = smul.u32 16, %s13
        %v141 = vld [vmem:[%s138] sm:$0xff]
        %v142 = vld [vmem:[%s138 + $0x8] sm:$0xff]
        %v143 = vld [vmem:[%s138 + $0x10] sm:$0xff]
        %v144 = vld [vmem:[%s138 + $0x18] sm:$0xff]
        %v145 = vld [vmem:[%s1 + $0x80] sm:$0xff]
        %v146 = vld [vmem:[%s1 + $0x88] sm:$0xff]
        %v147 = vld [vmem:[%s1 + $0x90] sm:$0xff]
        %v148 = vld [vmem:[%s1 + $0x98] sm:$0xff]
        %v149 = vld [vmem:[%s1] sm:$0xff]
        %v150 = vld [vmem:[%s1 + $0x8] sm:$0xff]
        %v151 = vld [vmem:[%s1 + $0x10] sm:$0xff]
        %v152 = vld [vmem:[%s1 + $0x18] sm:$0xff]
        %154 = vset.pattern.permute.xlu0 0
        %155 = vperm.xlu0 %154, %v149
        %v156 = vpop.permute.xlu0 %155
        %159 = vset.pattern.permute.xlu0 0
        %160 = vperm.xlu0 %159, %v150
        %v161 = vpop.permute.xlu0 %160
        %164 = vset.pattern.permute.xlu0 0
        %165 = vperm.xlu0 %164, %v151
        %v166 = vpop.permute.xlu0 %165
        %169 = vset.pattern.permute.xlu0 0
        %170 = vperm.xlu0 %169, %v152
        %v171 = vpop.permute.xlu0 %170
        %v177 = vlaneseq
        %v178 = vshrl.u32 %v177, 7
        %v179 = vsub.s32 0, %v178
        %v180 = vrot.slane %v141, %v179
        %v181 = vlaneseq
        %v182 = vshrl.u32 %v181, 7
        %v183 = vsub.s32 2, %v182
        %v184 = vrot.slane %v141, %v183
        %v185 = vlaneseq
        %v186 = vshrl.u32 %v185, 7
        %v187 = vsub.s32 4, %v186
        %v188 = vrot.slane %v141, %v187
        %v189 = vlaneseq
        %v190 = vshrl.u32 %v189, 7
        %v191 = vsub.s32 6, %v190
        %v192 = vrot.slane %v141, %v191
        %v193 = vlaneseq
        %v194 = vshrl.u32 %v193, 7
        %v195 = vsub.s32 0, %v194
        %v196 = vrot.slane %v142, %v195
        %v197 = vlaneseq
        %v198 = vshrl.u32 %v197, 7
        %v199 = vsub.s32 2, %v198
        %v200 = vrot.slane %v142, %v199
        %v201 = vlaneseq
        %v202 = vshrl.u32 %v201, 7
        %v203 = vsub.s32 4, %v202
        %v204 = vrot.slane %v142, %v203
        %v205 = vlaneseq
        %v206 = vshrl.u32 %v205, 7
        %v207 = vsub.s32 6, %v206
        %v208 = vrot.slane %v142, %v207
        %v209 = vlaneseq
        %v210 = vshrl.u32 %v209, 7
        %v211 = vsub.s32 0, %v210
        %v212 = vrot.slane %v143, %v211
        %v213 = vlaneseq
        %v214 = vshrl.u32 %v213, 7
        %v215 = vsub.s32 2, %v214
        %v216 = vrot.slane %v143, %v215
        %v217 = vlaneseq
        %v218 = vshrl.u32 %v217, 7
        %v219 = vsub.s32 4, %v218
        %v220 = vrot.slane %v143, %v219
        %v221 = vlaneseq
        %v222 = vshrl.u32 %v221, 7
        %v223 = vsub.s32 6, %v222
        %v224 = vrot.slane %v143, %v223
        %v225 = vlaneseq
        %v226 = vshrl.u32 %v225, 7
        %v227 = vsub.s32 0, %v226
        %v228 = vrot.slane %v144, %v227
        %v229 = vlaneseq
        %v230 = vshrl.u32 %v229, 7
        %v231 = vsub.s32 2, %v230
        %v232 = vrot.slane %v144, %v231
        %v233 = vlaneseq
        %v234 = vshrl.u32 %v233, 7
        %v235 = vsub.s32 4, %v234
        %v236 = vrot.slane %v144, %v235
        %v237 = vlaneseq
        %v238 = vshrl.u32 %v237, 7
        %v239 = vsub.s32 6, %v238
        %v240 = vrot.slane %v144, %v239
        %v257 = vlaneseq
        %v258 = vshrl.u32 %v257, 7
        %v259 = vsub.s32 0, %v258
        %v260 = vrot.slane %v180, %v259
        %v261 = vlaneseq
        %v262 = vshrl.u32 %v261, 7
        %v263 = vsub.s32 0, %v262
        %v264 = vrot.slane %v184, %v263
        %v265 = vlaneseq
        %v266 = vshrl.u32 %v265, 7
        %v267 = vsub.s32 0, %v266
        %v268 = vrot.slane %v188, %v267
        %v269 = vlaneseq
        %v270 = vshrl.u32 %v269, 7
        %v271 = vsub.s32 0, %v270
        %v272 = vrot.slane %v192, %v271
        %v273 = vlaneseq
        %v274 = vshrl.u32 %v273, 7
        %v275 = vsub.s32 0, %v274
        %v276 = vrot.slane %v196, %v275
        %v277 = vlaneseq
        %v278 = vshrl.u32 %v277, 7
        %v279 = vsub.s32 0, %v278
        %v280 = vrot.slane %v200, %v279
        %v281 = vlaneseq
        %v282 = vshrl.u32 %v281, 7
        %v283 = vsub.s32 0, %v282
        %v284 = vrot.slane %v204, %v283
        %v285 = vlaneseq
        %v286 = vshrl.u32 %v285, 7
        %v287 = vsub.s32 0, %v286
        %v288 = vrot.slane %v208, %v287
        %v289 = vlaneseq
        %v290 = vshrl.u32 %v289, 7
        %v291 = vsub.s32 0, %v290
        %v292 = vrot.slane %v212, %v291
        %v293 = vlaneseq
        %v294 = vshrl.u32 %v293, 7
        %v295 = vsub.s32 0, %v294
        %v296 = vrot.slane %v216, %v295
        %v297 = vlaneseq
        %v298 = vshrl.u32 %v297, 7
        %v299 = vsub.s32 0, %v298
        %v300 = vrot.slane %v220, %v299
        %v301 = vlaneseq
        %v302 = vshrl.u32 %v301, 7
        %v303 = vsub.s32 0, %v302
        %v304 = vrot.slane %v224, %v303
        %v305 = vlaneseq
        %v306 = vshrl.u32 %v305, 7
        %v307 = vsub.s32 0, %v306
        %v308 = vrot.slane %v228, %v307
        %v309 = vlaneseq
        %v310 = vshrl.u32 %v309, 7
        %v311 = vsub.s32 0, %v310
        %v312 = vrot.slane %v232, %v311
        %v313 = vlaneseq
        %v314 = vshrl.u32 %v313, 7
        %v315 = vsub.s32 0, %v314
        %v316 = vrot.slane %v236, %v315
        %v317 = vlaneseq
        %v318 = vshrl.u32 %v317, 7
        %v319 = vsub.s32 0, %v318
        %v320 = vrot.slane %v240, %v319
        %v321 = vmul.f32 %v156, %v260
        %v322 = vmul.f32 %v156, %v264
        %v323 = vmul.f32 %v156, %v268
        %v324 = vmul.f32 %v156, %v272
        %v325 = vmul.f32 %v156, %v276
        %v326 = vmul.f32 %v156, %v280
        %v327 = vmul.f32 %v156, %v284
        %v328 = vmul.f32 %v156, %v288
        %v329 = vmul.f32 %v156, %v292
        %v330 = vmul.f32 %v156, %v296
        %v331 = vmul.f32 %v156, %v300
        %v332 = vmul.f32 %v156, %v304
        %v333 = vmul.f32 %v156, %v308
        %v334 = vmul.f32 %v156, %v312
        %v335 = vmul.f32 %v156, %v316
        %v336 = vmul.f32 %v156, %v320
        %v337 = vmul.f32 %v161, %v260
        %v338 = vmul.f32 %v161, %v264
        %v339 = vmul.f32 %v161, %v268
        %v340 = vmul.f32 %v161, %v272
        %v341 = vmul.f32 %v161, %v276
        %v342 = vmul.f32 %v161, %v280
        %v343 = vmul.f32 %v161, %v284
        %v344 = vmul.f32 %v161, %v288
        %v345 = vmul.f32 %v161, %v292
        %v346 = vmul.f32 %v161, %v296
        %v347 = vmul.f32 %v161, %v300
        %v348 = vmul.f32 %v161, %v304
        %v349 = vmul.f32 %v161, %v308
        %v350 = vmul.f32 %v161, %v312
        %v351 = vmul.f32 %v161, %v316
        %v352 = vmul.f32 %v161, %v320
        %v353 = vmul.f32 %v166, %v260
        %v354 = vmul.f32 %v166, %v264
        %v355 = vmul.f32 %v166, %v268
        %v356 = vmul.f32 %v166, %v272
        %v357 = vmul.f32 %v166, %v276
        %v358 = vmul.f32 %v166, %v280
        %v359 = vmul.f32 %v166, %v284
        %v360 = vmul.f32 %v166, %v288
        %v361 = vmul.f32 %v166, %v292
        %v362 = vmul.f32 %v166, %v296
        %v363 = vmul.f32 %v166, %v300
        %v364 = vmul.f32 %v166, %v304
        %v365 = vmul.f32 %v166, %v308
        %v366 = vmul.f32 %v166, %v312
        %v367 = vmul.f32 %v166, %v316
        %v368 = vmul.f32 %v166, %v320
        %v369 = vmul.f32 %v171, %v260
        %v370 = vmul.f32 %v171, %v264
        %v371 = vmul.f32 %v171, %v268
        %v372 = vmul.f32 %v171, %v272
        %v373 = vmul.f32 %v171, %v276
        %v374 = vmul.f32 %v171, %v280
        %v375 = vmul.f32 %v171, %v284
        %v376 = vmul.f32 %v171, %v288
        %v377 = vmul.f32 %v171, %v292
        %v378 = vmul.f32 %v171, %v296
        %v379 = vmul.f32 %v171, %v300
        %v380 = vmul.f32 %v171, %v304
        %v381 = vmul.f32 %v171, %v308
        %v382 = vmul.f32 %v171, %v312
        %v383 = vmul.f32 %v171, %v316
        %v384 = vmul.f32 %v171, %v320
        %386 = vset.pattern.permute.xlu0 0
        %387 = vperm.xlu0 %386, %v145
        %v388 = vpop.permute.xlu0 %387
        %391 = vset.pattern.permute.xlu0 0
        %392 = vperm.xlu0 %391, %v146
        %v393 = vpop.permute.xlu0 %392
        %396 = vset.pattern.permute.xlu0 0
        %397 = vperm.xlu0 %396, %v147
        %v398 = vpop.permute.xlu0 %397
        %401 = vset.pattern.permute.xlu0 0
        %402 = vperm.xlu0 %401, %v148
        %v403 = vpop.permute.xlu0 %402
        %v405 = vadd.f32 %v388, %v321
        %v406 = vadd.f32 %v388, %v322
        %v407 = vadd.f32 %v388, %v323
        %v408 = vadd.f32 %v388, %v324
        %v409 = vadd.f32 %v388, %v325
        %v410 = vadd.f32 %v388, %v326
        %v411 = vadd.f32 %v388, %v327
        %v412 = vadd.f32 %v388, %v328
        %v413 = vadd.f32 %v388, %v329
        %v414 = vadd.f32 %v388, %v330
        %v415 = vadd.f32 %v388, %v331
        %v416 = vadd.f32 %v388, %v332
        %v417 = vadd.f32 %v388, %v333
        %v418 = vadd.f32 %v388, %v334
        %v419 = vadd.f32 %v388, %v335
        %v420 = vadd.f32 %v388, %v336
        %v421 = vadd.f32 %v393, %v337
        %v422 = vadd.f32 %v393, %v338
        %v423 = vadd.f32 %v393, %v339
        %v424 = vadd.f32 %v393, %v340
        %v425 = vadd.f32 %v393, %v341
        %v426 = vadd.f32 %v393, %v342
        %v427 = vadd.f32 %v393, %v343
        %v428 = vadd.f32 %v393, %v344
        %v429 = vadd.f32 %v393, %v345
        %v430 = vadd.f32 %v393, %v346
        %v431 = vadd.f32 %v393, %v347
        %v432 = vadd.f32 %v393, %v348
        %v433 = vadd.f32 %v393, %v349
        %v434 = vadd.f32 %v393, %v350
        %v435 = vadd.f32 %v393, %v351
        %v436 = vadd.f32 %v393, %v352
        %v437 = vadd.f32 %v398, %v353
        %v438 = vadd.f32 %v398, %v354
        %v439 = vadd.f32 %v398, %v355
        %v440 = vadd.f32 %v398, %v356
        %v441 = vadd.f32 %v398, %v357
        %v442 = vadd.f32 %v398, %v358
        %v443 = vadd.f32 %v398, %v359
        %v444 = vadd.f32 %v398, %v360
        %v445 = vadd.f32 %v398, %v361
        %v446 = vadd.f32 %v398, %v362
        %v447 = vadd.f32 %v398, %v363
        %v448 = vadd.f32 %v398, %v364
        %v449 = vadd.f32 %v398, %v365
        %v450 = vadd.f32 %v398, %v366
        %v451 = vadd.f32 %v398, %v367
        %v452 = vadd.f32 %v398, %v368
        %v453 = vadd.f32 %v403, %v369
        %v454 = vadd.f32 %v403, %v370
        %v455 = vadd.f32 %v403, %v371
        %v456 = vadd.f32 %v403, %v372
        %v457 = vadd.f32 %v403, %v373
        %v458 = vadd.f32 %v403, %v374
        %v459 = vadd.f32 %v403, %v375
        %v460 = vadd.f32 %v403, %v376
        %v461 = vadd.f32 %v403, %v377
        %v462 = vadd.f32 %v403, %v378
        %v463 = vadd.f32 %v403, %v379
        %v464 = vadd.f32 %v403, %v380
        %v465 = vadd.f32 %v403, %v381
        %v466 = vadd.f32 %v403, %v382
        %v467 = vadd.f32 %v403, %v383
        %v468 = vadd.f32 %v403, %v384
        %469 = vset.pattern.permute.xlu0 1
        %470 = vperm.xlu0 %469, %v149
        %v471 = vpop.permute.xlu0 %470
        %473 = vset.pattern.permute.xlu0 1
        %474 = vperm.xlu0 %473, %v150
        %v475 = vpop.permute.xlu0 %474
        %477 = vset.pattern.permute.xlu0 1
        %478 = vperm.xlu0 %477, %v151
        %v479 = vpop.permute.xlu0 %478
        %481 = vset.pattern.permute.xlu0 1
        %482 = vperm.xlu0 %481, %v152
        %v483 = vpop.permute.xlu0 %482
        %v485 = vlaneseq
        %v486 = vshrl.u32 %v485, 7
        %v487 = vsub.s32 1, %v486
        %v488 = vrot.slane %v141, %v487
        %v489 = vlaneseq
        %v490 = vshrl.u32 %v489, 7
        %v491 = vsub.s32 3, %v490
        %v492 = vrot.slane %v141, %v491
        %v493 = vlaneseq
        %v494 = vshrl.u32 %v493, 7
        %v495 = vsub.s32 5, %v494
        %v496 = vrot.slane %v141, %v495
        %v497 = vlaneseq
        %v498 = vshrl.u32 %v497, 7
        %v499 = vsub.s32 7, %v498
        %v500 = vrot.slane %v141, %v499
        %v501 = vlaneseq
        %v502 = vshrl.u32 %v501, 7
        %v503 = vsub.s32 1, %v502
        %v504 = vrot.slane %v142, %v503
        %v505 = vlaneseq
        %v506 = vshrl.u32 %v505, 7
        %v507 = vsub.s32 3, %v506
        %v508 = vrot.slane %v142, %v507
        %v509 = vlaneseq
        %v510 = vshrl.u32 %v509, 7
        %v511 = vsub.s32 5, %v510
        %v512 = vrot.slane %v142, %v511
        %v513 = vlaneseq
        %v514 = vshrl.u32 %v513, 7
        %v515 = vsub.s32 7, %v514
        %v516 = vrot.slane %v142, %v515
        %v517 = vlaneseq
        %v518 = vshrl.u32 %v517, 7
        %v519 = vsub.s32 1, %v518
        %v520 = vrot.slane %v143, %v519
        %v521 = vlaneseq
        %v522 = vshrl.u32 %v521, 7
        %v523 = vsub.s32 3, %v522
        %v524 = vrot.slane %v143, %v523
        %v525 = vlaneseq
        %v526 = vshrl.u32 %v525, 7
        %v527 = vsub.s32 5, %v526
        %v528 = vrot.slane %v143, %v527
        %v529 = vlaneseq
        %v530 = vshrl.u32 %v529, 7
        %v531 = vsub.s32 7, %v530
        %v532 = vrot.slane %v143, %v531
        %v533 = vlaneseq
        %v534 = vshrl.u32 %v533, 7
        %v535 = vsub.s32 1, %v534
        %v536 = vrot.slane %v144, %v535
        %v537 = vlaneseq
        %v538 = vshrl.u32 %v537, 7
        %v539 = vsub.s32 3, %v538
        %v540 = vrot.slane %v144, %v539
        %v541 = vlaneseq
        %v542 = vshrl.u32 %v541, 7
        %v543 = vsub.s32 5, %v542
        %v544 = vrot.slane %v144, %v543
        %v545 = vlaneseq
        %v546 = vshrl.u32 %v545, 7
        %v547 = vsub.s32 7, %v546
        %v548 = vrot.slane %v144, %v547
        %v565 = vlaneseq
        %v566 = vshrl.u32 %v565, 7
        %v567 = vsub.s32 1, %v566
        %v568 = vrot.slane %v488, %v567
        %v569 = vlaneseq
        %v570 = vshrl.u32 %v569, 7
        %v571 = vsub.s32 1, %v570
        %v572 = vrot.slane %v492, %v571
        %v573 = vlaneseq
        %v574 = vshrl.u32 %v573, 7
        %v575 = vsub.s32 1, %v574
        %v576 = vrot.slane %v496, %v575
        %v577 = vlaneseq
        %v578 = vshrl.u32 %v577, 7
        %v579 = vsub.s32 1, %v578
        %v580 = vrot.slane %v500, %v579
        %v581 = vlaneseq
        %v582 = vshrl.u32 %v581, 7
        %v583 = vsub.s32 1, %v582
        %v584 = vrot.slane %v504, %v583
        %v585 = vlaneseq
        %v586 = vshrl.u32 %v585, 7
        %v587 = vsub.s32 1, %v586
        %v588 = vrot.slane %v508, %v587
        %v589 = vlaneseq
        %v590 = vshrl.u32 %v589, 7
        %v591 = vsub.s32 1, %v590
        %v592 = vrot.slane %v512, %v591
        %v593 = vlaneseq
        %v594 = vshrl.u32 %v593, 7
        %v595 = vsub.s32 1, %v594
        %v596 = vrot.slane %v516, %v595
        %v597 = vlaneseq
        %v598 = vshrl.u32 %v597, 7
        %v599 = vsub.s32 1, %v598
        %v600 = vrot.slane %v520, %v599
        %v601 = vlaneseq
        %v602 = vshrl.u32 %v601, 7
        %v603 = vsub.s32 1, %v602
        %v604 = vrot.slane %v524, %v603
        %v605 = vlaneseq
        %v606 = vshrl.u32 %v605, 7
        %v607 = vsub.s32 1, %v606
        %v608 = vrot.slane %v528, %v607
        %v609 = vlaneseq
        %v610 = vshrl.u32 %v609, 7
        %v611 = vsub.s32 1, %v610
        %v612 = vrot.slane %v532, %v611
        %v613 = vlaneseq
        %v614 = vshrl.u32 %v613, 7
        %v615 = vsub.s32 1, %v614
        %v616 = vrot.slane %v536, %v615
        %v617 = vlaneseq
        %v618 = vshrl.u32 %v617, 7
        %v619 = vsub.s32 1, %v618
        %v620 = vrot.slane %v540, %v619
        %v621 = vlaneseq
        %v622 = vshrl.u32 %v621, 7
        %v623 = vsub.s32 1, %v622
        %v624 = vrot.slane %v544, %v623
        %v625 = vlaneseq
        %v626 = vshrl.u32 %v625, 7
        %v627 = vsub.s32 1, %v626
        %v628 = vrot.slane %v548, %v627
        %v629 = vmul.f32 %v471, %v568
        %v630 = vmul.f32 %v471, %v572
        %v631 = vmul.f32 %v471, %v576
        %v632 = vmul.f32 %v471, %v580
        %v633 = vmul.f32 %v471, %v584
        %v634 = vmul.f32 %v471, %v588
        %v635 = vmul.f32 %v471, %v592
        %v636 = vmul.f32 %v471, %v596
        %v637 = vmul.f32 %v471, %v600
        %v638 = vmul.f32 %v471, %v604
        %v639 = vmul.f32 %v471, %v608
        %v640 = vmul.f32 %v471, %v612
        %v641 = vmul.f32 %v471, %v616
        %v642 = vmul.f32 %v471, %v620
        %v643 = vmul.f32 %v471, %v624
        %v644 = vmul.f32 %v471, %v628
        %v645 = vmul.f32 %v475, %v568
        %v646 = vmul.f32 %v475, %v572
        %v647 = vmul.f32 %v475, %v576
        %v648 = vmul.f32 %v475, %v580
        %v649 = vmul.f32 %v475, %v584
        %v650 = vmul.f32 %v475, %v588
        %v651 = vmul.f32 %v475, %v592
        %v652 = vmul.f32 %v475, %v596
        %v653 = vmul.f32 %v475, %v600
        %v654 = vmul.f32 %v475, %v604
        %v655 = vmul.f32 %v475, %v608
        %v656 = vmul.f32 %v475, %v612
        %v657 = vmul.f32 %v475, %v616
        %v658 = vmul.f32 %v475, %v620
        %v659 = vmul.f32 %v475, %v624
        %v660 = vmul.f32 %v475, %v628
        %v661 = vmul.f32 %v479, %v568
        %v662 = vmul.f32 %v479, %v572
        %v663 = vmul.f32 %v479, %v576
        %v664 = vmul.f32 %v479, %v580
        %v665 = vmul.f32 %v479, %v584
        %v666 = vmul.f32 %v479, %v588
        %v667 = vmul.f32 %v479, %v592
        %v668 = vmul.f32 %v479, %v596
        %v669 = vmul.f32 %v479, %v600
        %v670 = vmul.f32 %v479, %v604
        %v671 = vmul.f32 %v479, %v608
        %v672 = vmul.f32 %v479, %v612
        %v673 = vmul.f32 %v479, %v616
        %v674 = vmul.f32 %v479, %v620
        %v675 = vmul.f32 %v479, %v624
        %v676 = vmul.f32 %v479, %v628
        %v677 = vmul.f32 %v483, %v568
        %v678 = vmul.f32 %v483, %v572
        %v679 = vmul.f32 %v483, %v576
        %v680 = vmul.f32 %v483, %v580
        %v681 = vmul.f32 %v483, %v584
        %v682 = vmul.f32 %v483, %v588
        %v683 = vmul.f32 %v483, %v592
        %v684 = vmul.f32 %v483, %v596
        %v685 = vmul.f32 %v483, %v600
        %v686 = vmul.f32 %v483, %v604
        %v687 = vmul.f32 %v483, %v608
        %v688 = vmul.f32 %v483, %v612
        %v689 = vmul.f32 %v483, %v616
        %v690 = vmul.f32 %v483, %v620
        %v691 = vmul.f32 %v483, %v624
        %v692 = vmul.f32 %v483, %v628
        %v693 = vadd.f32 %v405, %v629
        %v694 = vadd.f32 %v406, %v630
        %v695 = vadd.f32 %v407, %v631
        %v696 = vadd.f32 %v408, %v632
        %v697 = vadd.f32 %v409, %v633
        %v698 = vadd.f32 %v410, %v634
        %v699 = vadd.f32 %v411, %v635
        %v700 = vadd.f32 %v412, %v636
        %v701 = vadd.f32 %v413, %v637
        %v702 = vadd.f32 %v414, %v638
        %v703 = vadd.f32 %v415, %v639
        %v704 = vadd.f32 %v416, %v640
        %v705 = vadd.f32 %v417, %v641
        %v706 = vadd.f32 %v418, %v642
        %v707 = vadd.f32 %v419, %v643
        %v708 = vadd.f32 %v420, %v644
        %v709 = vadd.f32 %v421, %v645
        %v710 = vadd.f32 %v422, %v646
        %v711 = vadd.f32 %v423, %v647
        %v712 = vadd.f32 %v424, %v648
        %v713 = vadd.f32 %v425, %v649
        %v714 = vadd.f32 %v426, %v650
        %v715 = vadd.f32 %v427, %v651
        %v716 = vadd.f32 %v428, %v652
        %v717 = vadd.f32 %v429, %v653
        %v718 = vadd.f32 %v430, %v654
        %v719 = vadd.f32 %v431, %v655
        %v720 = vadd.f32 %v432, %v656
        %v721 = vadd.f32 %v433, %v657
        %v722 = vadd.f32 %v434, %v658
        %v723 = vadd.f32 %v435, %v659
        %v724 = vadd.f32 %v436, %v660
        %v725 = vadd.f32 %v437, %v661
        %v726 = vadd.f32 %v438, %v662
        %v727 = vadd.f32 %v439, %v663
        %v728 = vadd.f32 %v440, %v664
        %v729 = vadd.f32 %v441, %v665
        %v730 = vadd.f32 %v442, %v666
        %v731 = vadd.f32 %v443, %v667
        %v732 = vadd.f32 %v444, %v668
        %v733 = vadd.f32 %v445, %v669
        %v734 = vadd.f32 %v446, %v670
        %v735 = vadd.f32 %v447, %v671
        %v736 = vadd.f32 %v448, %v672
        %v737 = vadd.f32 %v449, %v673
        %v738 = vadd.f32 %v450, %v674
        %v739 = vadd.f32 %v451, %v675
        %v740 = vadd.f32 %v452, %v676
        %v741 = vadd.f32 %v453, %v677
        %v742 = vadd.f32 %v454, %v678
        %v743 = vadd.f32 %v455, %v679
        %v744 = vadd.f32 %v456, %v680
        %v745 = vadd.f32 %v457, %v681
        %v746 = vadd.f32 %v458, %v682
        %v747 = vadd.f32 %v459, %v683
        %v748 = vadd.f32 %v460, %v684
        %v749 = vadd.f32 %v461, %v685
        %v750 = vadd.f32 %v462, %v686
        %v751 = vadd.f32 %v463, %v687
        %v752 = vadd.f32 %v464, %v688
        %v753 = vadd.f32 %v465, %v689
        %v754 = vadd.f32 %v466, %v690
        %v755 = vadd.f32 %v467, %v691
        %v756 = vadd.f32 %v468, %v692
        %v757 = vmax.f32 %v693, 0.0
        %v758 = vmax.f32 %v694, 0.0
        %v759 = vmax.f32 %v695, 0.0
        %v760 = vmax.f32 %v696, 0.0
        %v761 = vmax.f32 %v697, 0.0
        %v762 = vmax.f32 %v698, 0.0
        %v763 = vmax.f32 %v699, 0.0
        %v764 = vmax.f32 %v700, 0.0
        %v765 = vmax.f32 %v701, 0.0
        %v766 = vmax.f32 %v702, 0.0
        %v767 = vmax.f32 %v703, 0.0
        %v768 = vmax.f32 %v704, 0.0
        %v769 = vmax.f32 %v705, 0.0
        %v770 = vmax.f32 %v706, 0.0
        %v771 = vmax.f32 %v707, 0.0
        %v772 = vmax.f32 %v708, 0.0
        %v773 = vmax.f32 %v709, 0.0
        %v774 = vmax.f32 %v710, 0.0
        %v775 = vmax.f32 %v711, 0.0
        %v776 = vmax.f32 %v712, 0.0
        %v777 = vmax.f32 %v713, 0.0
        %v778 = vmax.f32 %v714, 0.0
        %v779 = vmax.f32 %v715, 0.0
        %v780 = vmax.f32 %v716, 0.0
        %v781 = vmax.f32 %v717, 0.0
        %v782 = vmax.f32 %v718, 0.0
        %v783 = vmax.f32 %v719, 0.0
        %v784 = vmax.f32 %v720, 0.0
        %v785 = vmax.f32 %v721, 0.0
        %v786 = vmax.f32 %v722, 0.0
        %v787 = vmax.f32 %v723, 0.0
        %v788 = vmax.f32 %v724, 0.0
        %v789 = vmax.f32 %v725, 0.0
        %v790 = vmax.f32 %v726, 0.0
        %v791 = vmax.f32 %v727, 0.0
        %v792 = vmax.f32 %v728, 0.0
        %v793 = vmax.f32 %v729, 0.0
        %v794 = vmax.f32 %v730, 0.0
        %v795 = vmax.f32 %v731, 0.0
        %v796 = vmax.f32 %v732, 0.0
        %v797 = vmax.f32 %v733, 0.0
        %v798 = vmax.f32 %v734, 0.0
        %v799 = vmax.f32 %v735, 0.0
        %v800 = vmax.f32 %v736, 0.0
        %v801 = vmax.f32 %v737, 0.0
        %v802 = vmax.f32 %v738, 0.0
        %v803 = vmax.f32 %v739, 0.0
        %v804 = vmax.f32 %v740, 0.0
        %v805 = vmax.f32 %v741, 0.0
        %v806 = vmax.f32 %v742, 0.0
        %v807 = vmax.f32 %v743, 0.0
        %v808 = vmax.f32 %v744, 0.0
        %v809 = vmax.f32 %v745, 0.0
        %v810 = vmax.f32 %v746, 0.0
        %v811 = vmax.f32 %v747, 0.0
        %v812 = vmax.f32 %v748, 0.0
        %v813 = vmax.f32 %v749, 0.0
        %v814 = vmax.f32 %v750, 0.0
        %v815 = vmax.f32 %v751, 0.0
        %v816 = vmax.f32 %v752, 0.0
        %v817 = vmax.f32 %v753, 0.0
        %v818 = vmax.f32 %v754, 0.0
        %v819 = vmax.f32 %v755, 0.0
        %v820 = vmax.f32 %v756, 0.0
        %v821 = vld [vmem:[%s1 + $0x20] sm:$0xff]
        %v822 = vld [vmem:[%s1 + $0x28] sm:$0xff]
        %v823 = vld [vmem:[%s1 + $0x30] sm:$0xff]
        %v824 = vld [vmem:[%s1 + $0x38] sm:$0xff]
        %825 = vset.pattern.permute.xlu0 1
        %826 = vperm.xlu0 %825, %v145
        %v827 = vpop.permute.xlu0 %826
        %829 = vset.pattern.permute.xlu0 1
        %830 = vperm.xlu0 %829, %v146
        %v831 = vpop.permute.xlu0 %830
        %833 = vset.pattern.permute.xlu0 1
        %834 = vperm.xlu0 %833, %v147
        %v835 = vpop.permute.xlu0 %834
        %837 = vset.pattern.permute.xlu0 1
        %838 = vperm.xlu0 %837, %v148
        %v839 = vpop.permute.xlu0 %838
        %vm841 = vcmask 261120
        %v843 = vsel %vm841, %v821, 0
        %v846 = vsel %vm841, %v822, 0
        %v849 = vsel %vm841, %v823, 0
        %v852 = vsel %vm841, %v824, 0
        %854 = vmatprep.subr.mxu0 0.0
        %855 = vmatpush1.msra.mxu0 0.0
        %856 = vmatprep.subr.mxu0 0.0
        %857 = vmatpush1.msra.mxu0 0.0
        %858 = vmatprep.subr.mxu0 0.0
        %859 = vmatpush1.msra.mxu0 0.0
        %860 = vmatprep.subr.mxu0 0.0
        %861 = vmatpush1.msra.mxu0 0.0
        %862 = vmatprep.subr.mxu0 0.0
        %863 = vmatpush1.msra.mxu0 0.0
        %864 = vmatprep.subr.mxu0 0.0
        %865 = vmatpush1.msra.mxu0 0.0
        %866 = vmatprep.subr.mxu0 0.0
        %867 = vmatpush1.msra.mxu0 0.0
        %868 = vmatprep.subr.mxu0 0.0
        %869 = vmatpush1.msra.mxu0 0.0
        %870 = vmatprep.subr.mxu0 0.0
        %871 = vmatpush1.msra.mxu0 0.0
        %872 = vmatprep.subr.mxu0 0.0
        %873 = vmatpush1.msra.mxu0 0.0
        %874 = vmatprep.subr.mxu0 0.0
        %875 = vmatpush1.msra.mxu0 0.0
        %876 = vmatprep.subr.mxu0 0.0
        %877 = vmatpush1.msra.mxu0 0.0
        %878 = vmatprep.subr.mxu0 %v806
        %879 = vmatpush1.msra.mxu0 %v805
        %880 = vmatprep.subr.mxu0 %v790
        %881 = vmatpush1.msra.mxu0 %v789
        %882 = vmatprep.subr.mxu0 %v774
        %883 = vmatpush1.msra.mxu0 %v773
        %884 = vmatprep.subr.mxu0 %v758
        %885 = vmatpush1.msra.mxu0 %v757
        %886 = vmatprep.subr.mxu0 0.0
        %887 = vmatpush2.msra.mxu0 0.0
        %888 = vmatprep.subr.mxu0 0.0
        %889 = vmatpush2.msra.mxu0 0.0
        %890 = vmatprep.subr.mxu0 0.0
        %891 = vmatpush2.msra.mxu0 0.0
        %892 = vmatprep.subr.mxu0 0.0
        %893 = vmatpush2.msra.mxu0 0.0
        %894 = vmatprep.subr.mxu0 0.0
        %895 = vmatpush2.msra.mxu0 0.0
        %896 = vmatprep.subr.mxu0 0.0
        %897 = vmatpush2.msra.mxu0 0.0
        %898 = vmatprep.subr.mxu0 0.0
        %899 = vmatpush2.msra.mxu0 0.0
        %900 = vmatprep.subr.mxu0 0.0
        %901 = vmatpush2.msra.mxu0 0.0
        %902 = vmatprep.subr.mxu0 0.0
        %903 = vmatpush2.msra.mxu0 0.0
        %904 = vmatprep.subr.mxu0 0.0
        %905 = vmatpush2.msra.mxu0 0.0
        %906 = vmatprep.subr.mxu0 0.0
        %907 = vmatpush2.msra.mxu0 0.0
        %908 = vmatprep.subr.mxu0 0.0
        %909 = vmatpush2.msra.mxu0 0.0
        %910 = vmatprep.subr.mxu0 0.0
        %911 = vmatpush2.msra.mxu0 0.0
        %912 = vmatprep.subr.mxu0 0.0
        %913 = vmatpush2.msra.mxu0 0.0
        %914 = vmatprep.subr.mxu0 0.0
        %915 = vmatpush2.msra.mxu0 0.0
        %916 = vmatprep.subr.mxu0 0.0
        %917 = vmatpush2.msra.mxu0 0.0
        %918 = vmatprep.mubr.f32.mxu0 0.0
        %919 = vmatmul.mubr.f32.gmra.mxu0 %v843
        %v920 = vpop.f32.mrf.mxu0
        %v921 = vadd.f32 %v827, %v920
        %v922 = vpop.f32.mrf.mxu0
        %v923 = vadd.f32 %v827, %v922
        %924 = vmatprep.mubr.f32.mxu0 0.0
        %925 = vmatmul.mubr.f32.gmra.mxu0 %v846
        %v926 = vpop.f32.mrf.mxu0
        %v927 = vadd.f32 %v831, %v926
        %v928 = vpop.f32.mrf.mxu0
        %v929 = vadd.f32 %v831, %v928
        %930 = vmatprep.mubr.f32.mxu0 0.0
        %931 = vmatmul.mubr.f32.gmra.mxu0 %v849
        %v932 = vpop.f32.mrf.mxu0
        %v933 = vadd.f32 %v835, %v932
        %v934 = vpop.f32.mrf.mxu0
        %v935 = vadd.f32 %v835, %v934
        %936 = vmatprep.mubr.f32.mxu0 0.0
        %937 = vmatmul.mubr.f32.gmra.mxu0 %v852
        %v938 = vpop.f32.mrf.mxu0
        %v939 = vadd.f32 %v839, %v938
        %v940 = vpop.f32.mrf.mxu0
        %v941 = vadd.f32 %v839, %v940
        %942 = vdwg.mxu0
        %943 = vmatprep.subr.mxu0 0.0
        %944 = vmatpush1.msra.mxu0 0.0
        %945 = vmatprep.subr.mxu0 0.0
        %946 = vmatpush1.msra.mxu0 0.0
        %947 = vmatprep.subr.mxu0 0.0
        %948 = vmatpush1.msra.mxu0 0.0
        %949 = vmatprep.subr.mxu0 0.0
        %950 = vmatpush1.msra.mxu0 0.0
        %951 = vmatprep.subr.mxu0 0.0
        %952 = vmatpush1.msra.mxu0 0.0
        %953 = vmatprep.subr.mxu0 0.0
        %954 = vmatpush1.msra.mxu0 0.0
        %955 = vmatprep.subr.mxu0 0.0
        %956 = vmatpush1.msra.mxu0 0.0
        %957 = vmatprep.subr.mxu0 0.0
        %958 = vmatpush1.msra.mxu0 0.0
        %959 = vmatprep.subr.mxu0 0.0
        %960 = vmatpush1.msra.mxu0 0.0
        %961 = vmatprep.subr.mxu0 0.0
        %962 = vmatpush1.msra.mxu0 0.0
        %963 = vmatprep.subr.mxu0 0.0
        %964 = vmatpush1.msra.mxu0 0.0
        %965 = vmatprep.subr.mxu0 0.0
        %966 = vmatpush1.msra.mxu0 0.0
        %967 = vmatprep.subr.mxu0 %v808
        %968 = vmatpush1.msra.mxu0 %v807
        %969 = vmatprep.subr.mxu0 %v792
        %970 = vmatpush1.msra.mxu0 %v791
        %971 = vmatprep.subr.mxu0 %v776
        %972 = vmatpush1.msra.mxu0 %v775
        %973 = vmatprep.subr.mxu0 %v760
        %974 = vmatpush1.msra.mxu0 %v759
        %975 = vmatprep.subr.mxu0 0.0
        %976 = vmatpush2.msra.mxu0 0.0
        %977 = vmatprep.subr.mxu0 0.0
        %978 = vmatpush2.msra.mxu0 0.0
        %979 = vmatprep.subr.mxu0 0.0
        %980 = vmatpush2.msra.mxu0 0.0
        %981 = vmatprep.subr.mxu0 0.0
        %982 = vmatpush2.msra.mxu0 0.0
        %983 = vmatprep.subr.mxu0 0.0
        %984 = vmatpush2.msra.mxu0 0.0
        %985 = vmatprep.subr.mxu0 0.0
        %986 = vmatpush2.msra.mxu0 0.0
        %987 = vmatprep.subr.mxu0 0.0
        %988 = vmatpush2.msra.mxu0 0.0
        %989 = vmatprep.subr.mxu0 0.0
        %990 = vmatpush2.msra.mxu0 0.0
        %991 = vmatprep.subr.mxu0 0.0
        %992 = vmatpush2.msra.mxu0 0.0
        %993 = vmatprep.subr.mxu0 0.0
        %994 = vmatpush2.msra.mxu0 0.0
        %995 = vmatprep.subr.mxu0 0.0
        %996 = vmatpush2.msra.mxu0 0.0
        %997 = vmatprep.subr.mxu0 0.0
        %998 = vmatpush2.msra.mxu0 0.0
        %999 = vmatprep.subr.mxu0 0.0
        %1000 = vmatpush2.msra.mxu0 0.0
        %1001 = vmatprep.subr.mxu0 0.0
        %1002 = vmatpush2.msra.mxu0 0.0
        %1003 = vmatprep.subr.mxu0 0.0
        %1004 = vmatpush2.msra.mxu0 0.0
        %1005 = vmatprep.subr.mxu0 0.0
        %1006 = vmatpush2.msra.mxu0 0.0
        %1007 = vmatprep.mubr.f32.mxu0 0.0
        %1008 = vmatmul.mubr.f32.gmra.mxu0 %v843
        %v1009 = vpop.f32.mrf.mxu0
        %v1010 = vadd.f32 %v827, %v1009
        %v1011 = vpop.f32.mrf.mxu0
        %v1012 = vadd.f32 %v827, %v1011
        %1013 = vmatprep.mubr.f32.mxu0 0.0
        %1014 = vmatmul.mubr.f32.gmra.mxu0 %v846
        %v1015 = vpop.f32.mrf.mxu0
        %v1016 = vadd.f32 %v831, %v1015
        %v1017 = vpop.f32.mrf.mxu0
        %v1018 = vadd.f32 %v831, %v1017
        %1019 = vmatprep.mubr.f32.mxu0 0.0
        %1020 = vmatmul.mubr.f32.gmra.mxu0 %v849
        %v1021 = vpop.f32.mrf.mxu0
        %v1022 = vadd.f32 %v835, %v1021
        %v1023 = vpop.f32.mrf.mxu0
        %v1024 = vadd.f32 %v835, %v1023
        %1025 = vmatprep.mubr.f32.mxu0 0.0
        %1026 = vmatmul.mubr.f32.gmra.mxu0 %v852
        %v1027 = vpop.f32.mrf.mxu0
        %v1028 = vadd.f32 %v839, %v1027
        %v1029 = vpop.f32.mrf.mxu0
        %v1030 = vadd.f32 %v839, %v1029
        %1031 = vdwg.mxu0
        %1032 = vmatprep.subr.mxu0 0.0
        %1033 = vmatpush1.msra.mxu0 0.0
        %1034 = vmatprep.subr.mxu0 0.0
        %1035 = vmatpush1.msra.mxu0 0.0
        %1036 = vmatprep.subr.mxu0 0.0
        %1037 = vmatpush1.msra.mxu0 0.0
        %1038 = vmatprep.subr.mxu0 0.0
        %1039 = vmatpush1.msra.mxu0 0.0
        %1040 = vmatprep.subr.mxu0 0.0
        %1041 = vmatpush1.msra.mxu0 0.0
        %1042 = vmatprep.subr.mxu0 0.0
        %1043 = vmatpush1.msra.mxu0 0.0
        %1044 = vmatprep.subr.mxu0 0.0
        %1045 = vmatpush1.msra.mxu0 0.0
        %1046 = vmatprep.subr.mxu0 0.0
        %1047 = vmatpush1.msra.mxu0 0.0
        %1048 = vmatprep.subr.mxu0 0.0
        %1049 = vmatpush1.msra.mxu0 0.0
        %1050 = vmatprep.subr.mxu0 0.0
        %1051 = vmatpush1.msra.mxu0 0.0
        %1052 = vmatprep.subr.mxu0 0.0
        %1053 = vmatpush1.msra.mxu0 0.0
        %1054 = vmatprep.subr.mxu0 0.0
        %1055 = vmatpush1.msra.mxu0 0.0
        %1056 = vmatprep.subr.mxu0 %v810
        %1057 = vmatpush1.msra.mxu0 %v809
        %1058 = vmatprep.subr.mxu0 %v794
        %1059 = vmatpush1.msra.mxu0 %v793
        %1060 = vmatprep.subr.mxu0 %v778
        %1061 = vmatpush1.msra.mxu0 %v777
        %1062 = vmatprep.subr.mxu0 %v762
        %1063 = vmatpush1.msra.mxu0 %v761
        %1064 = vmatprep.subr.mxu0 0.0
        %1065 = vmatpush2.msra.mxu0 0.0
        %1066 = vmatprep.subr.mxu0 0.0
        %1067 = vmatpush2.msra.mxu0 0.0
        %1068 = vmatprep.subr.mxu0 0.0
        %1069 = vmatpush2.msra.mxu0 0.0
        %1070 = vmatprep.subr.mxu0 0.0
        %1071 = vmatpush2.msra.mxu0 0.0
        %1072 = vmatprep.subr.mxu0 0.0
        %1073 = vmatpush2.msra.mxu0 0.0
        %1074 = vmatprep.subr.mxu0 0.0
        %1075 = vmatpush2.msra.mxu0 0.0
        %1076 = vmatprep.subr.mxu0 0.0
        %1077 = vmatpush2.msra.mxu0 0.0
        %1078 = vmatprep.subr.mxu0 0.0
        %1079 = vmatpush2.msra.mxu0 0.0
        %1080 = vmatprep.subr.mxu0 0.0
        %1081 = vmatpush2.msra.mxu0 0.0
        %1082 = vmatprep.subr.mxu0 0.0
        %1083 = vmatpush2.msra.mxu0 0.0
        %1084 = vmatprep.subr.mxu0 0.0
        %1085 = vmatpush2.msra.mxu0 0.0
        %1086 = vmatprep.subr.mxu0 0.0
        %1087 = vmatpush2.msra.mxu0 0.0
        %1088 = vmatprep.subr.mxu0 0.0
        %1089 = vmatpush2.msra.mxu0 0.0
        %1090 = vmatprep.subr.mxu0 0.0
        %1091 = vmatpush2.msra.mxu0 0.0
        %1092 = vmatprep.subr.mxu0 0.0
        %1093 = vmatpush2.msra.mxu0 0.0
        %1094 = vmatprep.subr.mxu0 0.0
        %1095 = vmatpush2.msra.mxu0 0.0
        %1096 = vmatprep.mubr.f32.mxu0 0.0
        %1097 = vmatmul.mubr.f32.gmra.mxu0 %v843
        %v1098 = vpop.f32.mrf.mxu0
        %v1099 = vadd.f32 %v827, %v1098
        %v1100 = vpop.f32.mrf.mxu0
        %v1101 = vadd.f32 %v827, %v1100
        %1102 = vmatprep.mubr.f32.mxu0 0.0
        %1103 = vmatmul.mubr.f32.gmra.mxu0 %v846
        %v1104 = vpop.f32.mrf.mxu0
        %v1105 = vadd.f32 %v831, %v1104
        %v1106 = vpop.f32.mrf.mxu0
        %v1107 = vadd.f32 %v831, %v1106
        %1108 = vmatprep.mubr.f32.mxu0 0.0
        %1109 = vmatmul.mubr.f32.gmra.mxu0 %v849
        %v1110 = vpop.f32.mrf.mxu0
        %v1111 = vadd.f32 %v835, %v1110
        %v1112 = vpop.f32.mrf.mxu0
        %v1113 = vadd.f32 %v835, %v1112
        %1114 = vmatprep.mubr.f32.mxu0 0.0
        %1115 = vmatmul.mubr.f32.gmra.mxu0 %v852
        %v1116 = vpop.f32.mrf.mxu0
        %v1117 = vadd.f32 %v839, %v1116
        %v1118 = vpop.f32.mrf.mxu0
        %v1119 = vadd.f32 %v839, %v1118
        %1120 = vdwg.mxu0
        %1121 = vmatprep.subr.mxu0 0.0
        %1122 = vmatpush1.msra.mxu0 0.0
        %1123 = vmatprep.subr.mxu0 0.0
        %1124 = vmatpush1.msra.mxu0 0.0
        %1125 = vmatprep.subr.mxu0 0.0
        %1126 = vmatpush1.msra.mxu0 0.0
        %1127 = vmatprep.subr.mxu0 0.0
        %1128 = vmatpush1.msra.mxu0 0.0
        %1129 = vmatprep.subr.mxu0 0.0
        %1130 = vmatpush1.msra.mxu0 0.0
        %1131 = vmatprep.subr.mxu0 0.0
        %1132 = vmatpush1.msra.mxu0 0.0
        %1133 = vmatprep.subr.mxu0 0.0
        %1134 = vmatpush1.msra.mxu0 0.0
        %1135 = vmatprep.subr.mxu0 0.0
        %1136 = vmatpush1.msra.mxu0 0.0
        %1137 = vmatprep.subr.mxu0 0.0
        %1138 = vmatpush1.msra.mxu0 0.0
        %1139 = vmatprep.subr.mxu0 0.0
        %1140 = vmatpush1.msra.mxu0 0.0
        %1141 = vmatprep.subr.mxu0 0.0
        %1142 = vmatpush1.msra.mxu0 0.0
        %1143 = vmatprep.subr.mxu0 0.0
        %1144 = vmatpush1.msra.mxu0 0.0
        %1145 = vmatprep.subr.mxu0 %v812
        %1146 = vmatpush1.msra.mxu0 %v811
        %1147 = vmatprep.subr.mxu0 %v796
        %1148 = vmatpush1.msra.mxu0 %v795
        %1149 = vmatprep.subr.mxu0 %v780
        %1150 = vmatpush1.msra.mxu0 %v779
        %1151 = vmatprep.subr.mxu0 %v764
        %1152 = vmatpush1.msra.mxu0 %v763
        %1153 = vmatprep.subr.mxu0 0.0
        %1154 = vmatpush2.msra.mxu0 0.0
        %1155 = vmatprep.subr.mxu0 0.0
        %1156 = vmatpush2.msra.mxu0 0.0
        %1157 = vmatprep.subr.mxu0 0.0
        %1158 = vmatpush2.msra.mxu0 0.0
        %1159 = vmatprep.subr.mxu0 0.0
        %1160 = vmatpush2.msra.mxu0 0.0
        %1161 = vmatprep.subr.mxu0 0.0
        %1162 = vmatpush2.msra.mxu0 0.0
        %1163 = vmatprep.subr.mxu0 0.0
        %1164 = vmatpush2.msra.mxu0 0.0
        %1165 = vmatprep.subr.mxu0 0.0
        %1166 = vmatpush2.msra.mxu0 0.0
        %1167 = vmatprep.subr.mxu0 0.0
        %1168 = vmatpush2.msra.mxu0 0.0
        %1169 = vmatprep.subr.mxu0 0.0
        %1170 = vmatpush2.msra.mxu0 0.0
        %1171 = vmatprep.subr.mxu0 0.0
        %1172 = vmatpush2.msra.mxu0 0.0
        %1173 = vmatprep.subr.mxu0 0.0
        %1174 = vmatpush2.msra.mxu0 0.0
        %1175 = vmatprep.subr.mxu0 0.0
        %1176 = vmatpush2.msra.mxu0 0.0
        %1177 = vmatprep.subr.mxu0 0.0
        %1178 = vmatpush2.msra.mxu0 0.0
        %1179 = vmatprep.subr.mxu0 0.0
        %1180 = vmatpush2.msra.mxu0 0.0
        %1181 = vmatprep.subr.mxu0 0.0
        %1182 = vmatpush2.msra.mxu0 0.0
        %1183 = vmatprep.subr.mxu0 0.0
        %1184 = vmatpush2.msra.mxu0 0.0
        %1185 = vmatprep.mubr.f32.mxu0 0.0
        %1186 = vmatmul.mubr.f32.gmra.mxu0 %v843
        %v1187 = vpop.f32.mrf.mxu0
        %v1188 = vadd.f32 %v827, %v1187
        %v1189 = vpop.f32.mrf.mxu0
        %v1190 = vadd.f32 %v827, %v1189
        %1191 = vmatprep.mubr.f32.mxu0 0.0
        %1192 = vmatmul.mubr.f32.gmra.mxu0 %v846
        %v1193 = vpop.f32.mrf.mxu0
        %v1194 = vadd.f32 %v831, %v1193
        %v1195 = vpop.f32.mrf.mxu0
        %v1196 = vadd.f32 %v831, %v1195
        %1197 = vmatprep.mubr.f32.mxu0 0.0
        %1198 = vmatmul.mubr.f32.gmra.mxu0 %v849
        %v1199 = vpop.f32.mrf.mxu0
        %v1200 = vadd.f32 %v835, %v1199
        %v1201 = vpop.f32.mrf.mxu0
        %v1202 = vadd.f32 %v835, %v1201
        %1203 = vmatprep.mubr.f32.mxu0 0.0
        %1204 = vmatmul.mubr.f32.gmra.mxu0 %v852
        %v1205 = vpop.f32.mrf.mxu0
        %v1206 = vadd.f32 %v839, %v1205
        %v1207 = vpop.f32.mrf.mxu0
        %v1208 = vadd.f32 %v839, %v1207
        %1209 = vdwg.mxu0
        %1210 = vmatprep.subr.mxu0 0.0
        %1211 = vmatpush1.msra.mxu0 0.0
        %1212 = vmatprep.subr.mxu0 0.0
        %1213 = vmatpush1.msra.mxu0 0.0
        %1214 = vmatprep.subr.mxu0 0.0
        %1215 = vmatpush1.msra.mxu0 0.0
        %1216 = vmatprep.subr.mxu0 0.0
        %1217 = vmatpush1.msra.mxu0 0.0
        %1218 = vmatprep.subr.mxu0 0.0
        %1219 = vmatpush1.msra.mxu0 0.0
        %1220 = vmatprep.subr.mxu0 0.0
        %1221 = vmatpush1.msra.mxu0 0.0
        %1222 = vmatprep.subr.mxu0 0.0
        %1223 = vmatpush1.msra.mxu0 0.0
        %1224 = vmatprep.subr.mxu0 0.0
        %1225 = vmatpush1.msra.mxu0 0.0
        %1226 = vmatprep.subr.mxu0 0.0
        %1227 = vmatpush1.msra.mxu0 0.0
        %1228 = vmatprep.subr.mxu0 0.0
        %1229 = vmatpush1.msra.mxu0 0.0
        %1230 = vmatprep.subr.mxu0 0.0
        %1231 = vmatpush1.msra.mxu0 0.0
        %1232 = vmatprep.subr.mxu0 0.0
        %1233 = vmatpush1.msra.mxu0 0.0
        %1234 = vmatprep.subr.mxu0 %v814
        %1235 = vmatpush1.msra.mxu0 %v813
        %1236 = vmatprep.subr.mxu0 %v798
        %1237 = vmatpush1.msra.mxu0 %v797
        %1238 = vmatprep.subr.mxu0 %v782
        %1239 = vmatpush1.msra.mxu0 %v781
        %1240 = vmatprep.subr.mxu0 %v766
        %1241 = vmatpush1.msra.mxu0 %v765
        %1242 = vmatprep.subr.mxu0 0.0
        %1243 = vmatpush2.msra.mxu0 0.0
        %1244 = vmatprep.subr.mxu0 0.0
        %1245 = vmatpush2.msra.mxu0 0.0
        %1246 = vmatprep.subr.mxu0 0.0
        %1247 = vmatpush2.msra.mxu0 0.0
        %1248 = vmatprep.subr.mxu0 0.0
        %1249 = vmatpush2.msra.mxu0 0.0
        %1250 = vmatprep.subr.mxu0 0.0
        %1251 = vmatpush2.msra.mxu0 0.0
        %1252 = vmatprep.subr.mxu0 0.0
        %1253 = vmatpush2.msra.mxu0 0.0
        %1254 = vmatprep.subr.mxu0 0.0
        %1255 = vmatpush2.msra.mxu0 0.0
        %1256 = vmatprep.subr.mxu0 0.0
        %1257 = vmatpush2.msra.mxu0 0.0
        %1258 = vmatprep.subr.mxu0 0.0
        %1259 = vmatpush2.msra.mxu0 0.0
        %1260 = vmatprep.subr.mxu0 0.0
        %1261 = vmatpush2.msra.mxu0 0.0
        %1262 = vmatprep.subr.mxu0 0.0
        %1263 = vmatpush2.msra.mxu0 0.0
        %1264 = vmatprep.subr.mxu0 0.0
        %1265 = vmatpush2.msra.mxu0 0.0
        %1266 = vmatprep.subr.mxu0 0.0
        %1267 = vmatpush2.msra.mxu0 0.0
        %1268 = vmatprep.subr.mxu0 0.0
        %1269 = vmatpush2.msra.mxu0 0.0
        %1270 = vmatprep.subr.mxu0 0.0
        %1271 = vmatpush2.msra.mxu0 0.0
        %1272 = vmatprep.subr.mxu0 0.0
        %1273 = vmatpush2.msra.mxu0 0.0
        %1274 = vmatprep.mubr.f32.mxu0 0.0
        %1275 = vmatmul.mubr.f32.gmra.mxu0 %v843
        %v1276 = vpop.f32.mrf.mxu0
        %v1277 = vadd.f32 %v827, %v1276
        %v1278 = vpop.f32.mrf.mxu0
        %v1279 = vadd.f32 %v827, %v1278
        %1280 = vmatprep.mubr.f32.mxu0 0.0
        %1281 = vmatmul.mubr.f32.gmra.mxu0 %v846
        %v1282 = vpop.f32.mrf.mxu0
        %v1283 = vadd.f32 %v831, %v1282
        %v1284 = vpop.f32.mrf.mxu0
        %v1285 = vadd.f32 %v831, %v1284
        %1286 = vmatprep.mubr.f32.mxu0 0.0
        %1287 = vmatmul.mubr.f32.gmra.mxu0 %v849
        %v1288 = vpop.f32.mrf.mxu0
        %v1289 = vadd.f32 %v835, %v1288
        %v1290 = vpop.f32.mrf.mxu0
        %v1291 = vadd.f32 %v835, %v1290
        %1292 = vmatprep.mubr.f32.mxu0 0.0
        %1293 = vmatmul.mubr.f32.gmra.mxu0 %v852
        %v1294 = vpop.f32.mrf.mxu0
        %v1295 = vadd.f32 %v839, %v1294
        %v1296 = vpop.f32.mrf.mxu0
        %v1297 = vadd.f32 %v839, %v1296
        %1298 = vdwg.mxu0
        %1299 = vmatprep.subr.mxu0 0.0
        %1300 = vmatpush1.msra.mxu0 0.0
        %1301 = vmatprep.subr.mxu0 0.0
        %1302 = vmatpush1.msra.mxu0 0.0
        %1303 = vmatprep.subr.mxu0 0.0
        %1304 = vmatpush1.msra.mxu0 0.0
        %1305 = vmatprep.subr.mxu0 0.0
        %1306 = vmatpush1.msra.mxu0 0.0
        %1307 = vmatprep.subr.mxu0 0.0
        %1308 = vmatpush1.msra.mxu0 0.0
        %1309 = vmatprep.subr.mxu0 0.0
        %1310 = vmatpush1.msra.mxu0 0.0
        %1311 = vmatprep.subr.mxu0 0.0
        %1312 = vmatpush1.msra.mxu0 0.0
        %1313 = vmatprep.subr.mxu0 0.0
        %1314 = vmatpush1.msra.mxu0 0.0
        %1315 = vmatprep.subr.mxu0 0.0
        %1316 = vmatpush1.msra.mxu0 0.0
        %1317 = vmatprep.subr.mxu0 0.0
        %1318 = vmatpush1.msra.mxu0 0.0
        %1319 = vmatprep.subr.mxu0 0.0
        %1320 = vmatpush1.msra.mxu0 0.0
        %1321 = vmatprep.subr.mxu0 0.0
        %1322 = vmatpush1.msra.mxu0 0.0
        %1323 = vmatprep.subr.mxu0 %v816
        %1324 = vmatpush1.msra.mxu0 %v815
        %1325 = vmatprep.subr.mxu0 %v800
        %1326 = vmatpush1.msra.mxu0 %v799
        %1327 = vmatprep.subr.mxu0 %v784
        %1328 = vmatpush1.msra.mxu0 %v783
        %1329 = vmatprep.subr.mxu0 %v768
        %1330 = vmatpush1.msra.mxu0 %v767
        %1331 = vmatprep.subr.mxu0 0.0
        %1332 = vmatpush2.msra.mxu0 0.0
        %1333 = vmatprep.subr.mxu0 0.0
        %1334 = vmatpush2.msra.mxu0 0.0
        %1335 = vmatprep.subr.mxu0 0.0
        %1336 = vmatpush2.msra.mxu0 0.0
        %1337 = vmatprep.subr.mxu0 0.0
        %1338 = vmatpush2.msra.mxu0 0.0
        %1339 = vmatprep.subr.mxu0 0.0
        %1340 = vmatpush2.msra.mxu0 0.0
        %1341 = vmatprep.subr.mxu0 0.0
        %1342 = vmatpush2.msra.mxu0 0.0
        %1343 = vmatprep.subr.mxu0 0.0
        %1344 = vmatpush2.msra.mxu0 0.0
        %1345 = vmatprep.subr.mxu0 0.0
        %1346 = vmatpush2.msra.mxu0 0.0
        %1347 = vmatprep.subr.mxu0 0.0
        %1348 = vmatpush2.msra.mxu0 0.0
        %1349 = vmatprep.subr.mxu0 0.0
        %1350 = vmatpush2.msra.mxu0 0.0
        %1351 = vmatprep.subr.mxu0 0.0
        %1352 = vmatpush2.msra.mxu0 0.0
        %1353 = vmatprep.subr.mxu0 0.0
        %1354 = vmatpush2.msra.mxu0 0.0
        %1355 = vmatprep.subr.mxu0 0.0
        %1356 = vmatpush2.msra.mxu0 0.0
        %1357 = vmatprep.subr.mxu0 0.0
        %1358 = vmatpush2.msra.mxu0 0.0
        %1359 = vmatprep.subr.mxu0 0.0
        %1360 = vmatpush2.msra.mxu0 0.0
        %1361 = vmatprep.subr.mxu0 0.0
        %1362 = vmatpush2.msra.mxu0 0.0
        %1363 = vmatprep.mubr.f32.mxu0 0.0
        %1364 = vmatmul.mubr.f32.gmra.mxu0 %v843
        %v1365 = vpop.f32.mrf.mxu0
        %v1366 = vadd.f32 %v827, %v1365
        %v1367 = vpop.f32.mrf.mxu0
        %v1368 = vadd.f32 %v827, %v1367
        %1369 = vmatprep.mubr.f32.mxu0 0.0
        %1370 = vmatmul.mubr.f32.gmra.mxu0 %v846
        %v1371 = vpop.f32.mrf.mxu0
        %v1372 = vadd.f32 %v831, %v1371
        %v1373 = vpop.f32.mrf.mxu0
        %v1374 = vadd.f32 %v831, %v1373
        %1375 = vmatprep.mubr.f32.mxu0 0.0
        %1376 = vmatmul.mubr.f32.gmra.mxu0 %v849
        %v1377 = vpop.f32.mrf.mxu0
        %v1378 = vadd.f32 %v835, %v1377
        %v1379 = vpop.f32.mrf.mxu0
        %v1380 = vadd.f32 %v835, %v1379
        %1381 = vmatprep.mubr.f32.mxu0 0.0
        %1382 = vmatmul.mubr.f32.gmra.mxu0 %v852
        %v1383 = vpop.f32.mrf.mxu0
        %v1384 = vadd.f32 %v839, %v1383
        %v1385 = vpop.f32.mrf.mxu0
        %v1386 = vadd.f32 %v839, %v1385
        %1387 = vdwg.mxu0
        %1388 = vmatprep.subr.mxu0 0.0
        %1389 = vmatpush1.msra.mxu0 0.0
        %1390 = vmatprep.subr.mxu0 0.0
        %1391 = vmatpush1.msra.mxu0 0.0
        %1392 = vmatprep.subr.mxu0 0.0
        %1393 = vmatpush1.msra.mxu0 0.0
        %1394 = vmatprep.subr.mxu0 0.0
        %1395 = vmatpush1.msra.mxu0 0.0
        %1396 = vmatprep.subr.mxu0 0.0
        %1397 = vmatpush1.msra.mxu0 0.0
        %1398 = vmatprep.subr.mxu0 0.0
        %1399 = vmatpush1.msra.mxu0 0.0
        %1400 = vmatprep.subr.mxu0 0.0
        %1401 = vmatpush1.msra.mxu0 0.0
        %1402 = vmatprep.subr.mxu0 0.0
        %1403 = vmatpush1.msra.mxu0 0.0
        %1404 = vmatprep.subr.mxu0 0.0
        %1405 = vmatpush1.msra.mxu0 0.0
        %1406 = vmatprep.subr.mxu0 0.0
        %1407 = vmatpush1.msra.mxu0 0.0
        %1408 = vmatprep.subr.mxu0 0.0
        %1409 = vmatpush1.msra.mxu0 0.0
        %1410 = vmatprep.subr.mxu0 0.0
        %1411 = vmatpush1.msra.mxu0 0.0
        %1412 = vmatprep.subr.mxu0 %v818
        %1413 = vmatpush1.msra.mxu0 %v817
        %1414 = vmatprep.subr.mxu0 %v802
        %1415 = vmatpush1.msra.mxu0 %v801
        %1416 = vmatprep.subr.mxu0 %v786
        %1417 = vmatpush1.msra.mxu0 %v785
        %1418 = vmatprep.subr.mxu0 %v770
        %1419 = vmatpush1.msra.mxu0 %v769
        %1420 = vmatprep.subr.mxu0 0.0
        %1421 = vmatpush2.msra.mxu0 0.0
        %1422 = vmatprep.subr.mxu0 0.0
        %1423 = vmatpush2.msra.mxu0 0.0
        %1424 = vmatprep.subr.mxu0 0.0
        %1425 = vmatpush2.msra.mxu0 0.0
        %1426 = vmatprep.subr.mxu0 0.0
        %1427 = vmatpush2.msra.mxu0 0.0
        %1428 = vmatprep.subr.mxu0 0.0
        %1429 = vmatpush2.msra.mxu0 0.0
        %1430 = vmatprep.subr.mxu0 0.0
        %1431 = vmatpush2.msra.mxu0 0.0
        %1432 = vmatprep.subr.mxu0 0.0
        %1433 = vmatpush2.msra.mxu0 0.0
        %1434 = vmatprep.subr.mxu0 0.0
        %1435 = vmatpush2.msra.mxu0 0.0
        %1436 = vmatprep.subr.mxu0 0.0
        %1437 = vmatpush2.msra.mxu0 0.0
        %1438 = vmatprep.subr.mxu0 0.0
        %1439 = vmatpush2.msra.mxu0 0.0
        %1440 = vmatprep.subr.mxu0 0.0
        %1441 = vmatpush2.msra.mxu0 0.0
        %1442 = vmatprep.subr.mxu0 0.0
        %1443 = vmatpush2.msra.mxu0 0.0
        %1444 = vmatprep.subr.mxu0 0.0
        %1445 = vmatpush2.msra.mxu0 0.0
        %1446 = vmatprep.subr.mxu0 0.0
        %1447 = vmatpush2.msra.mxu0 0.0
        %1448 = vmatprep.subr.mxu0 0.0
        %1449 = vmatpush2.msra.mxu0 0.0
        %1450 = vmatprep.subr.mxu0 0.0
        %1451 = vmatpush2.msra.mxu0 0.0
        %1452 = vmatprep.mubr.f32.mxu0 0.0
        %1453 = vmatmul.mubr.f32.gmra.mxu0 %v843
        %v1454 = vpop.f32.mrf.mxu0
        %v1455 = vadd.f32 %v827, %v1454
        %v1456 = vpop.f32.mrf.mxu0
        %v1457 = vadd.f32 %v827, %v1456
        %1458 = vmatprep.mubr.f32.mxu0 0.0
        %1459 = vmatmul.mubr.f32.gmra.mxu0 %v846
        %v1460 = vpop.f32.mrf.mxu0
        %v1461 = vadd.f32 %v831, %v1460
        %v1462 = vpop.f32.mrf.mxu0
        %v1463 = vadd.f32 %v831, %v1462
        %1464 = vmatprep.mubr.f32.mxu0 0.0
        %1465 = vmatmul.mubr.f32.gmra.mxu0 %v849
        %v1466 = vpop.f32.mrf.mxu0
        %v1467 = vadd.f32 %v835, %v1466
        %v1468 = vpop.f32.mrf.mxu0
        %v1469 = vadd.f32 %v835, %v1468
        %1470 = vmatprep.mubr.f32.mxu0 0.0
        %1471 = vmatmul.mubr.f32.gmra.mxu0 %v852
        %v1472 = vpop.f32.mrf.mxu0
        %v1473 = vadd.f32 %v839, %v1472
        %v1474 = vpop.f32.mrf.mxu0
        %v1475 = vadd.f32 %v839, %v1474
        %1476 = vdwg.mxu0
        %1477 = vmatprep.subr.mxu0 0.0
        %1478 = vmatpush1.msra.mxu0 0.0
        %1479 = vmatprep.subr.mxu0 0.0
        %1480 = vmatpush1.msra.mxu0 0.0
        %1481 = vmatprep.subr.mxu0 0.0
        %1482 = vmatpush1.msra.mxu0 0.0
        %1483 = vmatprep.subr.mxu0 0.0
        %1484 = vmatpush1.msra.mxu0 0.0
        %1485 = vmatprep.subr.mxu0 0.0
        %1486 = vmatpush1.msra.mxu0 0.0
        %1487 = vmatprep.subr.mxu0 0.0
        %1488 = vmatpush1.msra.mxu0 0.0
        %1489 = vmatprep.subr.mxu0 0.0
        %1490 = vmatpush1.msra.mxu0 0.0
        %1491 = vmatprep.subr.mxu0 0.0
        %1492 = vmatpush1.msra.mxu0 0.0
        %1493 = vmatprep.subr.mxu0 0.0
        %1494 = vmatpush1.msra.mxu0 0.0
        %1495 = vmatprep.subr.mxu0 0.0
        %1496 = vmatpush1.msra.mxu0 0.0
        %1497 = vmatprep.subr.mxu0 0.0
        %1498 = vmatpush1.msra.mxu0 0.0
        %1499 = vmatprep.subr.mxu0 0.0
        %1500 = vmatpush1.msra.mxu0 0.0
        %1501 = vmatprep.subr.mxu0 %v820
        %1502 = vmatpush1.msra.mxu0 %v819
        %1503 = vmatprep.subr.mxu0 %v804
        %1504 = vmatpush1.msra.mxu0 %v803
        %1505 = vmatprep.subr.mxu0 %v788
        %1506 = vmatpush1.msra.mxu0 %v787
        %1507 = vmatprep.subr.mxu0 %v772
        %1508 = vmatpush1.msra.mxu0 %v771
        %1509 = vmatprep.subr.mxu0 0.0
        %1510 = vmatpush2.msra.mxu0 0.0
        %1511 = vmatprep.subr.mxu0 0.0
        %1512 = vmatpush2.msra.mxu0 0.0
        %1513 = vmatprep.subr.mxu0 0.0
        %1514 = vmatpush2.msra.mxu0 0.0
        %1515 = vmatprep.subr.mxu0 0.0
        %1516 = vmatpush2.msra.mxu0 0.0
        %1517 = vmatprep.subr.mxu0 0.0
        %1518 = vmatpush2.msra.mxu0 0.0
        %1519 = vmatprep.subr.mxu0 0.0
        %1520 = vmatpush2.msra.mxu0 0.0
        %1521 = vmatprep.subr.mxu0 0.0
        %1522 = vmatpush2.msra.mxu0 0.0
        %1523 = vmatprep.subr.mxu0 0.0
        %1524 = vmatpush2.msra.mxu0 0.0
        %1525 = vmatprep.subr.mxu0 0.0
        %1526 = vmatpush2.msra.mxu0 0.0
        %1527 = vmatprep.subr.mxu0 0.0
        %1528 = vmatpush2.msra.mxu0 0.0
        %1529 = vmatprep.subr.mxu0 0.0
        %1530 = vmatpush2.msra.mxu0 0.0
        %1531 = vmatprep.subr.mxu0 0.0
        %1532 = vmatpush2.msra.mxu0 0.0
        %1533 = vmatprep.subr.mxu0 0.0
        %1534 = vmatpush2.msra.mxu0 0.0
        %1535 = vmatprep.subr.mxu0 0.0
        %1536 = vmatpush2.msra.mxu0 0.0
        %1537 = vmatprep.subr.mxu0 0.0
        %1538 = vmatpush2.msra.mxu0 0.0
        %1539 = vmatprep.subr.mxu0 0.0
        %1540 = vmatpush2.msra.mxu0 0.0
        %1541 = vmatprep.mubr.f32.mxu0 0.0
        %1542 = vmatmul.mubr.f32.gmra.mxu0 %v843
        %v1543 = vpop.f32.mrf.mxu0
        %v1544 = vadd.f32 %v827, %v1543
        %v1545 = vpop.f32.mrf.mxu0
        %v1546 = vadd.f32 %v827, %v1545
        %1547 = vmatprep.mubr.f32.mxu0 0.0
        %1548 = vmatmul.mubr.f32.gmra.mxu0 %v846
        %v1549 = vpop.f32.mrf.mxu0
        %v1550 = vadd.f32 %v831, %v1549
        %v1551 = vpop.f32.mrf.mxu0
        %v1552 = vadd.f32 %v831, %v1551
        %1553 = vmatprep.mubr.f32.mxu0 0.0
        %1554 = vmatmul.mubr.f32.gmra.mxu0 %v849
        %v1555 = vpop.f32.mrf.mxu0
        %v1556 = vadd.f32 %v835, %v1555
        %v1557 = vpop.f32.mrf.mxu0
        %v1558 = vadd.f32 %v835, %v1557
        %1559 = vmatprep.mubr.f32.mxu0 0.0
        %1560 = vmatmul.mubr.f32.gmra.mxu0 %v852
        %v1561 = vpop.f32.mrf.mxu0
        %v1562 = vadd.f32 %v839, %v1561
        %v1563 = vpop.f32.mrf.mxu0
        %v1564 = vadd.f32 %v839, %v1563
        %1565 = vdwg.mxu0
        %v1566 = vmax.f32 %v921, 0.0
        %v1567 = vmax.f32 %v923, 0.0
        %v1568 = vmax.f32 %v1010, 0.0
        %v1569 = vmax.f32 %v1012, 0.0
        %v1570 = vmax.f32 %v1099, 0.0
        %v1571 = vmax.f32 %v1101, 0.0
        %v1572 = vmax.f32 %v1188, 0.0
        %v1573 = vmax.f32 %v1190, 0.0
        %v1574 = vmax.f32 %v1277, 0.0
        %v1575 = vmax.f32 %v1279, 0.0
        %v1576 = vmax.f32 %v1366, 0.0
        %v1577 = vmax.f32 %v1368, 0.0
        %v1578 = vmax.f32 %v1455, 0.0
        %v1579 = vmax.f32 %v1457, 0.0
        %v1580 = vmax.f32 %v1544, 0.0
        %v1581 = vmax.f32 %v1546, 0.0
        %v1582 = vmax.f32 %v927, 0.0
        %v1583 = vmax.f32 %v929, 0.0
        %v1584 = vmax.f32 %v1016, 0.0
        %v1585 = vmax.f32 %v1018, 0.0
        %v1586 = vmax.f32 %v1105, 0.0
        %v1587 = vmax.f32 %v1107, 0.0
        %v1588 = vmax.f32 %v1194, 0.0
        %v1589 = vmax.f32 %v1196, 0.0
        %v1590 = vmax.f32 %v1283, 0.0
        %v1591 = vmax.f32 %v1285, 0.0
        %v1592 = vmax.f32 %v1372, 0.0
        %v1593 = vmax.f32 %v1374, 0.0
        %v1594 = vmax.f32 %v1461, 0.0
        %v1595 = vmax.f32 %v1463, 0.0
        %v1596 = vmax.f32 %v1550, 0.0
        %v1597 = vmax.f32 %v1552, 0.0
        %v1598 = vmax.f32 %v933, 0.0
        %v1599 = vmax.f32 %v935, 0.0
        %v1600 = vmax.f32 %v1022, 0.0
        %v1601 = vmax.f32 %v1024, 0.0
        %v1602 = vmax.f32 %v1111, 0.0
        %v1603 = vmax.f32 %v1113, 0.0
        %v1604 = vmax.f32 %v1200, 0.0
        %v1605 = vmax.f32 %v1202, 0.0
        %v1606 = vmax.f32 %v1289, 0.0
        %v1607 = vmax.f32 %v1291, 0.0
        %v1608 = vmax.f32 %v1378, 0.0
        %v1609 = vmax.f32 %v1380, 0.0
        %v1610 = vmax.f32 %v1467, 0.0
        %v1611 = vmax.f32 %v1469, 0.0
        %v1612 = vmax.f32 %v1556, 0.0
        %v1613 = vmax.f32 %v1558, 0.0
        %v1614 = vmax.f32 %v939, 0.0
        %v1615 = vmax.f32 %v941, 0.0
        %v1616 = vmax.f32 %v1028, 0.0
        %v1617 = vmax.f32 %v1030, 0.0
        %v1618 = vmax.f32 %v1117, 0.0
        %v1619 = vmax.f32 %v1119, 0.0
        %v1620 = vmax.f32 %v1206, 0.0
        %v1621 = vmax.f32 %v1208, 0.0
        %v1622 = vmax.f32 %v1295, 0.0
        %v1623 = vmax.f32 %v1297, 0.0
        %v1624 = vmax.f32 %v1384, 0.0
        %v1625 = vmax.f32 %v1386, 0.0
        %v1626 = vmax.f32 %v1473, 0.0
        %v1627 = vmax.f32 %v1475, 0.0
        %v1628 = vmax.f32 %v1562, 0.0
        %v1629 = vmax.f32 %v1564, 0.0
        %v1630 = vld [vmem:[%s1 + $0x40] sm:$0xff]
        %v1631 = vld [vmem:[%s1 + $0x48] sm:$0xff]
        %v1632 = vld [vmem:[%s1 + $0x50] sm:$0xff]
        %v1633 = vld [vmem:[%s1 + $0x58] sm:$0xff]
        %1634 = vset.pattern.permute.xlu0 2
        %1635 = vperm.xlu0 %1634, %v145
        %v1636 = vpop.permute.xlu0 %1635
        %1638 = vset.pattern.permute.xlu0 2
        %1639 = vperm.xlu0 %1638, %v146
        %v1640 = vpop.permute.xlu0 %1639
        %1642 = vset.pattern.permute.xlu0 2
        %1643 = vperm.xlu0 %1642, %v147
        %v1644 = vpop.permute.xlu0 %1643
        %1646 = vset.pattern.permute.xlu0 2
        %1647 = vperm.xlu0 %1646, %v148
        %v1648 = vpop.permute.xlu0 %1647
        %v1651 = vsel %vm841, %v1630, 0
        %v1654 = vsel %vm841, %v1631, 0
        %v1657 = vsel %vm841, %v1632, 0
        %v1660 = vsel %vm841, %v1633, 0
        %1662 = vmatprep.subr.mxu0 0.0
        %1663 = vmatpush1.msra.mxu0 0.0
        %1664 = vmatprep.subr.mxu0 0.0
        %1665 = vmatpush1.msra.mxu0 0.0
        %1666 = vmatprep.subr.mxu0 0.0
        %1667 = vmatpush1.msra.mxu0 0.0
        %1668 = vmatprep.subr.mxu0 0.0
        %1669 = vmatpush1.msra.mxu0 0.0
        %1670 = vmatprep.subr.mxu0 0.0
        %1671 = vmatpush1.msra.mxu0 0.0
        %1672 = vmatprep.subr.mxu0 0.0
        %1673 = vmatpush1.msra.mxu0 0.0
        %1674 = vmatprep.subr.mxu0 0.0
        %1675 = vmatpush1.msra.mxu0 0.0
        %1676 = vmatprep.subr.mxu0 0.0
        %1677 = vmatpush1.msra.mxu0 0.0
        %1678 = vmatprep.subr.mxu0 0.0
        %1679 = vmatpush1.msra.mxu0 0.0
        %1680 = vmatprep.subr.mxu0 0.0
        %1681 = vmatpush1.msra.mxu0 0.0
        %1682 = vmatprep.subr.mxu0 0.0
        %1683 = vmatpush1.msra.mxu0 0.0
        %1684 = vmatprep.subr.mxu0 0.0
        %1685 = vmatpush1.msra.mxu0 0.0
        %1686 = vmatprep.subr.mxu0 %v1615
        %1687 = vmatpush1.msra.mxu0 %v1614
        %1688 = vmatprep.subr.mxu0 %v1599
        %1689 = vmatpush1.msra.mxu0 %v1598
        %1690 = vmatprep.subr.mxu0 %v1583
        %1691 = vmatpush1.msra.mxu0 %v1582
        %1692 = vmatprep.subr.mxu0 %v1567
        %1693 = vmatpush1.msra.mxu0 %v1566
        %1694 = vmatprep.subr.mxu0 0.0
        %1695 = vmatpush2.msra.mxu0 0.0
        %1696 = vmatprep.subr.mxu0 0.0
        %1697 = vmatpush2.msra.mxu0 0.0
        %1698 = vmatprep.subr.mxu0 0.0
        %1699 = vmatpush2.msra.mxu0 0.0
        %1700 = vmatprep.subr.mxu0 0.0
        %1701 = vmatpush2.msra.mxu0 0.0
        %1702 = vmatprep.subr.mxu0 0.0
        %1703 = vmatpush2.msra.mxu0 0.0
        %1704 = vmatprep.subr.mxu0 0.0
        %1705 = vmatpush2.msra.mxu0 0.0
        %1706 = vmatprep.subr.mxu0 0.0
        %1707 = vmatpush2.msra.mxu0 0.0
        %1708 = vmatprep.subr.mxu0 0.0
        %1709 = vmatpush2.msra.mxu0 0.0
        %1710 = vmatprep.subr.mxu0 0.0
        %1711 = vmatpush2.msra.mxu0 0.0
        %1712 = vmatprep.subr.mxu0 0.0
        %1713 = vmatpush2.msra.mxu0 0.0
        %1714 = vmatprep.subr.mxu0 0.0
        %1715 = vmatpush2.msra.mxu0 0.0
        %1716 = vmatprep.subr.mxu0 0.0
        %1717 = vmatpush2.msra.mxu0 0.0
        %1718 = vmatprep.subr.mxu0 0.0
        %1719 = vmatpush2.msra.mxu0 0.0
        %1720 = vmatprep.subr.mxu0 0.0
        %1721 = vmatpush2.msra.mxu0 0.0
        %1722 = vmatprep.subr.mxu0 0.0
        %1723 = vmatpush2.msra.mxu0 0.0
        %1724 = vmatprep.subr.mxu0 0.0
        %1725 = vmatpush2.msra.mxu0 0.0
        %1726 = vmatprep.mubr.f32.mxu0 0.0
        %1727 = vmatmul.mubr.f32.gmra.mxu0 %v1651
        %v1728 = vpop.f32.mrf.mxu0
        %v1729 = vadd.f32 %v1636, %v1728
        %v1730 = vpop.f32.mrf.mxu0
        %v1731 = vadd.f32 %v1636, %v1730
        %1732 = vmatprep.mubr.f32.mxu0 0.0
        %1733 = vmatmul.mubr.f32.gmra.mxu0 %v1654
        %v1734 = vpop.f32.mrf.mxu0
        %v1735 = vadd.f32 %v1640, %v1734
        %v1736 = vpop.f32.mrf.mxu0
        %v1737 = vadd.f32 %v1640, %v1736
        %1738 = vmatprep.mubr.f32.mxu0 0.0
        %1739 = vmatmul.mubr.f32.gmra.mxu0 %v1657
        %v1740 = vpop.f32.mrf.mxu0
        %v1741 = vadd.f32 %v1644, %v1740
        %v1742 = vpop.f32.mrf.mxu0
        %v1743 = vadd.f32 %v1644, %v1742
        %1744 = vmatprep.mubr.f32.mxu0 0.0
        %1745 = vmatmul.mubr.f32.gmra.mxu0 %v1660
        %v1746 = vpop.f32.mrf.mxu0
        %v1747 = vadd.f32 %v1648, %v1746
        %v1748 = vpop.f32.mrf.mxu0
        %v1749 = vadd.f32 %v1648, %v1748
        %1750 = vdwg.mxu0
        %1751 = vmatprep.subr.mxu0 0.0
        %1752 = vmatpush1.msra.mxu0 0.0
        %1753 = vmatprep.subr.mxu0 0.0
        %1754 = vmatpush1.msra.mxu0 0.0
        %1755 = vmatprep.subr.mxu0 0.0
        %1756 = vmatpush1.msra.mxu0 0.0
        %1757 = vmatprep.subr.mxu0 0.0
        %1758 = vmatpush1.msra.mxu0 0.0
        %1759 = vmatprep.subr.mxu0 0.0
        %1760 = vmatpush1.msra.mxu0 0.0
        %1761 = vmatprep.subr.mxu0 0.0
        %1762 = vmatpush1.msra.mxu0 0.0
        %1763 = vmatprep.subr.mxu0 0.0
        %1764 = vmatpush1.msra.mxu0 0.0
        %1765 = vmatprep.subr.mxu0 0.0
        %1766 = vmatpush1.msra.mxu0 0.0
        %1767 = vmatprep.subr.mxu0 0.0
        %1768 = vmatpush1.msra.mxu0 0.0
        %1769 = vmatprep.subr.mxu0 0.0
        %1770 = vmatpush1.msra.mxu0 0.0
        %1771 = vmatprep.subr.mxu0 0.0
        %1772 = vmatpush1.msra.mxu0 0.0
        %1773 = vmatprep.subr.mxu0 0.0
        %1774 = vmatpush1.msra.mxu0 0.0
        %1775 = vmatprep.subr.mxu0 %v1617
        %1776 = vmatpush1.msra.mxu0 %v1616
        %1777 = vmatprep.subr.mxu0 %v1601
        %1778 = vmatpush1.msra.mxu0 %v1600
        %1779 = vmatprep.subr.mxu0 %v1585
        %1780 = vmatpush1.msra.mxu0 %v1584
        %1781 = vmatprep.subr.mxu0 %v1569
        %1782 = vmatpush1.msra.mxu0 %v1568
        %1783 = vmatprep.subr.mxu0 0.0
        %1784 = vmatpush2.msra.mxu0 0.0
        %1785 = vmatprep.subr.mxu0 0.0
        %1786 = vmatpush2.msra.mxu0 0.0
        %1787 = vmatprep.subr.mxu0 0.0
        %1788 = vmatpush2.msra.mxu0 0.0
        %1789 = vmatprep.subr.mxu0 0.0
        %1790 = vmatpush2.msra.mxu0 0.0
        %1791 = vmatprep.subr.mxu0 0.0
        %1792 = vmatpush2.msra.mxu0 0.0
        %1793 = vmatprep.subr.mxu0 0.0
        %1794 = vmatpush2.msra.mxu0 0.0
        %1795 = vmatprep.subr.mxu0 0.0
        %1796 = vmatpush2.msra.mxu0 0.0
        %1797 = vmatprep.subr.mxu0 0.0
        %1798 = vmatpush2.msra.mxu0 0.0
        %1799 = vmatprep.subr.mxu0 0.0
        %1800 = vmatpush2.msra.mxu0 0.0
        %1801 = vmatprep.subr.mxu0 0.0
        %1802 = vmatpush2.msra.mxu0 0.0
        %1803 = vmatprep.subr.mxu0 0.0
        %1804 = vmatpush2.msra.mxu0 0.0
        %1805 = vmatprep.subr.mxu0 0.0
        %1806 = vmatpush2.msra.mxu0 0.0
        %1807 = vmatprep.subr.mxu0 0.0
        %1808 = vmatpush2.msra.mxu0 0.0
        %1809 = vmatprep.subr.mxu0 0.0
        %1810 = vmatpush2.msra.mxu0 0.0
        %1811 = vmatprep.subr.mxu0 0.0
        %1812 = vmatpush2.msra.mxu0 0.0
        %1813 = vmatprep.subr.mxu0 0.0
        %1814 = vmatpush2.msra.mxu0 0.0
        %1815 = vmatprep.mubr.f32.mxu0 0.0
        %1816 = vmatmul.mubr.f32.gmra.mxu0 %v1651
        %v1817 = vpop.f32.mrf.mxu0
        %v1818 = vadd.f32 %v1636, %v1817
        %v1819 = vpop.f32.mrf.mxu0
        %v1820 = vadd.f32 %v1636, %v1819
        %1821 = vmatprep.mubr.f32.mxu0 0.0
        %1822 = vmatmul.mubr.f32.gmra.mxu0 %v1654
        %v1823 = vpop.f32.mrf.mxu0
        %v1824 = vadd.f32 %v1640, %v1823
        %v1825 = vpop.f32.mrf.mxu0
        %v1826 = vadd.f32 %v1640, %v1825
        %1827 = vmatprep.mubr.f32.mxu0 0.0
        %1828 = vmatmul.mubr.f32.gmra.mxu0 %v1657
        %v1829 = vpop.f32.mrf.mxu0
        %v1830 = vadd.f32 %v1644, %v1829
        %v1831 = vpop.f32.mrf.mxu0
        %v1832 = vadd.f32 %v1644, %v1831
        %1833 = vmatprep.mubr.f32.mxu0 0.0
        %1834 = vmatmul.mubr.f32.gmra.mxu0 %v1660
        %v1835 = vpop.f32.mrf.mxu0
        %v1836 = vadd.f32 %v1648, %v1835
        %v1837 = vpop.f32.mrf.mxu0
        %v1838 = vadd.f32 %v1648, %v1837
        %1839 = vdwg.mxu0
        %1840 = vmatprep.subr.mxu0 0.0
        %1841 = vmatpush1.msra.mxu0 0.0
        %1842 = vmatprep.subr.mxu0 0.0
        %1843 = vmatpush1.msra.mxu0 0.0
        %1844 = vmatprep.subr.mxu0 0.0
        %1845 = vmatpush1.msra.mxu0 0.0
        %1846 = vmatprep.subr.mxu0 0.0
        %1847 = vmatpush1.msra.mxu0 0.0
        %1848 = vmatprep.subr.mxu0 0.0
        %1849 = vmatpush1.msra.mxu0 0.0
        %1850 = vmatprep.subr.mxu0 0.0
        %1851 = vmatpush1.msra.mxu0 0.0
        %1852 = vmatprep.subr.mxu0 0.0
        %1853 = vmatpush1.msra.mxu0 0.0
        %1854 = vmatprep.subr.mxu0 0.0
        %1855 = vmatpush1.msra.mxu0 0.0
        %1856 = vmatprep.subr.mxu0 0.0
        %1857 = vmatpush1.msra.mxu0 0.0
        %1858 = vmatprep.subr.mxu0 0.0
        %1859 = vmatpush1.msra.mxu0 0.0
        %1860 = vmatprep.subr.mxu0 0.0
        %1861 = vmatpush1.msra.mxu0 0.0
        %1862 = vmatprep.subr.mxu0 0.0
        %1863 = vmatpush1.msra.mxu0 0.0
        %1864 = vmatprep.subr.mxu0 %v1619
        %1865 = vmatpush1.msra.mxu0 %v1618
        %1866 = vmatprep.subr.mxu0 %v1603
        %1867 = vmatpush1.msra.mxu0 %v1602
        %1868 = vmatprep.subr.mxu0 %v1587
        %1869 = vmatpush1.msra.mxu0 %v1586
        %1870 = vmatprep.subr.mxu0 %v1571
        %1871 = vmatpush1.msra.mxu0 %v1570
        %1872 = vmatprep.subr.mxu0 0.0
        %1873 = vmatpush2.msra.mxu0 0.0
        %1874 = vmatprep.subr.mxu0 0.0
        %1875 = vmatpush2.msra.mxu0 0.0
        %1876 = vmatprep.subr.mxu0 0.0
        %1877 = vmatpush2.msra.mxu0 0.0
        %1878 = vmatprep.subr.mxu0 0.0
        %1879 = vmatpush2.msra.mxu0 0.0
        %1880 = vmatprep.subr.mxu0 0.0
        %1881 = vmatpush2.msra.mxu0 0.0
        %1882 = vmatprep.subr.mxu0 0.0
        %1883 = vmatpush2.msra.mxu0 0.0
        %1884 = vmatprep.subr.mxu0 0.0
        %1885 = vmatpush2.msra.mxu0 0.0
        %1886 = vmatprep.subr.mxu0 0.0
        %1887 = vmatpush2.msra.mxu0 0.0
        %1888 = vmatprep.subr.mxu0 0.0
        %1889 = vmatpush2.msra.mxu0 0.0
        %1890 = vmatprep.subr.mxu0 0.0
        %1891 = vmatpush2.msra.mxu0 0.0
        %1892 = vmatprep.subr.mxu0 0.0
        %1893 = vmatpush2.msra.mxu0 0.0
        %1894 = vmatprep.subr.mxu0 0.0
        %1895 = vmatpush2.msra.mxu0 0.0
        %1896 = vmatprep.subr.mxu0 0.0
        %1897 = vmatpush2.msra.mxu0 0.0
        %1898 = vmatprep.subr.mxu0 0.0
        %1899 = vmatpush2.msra.mxu0 0.0
        %1900 = vmatprep.subr.mxu0 0.0
        %1901 = vmatpush2.msra.mxu0 0.0
        %1902 = vmatprep.subr.mxu0 0.0
        %1903 = vmatpush2.msra.mxu0 0.0
        %1904 = vmatprep.mubr.f32.mxu0 0.0
        %1905 = vmatmul.mubr.f32.gmra.mxu0 %v1651
        %v1906 = vpop.f32.mrf.mxu0
        %v1907 = vadd.f32 %v1636, %v1906
        %v1908 = vpop.f32.mrf.mxu0
        %v1909 = vadd.f32 %v1636, %v1908
        %1910 = vmatprep.mubr.f32.mxu0 0.0
        %1911 = vmatmul.mubr.f32.gmra.mxu0 %v1654
        %v1912 = vpop.f32.mrf.mxu0
        %v1913 = vadd.f32 %v1640, %v1912
        %v1914 = vpop.f32.mrf.mxu0
        %v1915 = vadd.f32 %v1640, %v1914
        %1916 = vmatprep.mubr.f32.mxu0 0.0
        %1917 = vmatmul.mubr.f32.gmra.mxu0 %v1657
        %v1918 = vpop.f32.mrf.mxu0
        %v1919 = vadd.f32 %v1644, %v1918
        %v1920 = vpop.f32.mrf.mxu0
        %v1921 = vadd.f32 %v1644, %v1920
        %1922 = vmatprep.mubr.f32.mxu0 0.0
        %1923 = vmatmul.mubr.f32.gmra.mxu0 %v1660
        %v1924 = vpop.f32.mrf.mxu0
        %v1925 = vadd.f32 %v1648, %v1924
        %v1926 = vpop.f32.mrf.mxu0
        %v1927 = vadd.f32 %v1648, %v1926
        %1928 = vdwg.mxu0
        %1929 = vmatprep.subr.mxu0 0.0
        %1930 = vmatpush1.msra.mxu0 0.0
        %1931 = vmatprep.subr.mxu0 0.0
        %1932 = vmatpush1.msra.mxu0 0.0
        %1933 = vmatprep.subr.mxu0 0.0
        %1934 = vmatpush1.msra.mxu0 0.0
        %1935 = vmatprep.subr.mxu0 0.0
        %1936 = vmatpush1.msra.mxu0 0.0
        %1937 = vmatprep.subr.mxu0 0.0
        %1938 = vmatpush1.msra.mxu0 0.0
        %1939 = vmatprep.subr.mxu0 0.0
        %1940 = vmatpush1.msra.mxu0 0.0
        %1941 = vmatprep.subr.mxu0 0.0
        %1942 = vmatpush1.msra.mxu0 0.0
        %1943 = vmatprep.subr.mxu0 0.0
        %1944 = vmatpush1.msra.mxu0 0.0
        %1945 = vmatprep.subr.mxu0 0.0
        %1946 = vmatpush1.msra.mxu0 0.0
        %1947 = vmatprep.subr.mxu0 0.0
        %1948 = vmatpush1.msra.mxu0 0.0
        %1949 = vmatprep.subr.mxu0 0.0
        %1950 = vmatpush1.msra.mxu0 0.0
        %1951 = vmatprep.subr.mxu0 0.0
        %1952 = vmatpush1.msra.mxu0 0.0
        %1953 = vmatprep.subr.mxu0 %v1621
        %1954 = vmatpush1.msra.mxu0 %v1620
        %1955 = vmatprep.subr.mxu0 %v1605
        %1956 = vmatpush1.msra.mxu0 %v1604
        %1957 = vmatprep.subr.mxu0 %v1589
        %1958 = vmatpush1.msra.mxu0 %v1588
        %1959 = vmatprep.subr.mxu0 %v1573
        %1960 = vmatpush1.msra.mxu0 %v1572
        %1961 = vmatprep.subr.mxu0 0.0
        %1962 = vmatpush2.msra.mxu0 0.0
        %1963 = vmatprep.subr.mxu0 0.0
        %1964 = vmatpush2.msra.mxu0 0.0
        %1965 = vmatprep.subr.mxu0 0.0
        %1966 = vmatpush2.msra.mxu0 0.0
        %1967 = vmatprep.subr.mxu0 0.0
        %1968 = vmatpush2.msra.mxu0 0.0
        %1969 = vmatprep.subr.mxu0 0.0
        %1970 = vmatpush2.msra.mxu0 0.0
        %1971 = vmatprep.subr.mxu0 0.0
        %1972 = vmatpush2.msra.mxu0 0.0
        %1973 = vmatprep.subr.mxu0 0.0
        %1974 = vmatpush2.msra.mxu0 0.0
        %1975 = vmatprep.subr.mxu0 0.0
        %1976 = vmatpush2.msra.mxu0 0.0
        %1977 = vmatprep.subr.mxu0 0.0
        %1978 = vmatpush2.msra.mxu0 0.0
        %1979 = vmatprep.subr.mxu0 0.0
        %1980 = vmatpush2.msra.mxu0 0.0
        %1981 = vmatprep.subr.mxu0 0.0
        %1982 = vmatpush2.msra.mxu0 0.0
        %1983 = vmatprep.subr.mxu0 0.0
        %1984 = vmatpush2.msra.mxu0 0.0
        %1985 = vmatprep.subr.mxu0 0.0
        %1986 = vmatpush2.msra.mxu0 0.0
        %1987 = vmatprep.subr.mxu0 0.0
        %1988 = vmatpush2.msra.mxu0 0.0
        %1989 = vmatprep.subr.mxu0 0.0
        %1990 = vmatpush2.msra.mxu0 0.0
        %1991 = vmatprep.subr.mxu0 0.0
        %1992 = vmatpush2.msra.mxu0 0.0
        %1993 = vmatprep.mubr.f32.mxu0 0.0
        %1994 = vmatmul.mubr.f32.gmra.mxu0 %v1651
        %v1995 = vpop.f32.mrf.mxu0
        %v1996 = vadd.f32 %v1636, %v1995
        %v1997 = vpop.f32.mrf.mxu0
        %v1998 = vadd.f32 %v1636, %v1997
        %1999 = vmatprep.mubr.f32.mxu0 0.0
        %2000 = vmatmul.mubr.f32.gmra.mxu0 %v1654
        %v2001 = vpop.f32.mrf.mxu0
        %v2002 = vadd.f32 %v1640, %v2001
        %v2003 = vpop.f32.mrf.mxu0
        %v2004 = vadd.f32 %v1640, %v2003
        %2005 = vmatprep.mubr.f32.mxu0 0.0
        %2006 = vmatmul.mubr.f32.gmra.mxu0 %v1657
        %v2007 = vpop.f32.mrf.mxu0
        %v2008 = vadd.f32 %v1644, %v2007
        %v2009 = vpop.f32.mrf.mxu0
        %v2010 = vadd.f32 %v1644, %v2009
        %2011 = vmatprep.mubr.f32.mxu0 0.0
        %2012 = vmatmul.mubr.f32.gmra.mxu0 %v1660
        %v2013 = vpop.f32.mrf.mxu0
        %v2014 = vadd.f32 %v1648, %v2013
        %v2015 = vpop.f32.mrf.mxu0
        %v2016 = vadd.f32 %v1648, %v2015
        %2017 = vdwg.mxu0
        %2018 = vmatprep.subr.mxu0 0.0
        %2019 = vmatpush1.msra.mxu0 0.0
        %2020 = vmatprep.subr.mxu0 0.0
        %2021 = vmatpush1.msra.mxu0 0.0
        %2022 = vmatprep.subr.mxu0 0.0
        %2023 = vmatpush1.msra.mxu0 0.0
        %2024 = vmatprep.subr.mxu0 0.0
        %2025 = vmatpush1.msra.mxu0 0.0
        %2026 = vmatprep.subr.mxu0 0.0
        %2027 = vmatpush1.msra.mxu0 0.0
        %2028 = vmatprep.subr.mxu0 0.0
        %2029 = vmatpush1.msra.mxu0 0.0
        %2030 = vmatprep.subr.mxu0 0.0
        %2031 = vmatpush1.msra.mxu0 0.0
        %2032 = vmatprep.subr.mxu0 0.0
        %2033 = vmatpush1.msra.mxu0 0.0
        %2034 = vmatprep.subr.mxu0 0.0
        %2035 = vmatpush1.msra.mxu0 0.0
        %2036 = vmatprep.subr.mxu0 0.0
        %2037 = vmatpush1.msra.mxu0 0.0
        %2038 = vmatprep.subr.mxu0 0.0
        %2039 = vmatpush1.msra.mxu0 0.0
        %2040 = vmatprep.subr.mxu0 0.0
        %2041 = vmatpush1.msra.mxu0 0.0
        %2042 = vmatprep.subr.mxu0 %v1623
        %2043 = vmatpush1.msra.mxu0 %v1622
        %2044 = vmatprep.subr.mxu0 %v1607
        %2045 = vmatpush1.msra.mxu0 %v1606
        %2046 = vmatprep.subr.mxu0 %v1591
        %2047 = vmatpush1.msra.mxu0 %v1590
        %2048 = vmatprep.subr.mxu0 %v1575
        %2049 = vmatpush1.msra.mxu0 %v1574
        %2050 = vmatprep.subr.mxu0 0.0
        %2051 = vmatpush2.msra.mxu0 0.0
        %2052 = vmatprep.subr.mxu0 0.0
        %2053 = vmatpush2.msra.mxu0 0.0
        %2054 = vmatprep.subr.mxu0 0.0
        %2055 = vmatpush2.msra.mxu0 0.0
        %2056 = vmatprep.subr.mxu0 0.0
        %2057 = vmatpush2.msra.mxu0 0.0
        %2058 = vmatprep.subr.mxu0 0.0
        %2059 = vmatpush2.msra.mxu0 0.0
        %2060 = vmatprep.subr.mxu0 0.0
        %2061 = vmatpush2.msra.mxu0 0.0
        %2062 = vmatprep.subr.mxu0 0.0
        %2063 = vmatpush2.msra.mxu0 0.0
        %2064 = vmatprep.subr.mxu0 0.0
        %2065 = vmatpush2.msra.mxu0 0.0
        %2066 = vmatprep.subr.mxu0 0.0
        %2067 = vmatpush2.msra.mxu0 0.0
        %2068 = vmatprep.subr.mxu0 0.0
        %2069 = vmatpush2.msra.mxu0 0.0
        %2070 = vmatprep.subr.mxu0 0.0
        %2071 = vmatpush2.msra.mxu0 0.0
        %2072 = vmatprep.subr.mxu0 0.0
        %2073 = vmatpush2.msra.mxu0 0.0
        %2074 = vmatprep.subr.mxu0 0.0
        %2075 = vmatpush2.msra.mxu0 0.0
        %2076 = vmatprep.subr.mxu0 0.0
        %2077 = vmatpush2.msra.mxu0 0.0
        %2078 = vmatprep.subr.mxu0 0.0
        %2079 = vmatpush2.msra.mxu0 0.0
        %2080 = vmatprep.subr.mxu0 0.0
        %2081 = vmatpush2.msra.mxu0 0.0
        %2082 = vmatprep.mubr.f32.mxu0 0.0
        %2083 = vmatmul.mubr.f32.gmra.mxu0 %v1651
        %v2084 = vpop.f32.mrf.mxu0
        %v2085 = vadd.f32 %v1636, %v2084
        %v2086 = vpop.f32.mrf.mxu0
        %v2087 = vadd.f32 %v1636, %v2086
        %2088 = vmatprep.mubr.f32.mxu0 0.0
        %2089 = vmatmul.mubr.f32.gmra.mxu0 %v1654
        %v2090 = vpop.f32.mrf.mxu0
        %v2091 = vadd.f32 %v1640, %v2090
        %v2092 = vpop.f32.mrf.mxu0
        %v2093 = vadd.f32 %v1640, %v2092
        %2094 = vmatprep.mubr.f32.mxu0 0.0
        %2095 = vmatmul.mubr.f32.gmra.mxu0 %v1657
        %v2096 = vpop.f32.mrf.mxu0
        %v2097 = vadd.f32 %v1644, %v2096
        %v2098 = vpop.f32.mrf.mxu0
        %v2099 = vadd.f32 %v1644, %v2098
        %2100 = vmatprep.mubr.f32.mxu0 0.0
        %2101 = vmatmul.mubr.f32.gmra.mxu0 %v1660
        %v2102 = vpop.f32.mrf.mxu0
        %v2103 = vadd.f32 %v1648, %v2102
        %v2104 = vpop.f32.mrf.mxu0
        %v2105 = vadd.f32 %v1648, %v2104
        %2106 = vdwg.mxu0
        %2107 = vmatprep.subr.mxu0 0.0
        %2108 = vmatpush1.msra.mxu0 0.0
        %2109 = vmatprep.subr.mxu0 0.0
        %2110 = vmatpush1.msra.mxu0 0.0
        %2111 = vmatprep.subr.mxu0 0.0
        %2112 = vmatpush1.msra.mxu0 0.0
        %2113 = vmatprep.subr.mxu0 0.0
        %2114 = vmatpush1.msra.mxu0 0.0
        %2115 = vmatprep.subr.mxu0 0.0
        %2116 = vmatpush1.msra.mxu0 0.0
        %2117 = vmatprep.subr.mxu0 0.0
        %2118 = vmatpush1.msra.mxu0 0.0
        %2119 = vmatprep.subr.mxu0 0.0
        %2120 = vmatpush1.msra.mxu0 0.0
        %2121 = vmatprep.subr.mxu0 0.0
        %2122 = vmatpush1.msra.mxu0 0.0
        %2123 = vmatprep.subr.mxu0 0.0
        %2124 = vmatpush1.msra.mxu0 0.0
        %2125 = vmatprep.subr.mxu0 0.0
        %2126 = vmatpush1.msra.mxu0 0.0
        %2127 = vmatprep.subr.mxu0 0.0
        %2128 = vmatpush1.msra.mxu0 0.0
        %2129 = vmatprep.subr.mxu0 0.0
        %2130 = vmatpush1.msra.mxu0 0.0
        %2131 = vmatprep.subr.mxu0 %v1625
        %2132 = vmatpush1.msra.mxu0 %v1624
        %2133 = vmatprep.subr.mxu0 %v1609
        %2134 = vmatpush1.msra.mxu0 %v1608
        %2135 = vmatprep.subr.mxu0 %v1593
        %2136 = vmatpush1.msra.mxu0 %v1592
        %2137 = vmatprep.subr.mxu0 %v1577
        %2138 = vmatpush1.msra.mxu0 %v1576
        %2139 = vmatprep.subr.mxu0 0.0
        %2140 = vmatpush2.msra.mxu0 0.0
        %2141 = vmatprep.subr.mxu0 0.0
        %2142 = vmatpush2.msra.mxu0 0.0
        %2143 = vmatprep.subr.mxu0 0.0
        %2144 = vmatpush2.msra.mxu0 0.0
        %2145 = vmatprep.subr.mxu0 0.0
        %2146 = vmatpush2.msra.mxu0 0.0
        %2147 = vmatprep.subr.mxu0 0.0
        %2148 = vmatpush2.msra.mxu0 0.0
        %2149 = vmatprep.subr.mxu0 0.0
        %2150 = vmatpush2.msra.mxu0 0.0
        %2151 = vmatprep.subr.mxu0 0.0
        %2152 = vmatpush2.msra.mxu0 0.0
        %2153 = vmatprep.subr.mxu0 0.0
        %2154 = vmatpush2.msra.mxu0 0.0
        %2155 = vmatprep.subr.mxu0 0.0
        %2156 = vmatpush2.msra.mxu0 0.0
        %2157 = vmatprep.subr.mxu0 0.0
        %2158 = vmatpush2.msra.mxu0 0.0
        %2159 = vmatprep.subr.mxu0 0.0
        %2160 = vmatpush2.msra.mxu0 0.0
        %2161 = vmatprep.subr.mxu0 0.0
        %2162 = vmatpush2.msra.mxu0 0.0
        %2163 = vmatprep.subr.mxu0 0.0
        %2164 = vmatpush2.msra.mxu0 0.0
        %2165 = vmatprep.subr.mxu0 0.0
        %2166 = vmatpush2.msra.mxu0 0.0
        %2167 = vmatprep.subr.mxu0 0.0
        %2168 = vmatpush2.msra.mxu0 0.0
        %2169 = vmatprep.subr.mxu0 0.0
        %2170 = vmatpush2.msra.mxu0 0.0
        %2171 = vmatprep.mubr.f32.mxu0 0.0
        %2172 = vmatmul.mubr.f32.gmra.mxu0 %v1651
        %v2173 = vpop.f32.mrf.mxu0
        %v2174 = vadd.f32 %v1636, %v2173
        %v2175 = vpop.f32.mrf.mxu0
        %v2176 = vadd.f32 %v1636, %v2175
        %2177 = vmatprep.mubr.f32.mxu0 0.0
        %2178 = vmatmul.mubr.f32.gmra.mxu0 %v1654
        %v2179 = vpop.f32.mrf.mxu0
        %v2180 = vadd.f32 %v1640, %v2179
        %v2181 = vpop.f32.mrf.mxu0
        %v2182 = vadd.f32 %v1640, %v2181
        %2183 = vmatprep.mubr.f32.mxu0 0.0
        %2184 = vmatmul.mubr.f32.gmra.mxu0 %v1657
        %v2185 = vpop.f32.mrf.mxu0
        %v2186 = vadd.f32 %v1644, %v2185
        %v2187 = vpop.f32.mrf.mxu0
        %v2188 = vadd.f32 %v1644, %v2187
        %2189 = vmatprep.mubr.f32.mxu0 0.0
        %2190 = vmatmul.mubr.f32.gmra.mxu0 %v1660
        %v2191 = vpop.f32.mrf.mxu0
        %v2192 = vadd.f32 %v1648, %v2191
        %v2193 = vpop.f32.mrf.mxu0
        %v2194 = vadd.f32 %v1648, %v2193
        %2195 = vdwg.mxu0
        %2196 = vmatprep.subr.mxu0 0.0
        %2197 = vmatpush1.msra.mxu0 0.0
        %2198 = vmatprep.subr.mxu0 0.0
        %2199 = vmatpush1.msra.mxu0 0.0
        %2200 = vmatprep.subr.mxu0 0.0
        %2201 = vmatpush1.msra.mxu0 0.0
        %2202 = vmatprep.subr.mxu0 0.0
        %2203 = vmatpush1.msra.mxu0 0.0
        %2204 = vmatprep.subr.mxu0 0.0
        %2205 = vmatpush1.msra.mxu0 0.0
        %2206 = vmatprep.subr.mxu0 0.0
        %2207 = vmatpush1.msra.mxu0 0.0
        %2208 = vmatprep.subr.mxu0 0.0
        %2209 = vmatpush1.msra.mxu0 0.0
        %2210 = vmatprep.subr.mxu0 0.0
        %2211 = vmatpush1.msra.mxu0 0.0
        %2212 = vmatprep.subr.mxu0 0.0
        %2213 = vmatpush1.msra.mxu0 0.0
        %2214 = vmatprep.subr.mxu0 0.0
        %2215 = vmatpush1.msra.mxu0 0.0
        %2216 = vmatprep.subr.mxu0 0.0
        %2217 = vmatpush1.msra.mxu0 0.0
        %2218 = vmatprep.subr.mxu0 0.0
        %2219 = vmatpush1.msra.mxu0 0.0
        %2220 = vmatprep.subr.mxu0 %v1627
        %2221 = vmatpush1.msra.mxu0 %v1626
        %2222 = vmatprep.subr.mxu0 %v1611
        %2223 = vmatpush1.msra.mxu0 %v1610
        %2224 = vmatprep.subr.mxu0 %v1595
        %2225 = vmatpush1.msra.mxu0 %v1594
        %2226 = vmatprep.subr.mxu0 %v1579
        %2227 = vmatpush1.msra.mxu0 %v1578
        %2228 = vmatprep.subr.mxu0 0.0
        %2229 = vmatpush2.msra.mxu0 0.0
        %2230 = vmatprep.subr.mxu0 0.0
        %2231 = vmatpush2.msra.mxu0 0.0
        %2232 = vmatprep.subr.mxu0 0.0
        %2233 = vmatpush2.msra.mxu0 0.0
        %2234 = vmatprep.subr.mxu0 0.0
        %2235 = vmatpush2.msra.mxu0 0.0
        %2236 = vmatprep.subr.mxu0 0.0
        %2237 = vmatpush2.msra.mxu0 0.0
        %2238 = vmatprep.subr.mxu0 0.0
        %2239 = vmatpush2.msra.mxu0 0.0
        %2240 = vmatprep.subr.mxu0 0.0
        %2241 = vmatpush2.msra.mxu0 0.0
        %2242 = vmatprep.subr.mxu0 0.0
        %2243 = vmatpush2.msra.mxu0 0.0
        %2244 = vmatprep.subr.mxu0 0.0
        %2245 = vmatpush2.msra.mxu0 0.0
        %2246 = vmatprep.subr.mxu0 0.0
        %2247 = vmatpush2.msra.mxu0 0.0
        %2248 = vmatprep.subr.mxu0 0.0
        %2249 = vmatpush2.msra.mxu0 0.0
        %2250 = vmatprep.subr.mxu0 0.0
        %2251 = vmatpush2.msra.mxu0 0.0
        %2252 = vmatprep.subr.mxu0 0.0
        %2253 = vmatpush2.msra.mxu0 0.0
        %2254 = vmatprep.subr.mxu0 0.0
        %2255 = vmatpush2.msra.mxu0 0.0
        %2256 = vmatprep.subr.mxu0 0.0
        %2257 = vmatpush2.msra.mxu0 0.0
        %2258 = vmatprep.subr.mxu0 0.0
        %2259 = vmatpush2.msra.mxu0 0.0
        %2260 = vmatprep.mubr.f32.mxu0 0.0
        %2261 = vmatmul.mubr.f32.gmra.mxu0 %v1651
        %v2262 = vpop.f32.mrf.mxu0
        %v2263 = vadd.f32 %v1636, %v2262
        %v2264 = vpop.f32.mrf.mxu0
        %v2265 = vadd.f32 %v1636, %v2264
        %2266 = vmatprep.mubr.f32.mxu0 0.0
        %2267 = vmatmul.mubr.f32.gmra.mxu0 %v1654
        %v2268 = vpop.f32.mrf.mxu0
        %v2269 = vadd.f32 %v1640, %v2268
        %v2270 = vpop.f32.mrf.mxu0
        %v2271 = vadd.f32 %v1640, %v2270
        %2272 = vmatprep.mubr.f32.mxu0 0.0
        %2273 = vmatmul.mubr.f32.gmra.mxu0 %v1657
        %v2274 = vpop.f32.mrf.mxu0
        %v2275 = vadd.f32 %v1644, %v2274
        %v2276 = vpop.f32.mrf.mxu0
        %v2277 = vadd.f32 %v1644, %v2276
        %2278 = vmatprep.mubr.f32.mxu0 0.0
        %2279 = vmatmul.mubr.f32.gmra.mxu0 %v1660
        %v2280 = vpop.f32.mrf.mxu0
        %v2281 = vadd.f32 %v1648, %v2280
        %v2282 = vpop.f32.mrf.mxu0
        %v2283 = vadd.f32 %v1648, %v2282
        %2284 = vdwg.mxu0
        %2285 = vmatprep.subr.mxu0 0.0
        %2286 = vmatpush1.msra.mxu0 0.0
        %2287 = vmatprep.subr.mxu0 0.0
        %2288 = vmatpush1.msra.mxu0 0.0
        %2289 = vmatprep.subr.mxu0 0.0
        %2290 = vmatpush1.msra.mxu0 0.0
        %2291 = vmatprep.subr.mxu0 0.0
        %2292 = vmatpush1.msra.mxu0 0.0
        %2293 = vmatprep.subr.mxu0 0.0
        %2294 = vmatpush1.msra.mxu0 0.0
        %2295 = vmatprep.subr.mxu0 0.0
        %2296 = vmatpush1.msra.mxu0 0.0
        %2297 = vmatprep.subr.mxu0 0.0
        %2298 = vmatpush1.msra.mxu0 0.0
        %2299 = vmatprep.subr.mxu0 0.0
        %2300 = vmatpush1.msra.mxu0 0.0
        %2301 = vmatprep.subr.mxu0 0.0
        %2302 = vmatpush1.msra.mxu0 0.0
        %2303 = vmatprep.subr.mxu0 0.0
        %2304 = vmatpush1.msra.mxu0 0.0
        %2305 = vmatprep.subr.mxu0 0.0
        %2306 = vmatpush1.msra.mxu0 0.0
        %2307 = vmatprep.subr.mxu0 0.0
        %2308 = vmatpush1.msra.mxu0 0.0
        %2309 = vmatprep.subr.mxu0 %v1629
        %2310 = vmatpush1.msra.mxu0 %v1628
        %2311 = vmatprep.subr.mxu0 %v1613
        %2312 = vmatpush1.msra.mxu0 %v1612
        %2313 = vmatprep.subr.mxu0 %v1597
        %2314 = vmatpush1.msra.mxu0 %v1596
        %2315 = vmatprep.subr.mxu0 %v1581
        %2316 = vmatpush1.msra.mxu0 %v1580
        %2317 = vmatprep.subr.mxu0 0.0
        %2318 = vmatpush2.msra.mxu0 0.0
        %2319 = vmatprep.subr.mxu0 0.0
        %2320 = vmatpush2.msra.mxu0 0.0
        %2321 = vmatprep.subr.mxu0 0.0
        %2322 = vmatpush2.msra.mxu0 0.0
        %2323 = vmatprep.subr.mxu0 0.0
        %2324 = vmatpush2.msra.mxu0 0.0
        %2325 = vmatprep.subr.mxu0 0.0
        %2326 = vmatpush2.msra.mxu0 0.0
        %2327 = vmatprep.subr.mxu0 0.0
        %2328 = vmatpush2.msra.mxu0 0.0
        %2329 = vmatprep.subr.mxu0 0.0
        %2330 = vmatpush2.msra.mxu0 0.0
        %2331 = vmatprep.subr.mxu0 0.0
        %2332 = vmatpush2.msra.mxu0 0.0
        %2333 = vmatprep.subr.mxu0 0.0
        %2334 = vmatpush2.msra.mxu0 0.0
        %2335 = vmatprep.subr.mxu0 0.0
        %2336 = vmatpush2.msra.mxu0 0.0
        %2337 = vmatprep.subr.mxu0 0.0
        %2338 = vmatpush2.msra.mxu0 0.0
        %2339 = vmatprep.subr.mxu0 0.0
        %2340 = vmatpush2.msra.mxu0 0.0
        %2341 = vmatprep.subr.mxu0 0.0
        %2342 = vmatpush2.msra.mxu0 0.0
        %2343 = vmatprep.subr.mxu0 0.0
        %2344 = vmatpush2.msra.mxu0 0.0
        %2345 = vmatprep.subr.mxu0 0.0
        %2346 = vmatpush2.msra.mxu0 0.0
        %2347 = vmatprep.subr.mxu0 0.0
        %2348 = vmatpush2.msra.mxu0 0.0
        %2349 = vmatprep.mubr.f32.mxu0 0.0
        %2350 = vmatmul.mubr.f32.gmra.mxu0 %v1651
        %v2351 = vpop.f32.mrf.mxu0
        %v2352 = vadd.f32 %v1636, %v2351
        %v2353 = vpop.f32.mrf.mxu0
        %v2354 = vadd.f32 %v1636, %v2353
        %2355 = vmatprep.mubr.f32.mxu0 0.0
        %2356 = vmatmul.mubr.f32.gmra.mxu0 %v1654
        %v2357 = vpop.f32.mrf.mxu0
        %v2358 = vadd.f32 %v1640, %v2357
        %v2359 = vpop.f32.mrf.mxu0
        %v2360 = vadd.f32 %v1640, %v2359
        %2361 = vmatprep.mubr.f32.mxu0 0.0
        %2362 = vmatmul.mubr.f32.gmra.mxu0 %v1657
        %v2363 = vpop.f32.mrf.mxu0
        %v2364 = vadd.f32 %v1644, %v2363
        %v2365 = vpop.f32.mrf.mxu0
        %v2366 = vadd.f32 %v1644, %v2365
        %2367 = vmatprep.mubr.f32.mxu0 0.0
        %2368 = vmatmul.mubr.f32.gmra.mxu0 %v1660
        %v2369 = vpop.f32.mrf.mxu0
        %v2370 = vadd.f32 %v1648, %v2369
        %v2371 = vpop.f32.mrf.mxu0
        %v2372 = vadd.f32 %v1648, %v2371
        %2373 = vdwg.mxu0
        %v2374 = vmax.f32 %v1729, 0.0
        %v2375 = vmax.f32 %v1731, 0.0
        %v2376 = vmax.f32 %v1818, 0.0
        %v2377 = vmax.f32 %v1820, 0.0
        %v2378 = vmax.f32 %v1907, 0.0
        %v2379 = vmax.f32 %v1909, 0.0
        %v2380 = vmax.f32 %v1996, 0.0
        %v2381 = vmax.f32 %v1998, 0.0
        %v2382 = vmax.f32 %v2085, 0.0
        %v2383 = vmax.f32 %v2087, 0.0
        %v2384 = vmax.f32 %v2174, 0.0
        %v2385 = vmax.f32 %v2176, 0.0
        %v2386 = vmax.f32 %v2263, 0.0
        %v2387 = vmax.f32 %v2265, 0.0
        %v2388 = vmax.f32 %v2352, 0.0
        %v2389 = vmax.f32 %v2354, 0.0
        %v2390 = vmax.f32 %v1735, 0.0
        %v2391 = vmax.f32 %v1737, 0.0
        %v2392 = vmax.f32 %v1824, 0.0
        %v2393 = vmax.f32 %v1826, 0.0
        %v2394 = vmax.f32 %v1913, 0.0
        %v2395 = vmax.f32 %v1915, 0.0
        %v2396 = vmax.f32 %v2002, 0.0
        %v2397 = vmax.f32 %v2004, 0.0
        %v2398 = vmax.f32 %v2091, 0.0
        %v2399 = vmax.f32 %v2093, 0.0
        %v2400 = vmax.f32 %v2180, 0.0
        %v2401 = vmax.f32 %v2182, 0.0
        %v2402 = vmax.f32 %v2269, 0.0
        %v2403 = vmax.f32 %v2271, 0.0
        %v2404 = vmax.f32 %v2358, 0.0
        %v2405 = vmax.f32 %v2360, 0.0
        %v2406 = vmax.f32 %v1741, 0.0
        %v2407 = vmax.f32 %v1743, 0.0
        %v2408 = vmax.f32 %v1830, 0.0
        %v2409 = vmax.f32 %v1832, 0.0
        %v2410 = vmax.f32 %v1919, 0.0
        %v2411 = vmax.f32 %v1921, 0.0
        %v2412 = vmax.f32 %v2008, 0.0
        %v2413 = vmax.f32 %v2010, 0.0
        %v2414 = vmax.f32 %v2097, 0.0
        %v2415 = vmax.f32 %v2099, 0.0
        %v2416 = vmax.f32 %v2186, 0.0
        %v2417 = vmax.f32 %v2188, 0.0
        %v2418 = vmax.f32 %v2275, 0.0
        %v2419 = vmax.f32 %v2277, 0.0
        %v2420 = vmax.f32 %v2364, 0.0
        %v2421 = vmax.f32 %v2366, 0.0
        %v2422 = vmax.f32 %v1747, 0.0
        %v2423 = vmax.f32 %v1749, 0.0
        %v2424 = vmax.f32 %v1836, 0.0
        %v2425 = vmax.f32 %v1838, 0.0
        %v2426 = vmax.f32 %v1925, 0.0
        %v2427 = vmax.f32 %v1927, 0.0
        %v2428 = vmax.f32 %v2014, 0.0
        %v2429 = vmax.f32 %v2016, 0.0
        %v2430 = vmax.f32 %v2103, 0.0
        %v2431 = vmax.f32 %v2105, 0.0
        %v2432 = vmax.f32 %v2192, 0.0
        %v2433 = vmax.f32 %v2194, 0.0
        %v2434 = vmax.f32 %v2281, 0.0
        %v2435 = vmax.f32 %v2283, 0.0
        %v2436 = vmax.f32 %v2370, 0.0
        %v2437 = vmax.f32 %v2372, 0.0
        %v2438 = vld [vmem:[%s1 + $0x60] sm:$0xff]
        %v2439 = vld [vmem:[%s1 + $0x68] sm:$0xff]
        %v2440 = vld [vmem:[%s1 + $0x70] sm:$0xff]
        %v2441 = vld [vmem:[%s1 + $0x78] sm:$0xff]
        %2442 = vset.pattern.permute.xlu0 3
        %2443 = vperm.xlu0 %2442, %v145
        %v2444 = vpop.permute.xlu0 %2443
        %2446 = vset.pattern.permute.xlu0 3
        %2447 = vperm.xlu0 %2446, %v146
        %v2448 = vpop.permute.xlu0 %2447
        %2450 = vset.pattern.permute.xlu0 3
        %2451 = vperm.xlu0 %2450, %v147
        %v2452 = vpop.permute.xlu0 %2451
        %2454 = vset.pattern.permute.xlu0 3
        %2455 = vperm.xlu0 %2454, %v148
        %v2456 = vpop.permute.xlu0 %2455
        %v2459 = vsel %vm841, %v2438, 0
        %v2462 = vsel %vm841, %v2439, 0
        %v2465 = vsel %vm841, %v2440, 0
        %v2468 = vsel %vm841, %v2441, 0
        %2470 = vmatprep.subr.mxu0 0.0
        %2471 = vmatpush1.msra.mxu0 0.0
        %2472 = vmatprep.subr.mxu0 0.0
        %2473 = vmatpush1.msra.mxu0 0.0
        %2474 = vmatprep.subr.mxu0 0.0
        %2475 = vmatpush1.msra.mxu0 0.0
        %2476 = vmatprep.subr.mxu0 0.0
        %2477 = vmatpush1.msra.mxu0 0.0
        %2478 = vmatprep.subr.mxu0 0.0
        %2479 = vmatpush1.msra.mxu0 0.0
        %2480 = vmatprep.subr.mxu0 0.0
        %2481 = vmatpush1.msra.mxu0 0.0
        %2482 = vmatprep.subr.mxu0 0.0
        %2483 = vmatpush1.msra.mxu0 0.0
        %2484 = vmatprep.subr.mxu0 0.0
        %2485 = vmatpush1.msra.mxu0 0.0
        %2486 = vmatprep.subr.mxu0 0.0
        %2487 = vmatpush1.msra.mxu0 0.0
        %2488 = vmatprep.subr.mxu0 0.0
        %2489 = vmatpush1.msra.mxu0 0.0
        %2490 = vmatprep.subr.mxu0 0.0
        %2491 = vmatpush1.msra.mxu0 0.0
        %2492 = vmatprep.subr.mxu0 0.0
        %2493 = vmatpush1.msra.mxu0 0.0
        %2494 = vmatprep.subr.mxu0 %v2423
        %2495 = vmatpush1.msra.mxu0 %v2422
        %2496 = vmatprep.subr.mxu0 %v2407
        %2497 = vmatpush1.msra.mxu0 %v2406
        %2498 = vmatprep.subr.mxu0 %v2391
        %2499 = vmatpush1.msra.mxu0 %v2390
        %2500 = vmatprep.subr.mxu0 %v2375
        %2501 = vmatpush1.msra.mxu0 %v2374
        %2502 = vmatprep.subr.mxu0 0.0
        %2503 = vmatpush2.msra.mxu0 0.0
        %2504 = vmatprep.subr.mxu0 0.0
        %2505 = vmatpush2.msra.mxu0 0.0
        %2506 = vmatprep.subr.mxu0 0.0
        %2507 = vmatpush2.msra.mxu0 0.0
        %2508 = vmatprep.subr.mxu0 0.0
        %2509 = vmatpush2.msra.mxu0 0.0
        %2510 = vmatprep.subr.mxu0 0.0
        %2511 = vmatpush2.msra.mxu0 0.0
        %2512 = vmatprep.subr.mxu0 0.0
        %2513 = vmatpush2.msra.mxu0 0.0
        %2514 = vmatprep.subr.mxu0 0.0
        %2515 = vmatpush2.msra.mxu0 0.0
        %2516 = vmatprep.subr.mxu0 0.0
        %2517 = vmatpush2.msra.mxu0 0.0
        %2518 = vmatprep.subr.mxu0 0.0
        %2519 = vmatpush2.msra.mxu0 0.0
        %2520 = vmatprep.subr.mxu0 0.0
        %2521 = vmatpush2.msra.mxu0 0.0
        %2522 = vmatprep.subr.mxu0 0.0
        %2523 = vmatpush2.msra.mxu0 0.0
        %2524 = vmatprep.subr.mxu0 0.0
        %2525 = vmatpush2.msra.mxu0 0.0
        %2526 = vmatprep.subr.mxu0 0.0
        %2527 = vmatpush2.msra.mxu0 0.0
        %2528 = vmatprep.subr.mxu0 0.0
        %2529 = vmatpush2.msra.mxu0 0.0
        %2530 = vmatprep.subr.mxu0 0.0
        %2531 = vmatpush2.msra.mxu0 0.0
        %2532 = vmatprep.subr.mxu0 0.0
        %2533 = vmatpush2.msra.mxu0 0.0
        %2534 = vmatprep.mubr.f32.mxu0 0.0
        %2535 = vmatmul.mubr.f32.gmra.mxu0 %v2459
        %v2536 = vpop.f32.mrf.mxu0
        %v2537 = vadd.f32 %v2444, %v2536
        %v2538 = vpop.f32.mrf.mxu0
        %v2539 = vadd.f32 %v2444, %v2538
        %2540 = vmatprep.mubr.f32.mxu0 0.0
        %2541 = vmatmul.mubr.f32.gmra.mxu0 %v2462
        %v2542 = vpop.f32.mrf.mxu0
        %v2543 = vadd.f32 %v2448, %v2542
        %v2544 = vpop.f32.mrf.mxu0
        %v2545 = vadd.f32 %v2448, %v2544
        %2546 = vmatprep.mubr.f32.mxu0 0.0
        %2547 = vmatmul.mubr.f32.gmra.mxu0 %v2465
        %v2548 = vpop.f32.mrf.mxu0
        %v2549 = vadd.f32 %v2452, %v2548
        %v2550 = vpop.f32.mrf.mxu0
        %v2551 = vadd.f32 %v2452, %v2550
        %2552 = vmatprep.mubr.f32.mxu0 0.0
        %2553 = vmatmul.mubr.f32.gmra.mxu0 %v2468
        %v2554 = vpop.f32.mrf.mxu0
        %v2555 = vadd.f32 %v2456, %v2554
        %v2556 = vpop.f32.mrf.mxu0
        %v2557 = vadd.f32 %v2456, %v2556
        %2558 = vdwg.mxu0
        %2559 = vmatprep.subr.mxu0 0.0
        %2560 = vmatpush1.msra.mxu0 0.0
        %2561 = vmatprep.subr.mxu0 0.0
        %2562 = vmatpush1.msra.mxu0 0.0
        %2563 = vmatprep.subr.mxu0 0.0
        %2564 = vmatpush1.msra.mxu0 0.0
        %2565 = vmatprep.subr.mxu0 0.0
        %2566 = vmatpush1.msra.mxu0 0.0
        %2567 = vmatprep.subr.mxu0 0.0
        %2568 = vmatpush1.msra.mxu0 0.0
        %2569 = vmatprep.subr.mxu0 0.0
        %2570 = vmatpush1.msra.mxu0 0.0
        %2571 = vmatprep.subr.mxu0 0.0
        %2572 = vmatpush1.msra.mxu0 0.0
        %2573 = vmatprep.subr.mxu0 0.0
        %2574 = vmatpush1.msra.mxu0 0.0
        %2575 = vmatprep.subr.mxu0 0.0
        %2576 = vmatpush1.msra.mxu0 0.0
        %2577 = vmatprep.subr.mxu0 0.0
        %2578 = vmatpush1.msra.mxu0 0.0
        %2579 = vmatprep.subr.mxu0 0.0
        %2580 = vmatpush1.msra.mxu0 0.0
        %2581 = vmatprep.subr.mxu0 0.0
        %2582 = vmatpush1.msra.mxu0 0.0
        %2583 = vmatprep.subr.mxu0 %v2425
        %2584 = vmatpush1.msra.mxu0 %v2424
        %2585 = vmatprep.subr.mxu0 %v2409
        %2586 = vmatpush1.msra.mxu0 %v2408
        %2587 = vmatprep.subr.mxu0 %v2393
        %2588 = vmatpush1.msra.mxu0 %v2392
        %2589 = vmatprep.subr.mxu0 %v2377
        %2590 = vmatpush1.msra.mxu0 %v2376
        %2591 = vmatprep.subr.mxu0 0.0
        %2592 = vmatpush2.msra.mxu0 0.0
        %2593 = vmatprep.subr.mxu0 0.0
        %2594 = vmatpush2.msra.mxu0 0.0
        %2595 = vmatprep.subr.mxu0 0.0
        %2596 = vmatpush2.msra.mxu0 0.0
        %2597 = vmatprep.subr.mxu0 0.0
        %2598 = vmatpush2.msra.mxu0 0.0
        %2599 = vmatprep.subr.mxu0 0.0
        %2600 = vmatpush2.msra.mxu0 0.0
        %2601 = vmatprep.subr.mxu0 0.0
        %2602 = vmatpush2.msra.mxu0 0.0
        %2603 = vmatprep.subr.mxu0 0.0
        %2604 = vmatpush2.msra.mxu0 0.0
        %2605 = vmatprep.subr.mxu0 0.0
        %2606 = vmatpush2.msra.mxu0 0.0
        %2607 = vmatprep.subr.mxu0 0.0
        %2608 = vmatpush2.msra.mxu0 0.0
        %2609 = vmatprep.subr.mxu0 0.0
        %2610 = vmatpush2.msra.mxu0 0.0
        %2611 = vmatprep.subr.mxu0 0.0
        %2612 = vmatpush2.msra.mxu0 0.0
        %2613 = vmatprep.subr.mxu0 0.0
        %2614 = vmatpush2.msra.mxu0 0.0
        %2615 = vmatprep.subr.mxu0 0.0
        %2616 = vmatpush2.msra.mxu0 0.0
        %2617 = vmatprep.subr.mxu0 0.0
        %2618 = vmatpush2.msra.mxu0 0.0
        %2619 = vmatprep.subr.mxu0 0.0
        %2620 = vmatpush2.msra.mxu0 0.0
        %2621 = vmatprep.subr.mxu0 0.0
        %2622 = vmatpush2.msra.mxu0 0.0
        %2623 = vmatprep.mubr.f32.mxu0 0.0
        %2624 = vmatmul.mubr.f32.gmra.mxu0 %v2459
        %v2625 = vpop.f32.mrf.mxu0
        %v2626 = vadd.f32 %v2444, %v2625
        %v2627 = vpop.f32.mrf.mxu0
        %v2628 = vadd.f32 %v2444, %v2627
        %2629 = vmatprep.mubr.f32.mxu0 0.0
        %2630 = vmatmul.mubr.f32.gmra.mxu0 %v2462
        %v2631 = vpop.f32.mrf.mxu0
        %v2632 = vadd.f32 %v2448, %v2631
        %v2633 = vpop.f32.mrf.mxu0
        %v2634 = vadd.f32 %v2448, %v2633
        %2635 = vmatprep.mubr.f32.mxu0 0.0
        %2636 = vmatmul.mubr.f32.gmra.mxu0 %v2465
        %v2637 = vpop.f32.mrf.mxu0
        %v2638 = vadd.f32 %v2452, %v2637
        %v2639 = vpop.f32.mrf.mxu0
        %v2640 = vadd.f32 %v2452, %v2639
        %2641 = vmatprep.mubr.f32.mxu0 0.0
        %2642 = vmatmul.mubr.f32.gmra.mxu0 %v2468
        %v2643 = vpop.f32.mrf.mxu0
        %v2644 = vadd.f32 %v2456, %v2643
        %v2645 = vpop.f32.mrf.mxu0
        %v2646 = vadd.f32 %v2456, %v2645
        %2647 = vdwg.mxu0
        %2648 = vmatprep.subr.mxu0 0.0
        %2649 = vmatpush1.msra.mxu0 0.0
        %2650 = vmatprep.subr.mxu0 0.0
        %2651 = vmatpush1.msra.mxu0 0.0
        %2652 = vmatprep.subr.mxu0 0.0
        %2653 = vmatpush1.msra.mxu0 0.0
        %2654 = vmatprep.subr.mxu0 0.0
        %2655 = vmatpush1.msra.mxu0 0.0
        %2656 = vmatprep.subr.mxu0 0.0
        %2657 = vmatpush1.msra.mxu0 0.0
        %2658 = vmatprep.subr.mxu0 0.0
        %2659 = vmatpush1.msra.mxu0 0.0
        %2660 = vmatprep.subr.mxu0 0.0
        %2661 = vmatpush1.msra.mxu0 0.0
        %2662 = vmatprep.subr.mxu0 0.0
        %2663 = vmatpush1.msra.mxu0 0.0
        %2664 = vmatprep.subr.mxu0 0.0
        %2665 = vmatpush1.msra.mxu0 0.0
        %2666 = vmatprep.subr.mxu0 0.0
        %2667 = vmatpush1.msra.mxu0 0.0
        %2668 = vmatprep.subr.mxu0 0.0
        %2669 = vmatpush1.msra.mxu0 0.0
        %2670 = vmatprep.subr.mxu0 0.0
        %2671 = vmatpush1.msra.mxu0 0.0
        %2672 = vmatprep.subr.mxu0 %v2427
        %2673 = vmatpush1.msra.mxu0 %v2426
        %2674 = vmatprep.subr.mxu0 %v2411
        %2675 = vmatpush1.msra.mxu0 %v2410
        %2676 = vmatprep.subr.mxu0 %v2395
        %2677 = vmatpush1.msra.mxu0 %v2394
        %2678 = vmatprep.subr.mxu0 %v2379
        %2679 = vmatpush1.msra.mxu0 %v2378
        %2680 = vmatprep.subr.mxu0 0.0
        %2681 = vmatpush2.msra.mxu0 0.0
        %2682 = vmatprep.subr.mxu0 0.0
        %2683 = vmatpush2.msra.mxu0 0.0
        %2684 = vmatprep.subr.mxu0 0.0
        %2685 = vmatpush2.msra.mxu0 0.0
        %2686 = vmatprep.subr.mxu0 0.0
        %2687 = vmatpush2.msra.mxu0 0.0
        %2688 = vmatprep.subr.mxu0 0.0
        %2689 = vmatpush2.msra.mxu0 0.0
        %2690 = vmatprep.subr.mxu0 0.0
        %2691 = vmatpush2.msra.mxu0 0.0
        %2692 = vmatprep.subr.mxu0 0.0
        %2693 = vmatpush2.msra.mxu0 0.0
        %2694 = vmatprep.subr.mxu0 0.0
        %2695 = vmatpush2.msra.mxu0 0.0
        %2696 = vmatprep.subr.mxu0 0.0
        %2697 = vmatpush2.msra.mxu0 0.0
        %2698 = vmatprep.subr.mxu0 0.0
        %2699 = vmatpush2.msra.mxu0 0.0
        %2700 = vmatprep.subr.mxu0 0.0
        %2701 = vmatpush2.msra.mxu0 0.0
        %2702 = vmatprep.subr.mxu0 0.0
        %2703 = vmatpush2.msra.mxu0 0.0
        %2704 = vmatprep.subr.mxu0 0.0
        %2705 = vmatpush2.msra.mxu0 0.0
        %2706 = vmatprep.subr.mxu0 0.0
        %2707 = vmatpush2.msra.mxu0 0.0
        %2708 = vmatprep.subr.mxu0 0.0
        %2709 = vmatpush2.msra.mxu0 0.0
        %2710 = vmatprep.subr.mxu0 0.0
        %2711 = vmatpush2.msra.mxu0 0.0
        %2712 = vmatprep.mubr.f32.mxu0 0.0
        %2713 = vmatmul.mubr.f32.gmra.mxu0 %v2459
        %v2714 = vpop.f32.mrf.mxu0
        %v2715 = vadd.f32 %v2444, %v2714
        %v2716 = vpop.f32.mrf.mxu0
        %v2717 = vadd.f32 %v2444, %v2716
        %2718 = vmatprep.mubr.f32.mxu0 0.0
        %2719 = vmatmul.mubr.f32.gmra.mxu0 %v2462
        %v2720 = vpop.f32.mrf.mxu0
        %v2721 = vadd.f32 %v2448, %v2720
        %v2722 = vpop.f32.mrf.mxu0
        %v2723 = vadd.f32 %v2448, %v2722
        %2724 = vmatprep.mubr.f32.mxu0 0.0
        %2725 = vmatmul.mubr.f32.gmra.mxu0 %v2465
        %v2726 = vpop.f32.mrf.mxu0
        %v2727 = vadd.f32 %v2452, %v2726
        %v2728 = vpop.f32.mrf.mxu0
        %v2729 = vadd.f32 %v2452, %v2728
        %2730 = vmatprep.mubr.f32.mxu0 0.0
        %2731 = vmatmul.mubr.f32.gmra.mxu0 %v2468
        %v2732 = vpop.f32.mrf.mxu0
        %v2733 = vadd.f32 %v2456, %v2732
        %v2734 = vpop.f32.mrf.mxu0
        %v2735 = vadd.f32 %v2456, %v2734
        %2736 = vdwg.mxu0
        %2737 = vmatprep.subr.mxu0 0.0
        %2738 = vmatpush1.msra.mxu0 0.0
        %2739 = vmatprep.subr.mxu0 0.0
        %2740 = vmatpush1.msra.mxu0 0.0
        %2741 = vmatprep.subr.mxu0 0.0
        %2742 = vmatpush1.msra.mxu0 0.0
        %2743 = vmatprep.subr.mxu0 0.0
        %2744 = vmatpush1.msra.mxu0 0.0
        %2745 = vmatprep.subr.mxu0 0.0
        %2746 = vmatpush1.msra.mxu0 0.0
        %2747 = vmatprep.subr.mxu0 0.0
        %2748 = vmatpush1.msra.mxu0 0.0
        %2749 = vmatprep.subr.mxu0 0.0
        %2750 = vmatpush1.msra.mxu0 0.0
        %2751 = vmatprep.subr.mxu0 0.0
        %2752 = vmatpush1.msra.mxu0 0.0
        %2753 = vmatprep.subr.mxu0 0.0
        %2754 = vmatpush1.msra.mxu0 0.0
        %2755 = vmatprep.subr.mxu0 0.0
        %2756 = vmatpush1.msra.mxu0 0.0
        %2757 = vmatprep.subr.mxu0 0.0
        %2758 = vmatpush1.msra.mxu0 0.0
        %2759 = vmatprep.subr.mxu0 0.0
        %2760 = vmatpush1.msra.mxu0 0.0
        %2761 = vmatprep.subr.mxu0 %v2429
        %2762 = vmatpush1.msra.mxu0 %v2428
        %2763 = vmatprep.subr.mxu0 %v2413
        %2764 = vmatpush1.msra.mxu0 %v2412
        %2765 = vmatprep.subr.mxu0 %v2397
        %2766 = vmatpush1.msra.mxu0 %v2396
        %2767 = vmatprep.subr.mxu0 %v2381
        %2768 = vmatpush1.msra.mxu0 %v2380
        %2769 = vmatprep.subr.mxu0 0.0
        %2770 = vmatpush2.msra.mxu0 0.0
        %2771 = vmatprep.subr.mxu0 0.0
        %2772 = vmatpush2.msra.mxu0 0.0
        %2773 = vmatprep.subr.mxu0 0.0
        %2774 = vmatpush2.msra.mxu0 0.0
        %2775 = vmatprep.subr.mxu0 0.0
        %2776 = vmatpush2.msra.mxu0 0.0
        %2777 = vmatprep.subr.mxu0 0.0
        %2778 = vmatpush2.msra.mxu0 0.0
        %2779 = vmatprep.subr.mxu0 0.0
        %2780 = vmatpush2.msra.mxu0 0.0
        %2781 = vmatprep.subr.mxu0 0.0
        %2782 = vmatpush2.msra.mxu0 0.0
        %2783 = vmatprep.subr.mxu0 0.0
        %2784 = vmatpush2.msra.mxu0 0.0
        %2785 = vmatprep.subr.mxu0 0.0
        %2786 = vmatpush2.msra.mxu0 0.0
        %2787 = vmatprep.subr.mxu0 0.0
        %2788 = vmatpush2.msra.mxu0 0.0
        %2789 = vmatprep.subr.mxu0 0.0
        %2790 = vmatpush2.msra.mxu0 0.0
        %2791 = vmatprep.subr.mxu0 0.0
        %2792 = vmatpush2.msra.mxu0 0.0
        %2793 = vmatprep.subr.mxu0 0.0
        %2794 = vmatpush2.msra.mxu0 0.0
        %2795 = vmatprep.subr.mxu0 0.0
        %2796 = vmatpush2.msra.mxu0 0.0
        %2797 = vmatprep.subr.mxu0 0.0
        %2798 = vmatpush2.msra.mxu0 0.0
        %2799 = vmatprep.subr.mxu0 0.0
        %2800 = vmatpush2.msra.mxu0 0.0
        %2801 = vmatprep.mubr.f32.mxu0 0.0
        %2802 = vmatmul.mubr.f32.gmra.mxu0 %v2459
        %v2803 = vpop.f32.mrf.mxu0
        %v2804 = vadd.f32 %v2444, %v2803
        %v2805 = vpop.f32.mrf.mxu0
        %v2806 = vadd.f32 %v2444, %v2805
        %2807 = vmatprep.mubr.f32.mxu0 0.0
        %2808 = vmatmul.mubr.f32.gmra.mxu0 %v2462
        %v2809 = vpop.f32.mrf.mxu0
        %v2810 = vadd.f32 %v2448, %v2809
        %v2811 = vpop.f32.mrf.mxu0
        %v2812 = vadd.f32 %v2448, %v2811
        %2813 = vmatprep.mubr.f32.mxu0 0.0
        %2814 = vmatmul.mubr.f32.gmra.mxu0 %v2465
        %v2815 = vpop.f32.mrf.mxu0
        %v2816 = vadd.f32 %v2452, %v2815
        %v2817 = vpop.f32.mrf.mxu0
        %v2818 = vadd.f32 %v2452, %v2817
        %2819 = vmatprep.mubr.f32.mxu0 0.0
        %2820 = vmatmul.mubr.f32.gmra.mxu0 %v2468
        %v2821 = vpop.f32.mrf.mxu0
        %v2822 = vadd.f32 %v2456, %v2821
        %v2823 = vpop.f32.mrf.mxu0
        %v2824 = vadd.f32 %v2456, %v2823
        %2825 = vdwg.mxu0
        %2826 = vmatprep.subr.mxu0 0.0
        %2827 = vmatpush1.msra.mxu0 0.0
        %2828 = vmatprep.subr.mxu0 0.0
        %2829 = vmatpush1.msra.mxu0 0.0
        %2830 = vmatprep.subr.mxu0 0.0
        %2831 = vmatpush1.msra.mxu0 0.0
        %2832 = vmatprep.subr.mxu0 0.0
        %2833 = vmatpush1.msra.mxu0 0.0
        %2834 = vmatprep.subr.mxu0 0.0
        %2835 = vmatpush1.msra.mxu0 0.0
        %2836 = vmatprep.subr.mxu0 0.0
        %2837 = vmatpush1.msra.mxu0 0.0
        %2838 = vmatprep.subr.mxu0 0.0
        %2839 = vmatpush1.msra.mxu0 0.0
        %2840 = vmatprep.subr.mxu0 0.0
        %2841 = vmatpush1.msra.mxu0 0.0
        %2842 = vmatprep.subr.mxu0 0.0
        %2843 = vmatpush1.msra.mxu0 0.0
        %2844 = vmatprep.subr.mxu0 0.0
        %2845 = vmatpush1.msra.mxu0 0.0
        %2846 = vmatprep.subr.mxu0 0.0
        %2847 = vmatpush1.msra.mxu0 0.0
        %2848 = vmatprep.subr.mxu0 0.0
        %2849 = vmatpush1.msra.mxu0 0.0
        %2850 = vmatprep.subr.mxu0 %v2431
        %2851 = vmatpush1.msra.mxu0 %v2430
        %2852 = vmatprep.subr.mxu0 %v2415
        %2853 = vmatpush1.msra.mxu0 %v2414
        %2854 = vmatprep.subr.mxu0 %v2399
        %2855 = vmatpush1.msra.mxu0 %v2398
        %2856 = vmatprep.subr.mxu0 %v2383
        %2857 = vmatpush1.msra.mxu0 %v2382
        %2858 = vmatprep.subr.mxu0 0.0
        %2859 = vmatpush2.msra.mxu0 0.0
        %2860 = vmatprep.subr.mxu0 0.0
        %2861 = vmatpush2.msra.mxu0 0.0
        %2862 = vmatprep.subr.mxu0 0.0
        %2863 = vmatpush2.msra.mxu0 0.0
        %2864 = vmatprep.subr.mxu0 0.0
        %2865 = vmatpush2.msra.mxu0 0.0
        %2866 = vmatprep.subr.mxu0 0.0
        %2867 = vmatpush2.msra.mxu0 0.0
        %2868 = vmatprep.subr.mxu0 0.0
        %2869 = vmatpush2.msra.mxu0 0.0
        %2870 = vmatprep.subr.mxu0 0.0
        %2871 = vmatpush2.msra.mxu0 0.0
        %2872 = vmatprep.subr.mxu0 0.0
        %2873 = vmatpush2.msra.mxu0 0.0
        %2874 = vmatprep.subr.mxu0 0.0
        %2875 = vmatpush2.msra.mxu0 0.0
        %2876 = vmatprep.subr.mxu0 0.0
        %2877 = vmatpush2.msra.mxu0 0.0
        %2878 = vmatprep.subr.mxu0 0.0
        %2879 = vmatpush2.msra.mxu0 0.0
        %2880 = vmatprep.subr.mxu0 0.0
        %2881 = vmatpush2.msra.mxu0 0.0
        %2882 = vmatprep.subr.mxu0 0.0
        %2883 = vmatpush2.msra.mxu0 0.0
        %2884 = vmatprep.subr.mxu0 0.0
        %2885 = vmatpush2.msra.mxu0 0.0
        %2886 = vmatprep.subr.mxu0 0.0
        %2887 = vmatpush2.msra.mxu0 0.0
        %2888 = vmatprep.subr.mxu0 0.0
        %2889 = vmatpush2.msra.mxu0 0.0
        %2890 = vmatprep.mubr.f32.mxu0 0.0
        %2891 = vmatmul.mubr.f32.gmra.mxu0 %v2459
        %v2892 = vpop.f32.mrf.mxu0
        %v2893 = vadd.f32 %v2444, %v2892
        %v2894 = vpop.f32.mrf.mxu0
        %v2895 = vadd.f32 %v2444, %v2894
        %2896 = vmatprep.mubr.f32.mxu0 0.0
        %2897 = vmatmul.mubr.f32.gmra.mxu0 %v2462
        %v2898 = vpop.f32.mrf.mxu0
        %v2899 = vadd.f32 %v2448, %v2898
        %v2900 = vpop.f32.mrf.mxu0
        %v2901 = vadd.f32 %v2448, %v2900
        %2902 = vmatprep.mubr.f32.mxu0 0.0
        %2903 = vmatmul.mubr.f32.gmra.mxu0 %v2465
        %v2904 = vpop.f32.mrf.mxu0
        %v2905 = vadd.f32 %v2452, %v2904
        %v2906 = vpop.f32.mrf.mxu0
        %v2907 = vadd.f32 %v2452, %v2906
        %2908 = vmatprep.mubr.f32.mxu0 0.0
        %2909 = vmatmul.mubr.f32.gmra.mxu0 %v2468
        %v2910 = vpop.f32.mrf.mxu0
        %v2911 = vadd.f32 %v2456, %v2910
        %v2912 = vpop.f32.mrf.mxu0
        %v2913 = vadd.f32 %v2456, %v2912
        %2914 = vdwg.mxu0
        %2915 = vmatprep.subr.mxu0 0.0
        %2916 = vmatpush1.msra.mxu0 0.0
        %2917 = vmatprep.subr.mxu0 0.0
        %2918 = vmatpush1.msra.mxu0 0.0
        %2919 = vmatprep.subr.mxu0 0.0
        %2920 = vmatpush1.msra.mxu0 0.0
        %2921 = vmatprep.subr.mxu0 0.0
        %2922 = vmatpush1.msra.mxu0 0.0
        %2923 = vmatprep.subr.mxu0 0.0
        %2924 = vmatpush1.msra.mxu0 0.0
        %2925 = vmatprep.subr.mxu0 0.0
        %2926 = vmatpush1.msra.mxu0 0.0
        %2927 = vmatprep.subr.mxu0 0.0
        %2928 = vmatpush1.msra.mxu0 0.0
        %2929 = vmatprep.subr.mxu0 0.0
        %2930 = vmatpush1.msra.mxu0 0.0
        %2931 = vmatprep.subr.mxu0 0.0
        %2932 = vmatpush1.msra.mxu0 0.0
        %2933 = vmatprep.subr.mxu0 0.0
        %2934 = vmatpush1.msra.mxu0 0.0
        %2935 = vmatprep.subr.mxu0 0.0
        %2936 = vmatpush1.msra.mxu0 0.0
        %2937 = vmatprep.subr.mxu0 0.0
        %2938 = vmatpush1.msra.mxu0 0.0
        %2939 = vmatprep.subr.mxu0 %v2433
        %2940 = vmatpush1.msra.mxu0 %v2432
        %2941 = vmatprep.subr.mxu0 %v2417
        %2942 = vmatpush1.msra.mxu0 %v2416
        %2943 = vmatprep.subr.mxu0 %v2401
        %2944 = vmatpush1.msra.mxu0 %v2400
        %2945 = vmatprep.subr.mxu0 %v2385
        %2946 = vmatpush1.msra.mxu0 %v2384
        %2947 = vmatprep.subr.mxu0 0.0
        %2948 = vmatpush2.msra.mxu0 0.0
        %2949 = vmatprep.subr.mxu0 0.0
        %2950 = vmatpush2.msra.mxu0 0.0
        %2951 = vmatprep.subr.mxu0 0.0
        %2952 = vmatpush2.msra.mxu0 0.0
        %2953 = vmatprep.subr.mxu0 0.0
        %2954 = vmatpush2.msra.mxu0 0.0
        %2955 = vmatprep.subr.mxu0 0.0
        %2956 = vmatpush2.msra.mxu0 0.0
        %2957 = vmatprep.subr.mxu0 0.0
        %2958 = vmatpush2.msra.mxu0 0.0
        %2959 = vmatprep.subr.mxu0 0.0
        %2960 = vmatpush2.msra.mxu0 0.0
        %2961 = vmatprep.subr.mxu0 0.0
        %2962 = vmatpush2.msra.mxu0 0.0
        %2963 = vmatprep.subr.mxu0 0.0
        %2964 = vmatpush2.msra.mxu0 0.0
        %2965 = vmatprep.subr.mxu0 0.0
        %2966 = vmatpush2.msra.mxu0 0.0
        %2967 = vmatprep.subr.mxu0 0.0
        %2968 = vmatpush2.msra.mxu0 0.0
        %2969 = vmatprep.subr.mxu0 0.0
        %2970 = vmatpush2.msra.mxu0 0.0
        %2971 = vmatprep.subr.mxu0 0.0
        %2972 = vmatpush2.msra.mxu0 0.0
        %2973 = vmatprep.subr.mxu0 0.0
        %2974 = vmatpush2.msra.mxu0 0.0
        %2975 = vmatprep.subr.mxu0 0.0
        %2976 = vmatpush2.msra.mxu0 0.0
        %2977 = vmatprep.subr.mxu0 0.0
        %2978 = vmatpush2.msra.mxu0 0.0
        %2979 = vmatprep.mubr.f32.mxu0 0.0
        %2980 = vmatmul.mubr.f32.gmra.mxu0 %v2459
        %v2981 = vpop.f32.mrf.mxu0
        %v2982 = vadd.f32 %v2444, %v2981
        %v2983 = vpop.f32.mrf.mxu0
        %v2984 = vadd.f32 %v2444, %v2983
        %2985 = vmatprep.mubr.f32.mxu0 0.0
        %2986 = vmatmul.mubr.f32.gmra.mxu0 %v2462
        %v2987 = vpop.f32.mrf.mxu0
        %v2988 = vadd.f32 %v2448, %v2987
        %v2989 = vpop.f32.mrf.mxu0
        %v2990 = vadd.f32 %v2448, %v2989
        %2991 = vmatprep.mubr.f32.mxu0 0.0
        %2992 = vmatmul.mubr.f32.gmra.mxu0 %v2465
        %v2993 = vpop.f32.mrf.mxu0
        %v2994 = vadd.f32 %v2452, %v2993
        %v2995 = vpop.f32.mrf.mxu0
        %v2996 = vadd.f32 %v2452, %v2995
        %2997 = vmatprep.mubr.f32.mxu0 0.0
        %2998 = vmatmul.mubr.f32.gmra.mxu0 %v2468
        %v2999 = vpop.f32.mrf.mxu0
        %v3000 = vadd.f32 %v2456, %v2999
        %v3001 = vpop.f32.mrf.mxu0
        %v3002 = vadd.f32 %v2456, %v3001
        %3003 = vdwg.mxu0
        %3004 = vmatprep.subr.mxu0 0.0
        %3005 = vmatpush1.msra.mxu0 0.0
        %3006 = vmatprep.subr.mxu0 0.0
        %3007 = vmatpush1.msra.mxu0 0.0
        %3008 = vmatprep.subr.mxu0 0.0
        %3009 = vmatpush1.msra.mxu0 0.0
        %3010 = vmatprep.subr.mxu0 0.0
        %3011 = vmatpush1.msra.mxu0 0.0
        %3012 = vmatprep.subr.mxu0 0.0
        %3013 = vmatpush1.msra.mxu0 0.0
        %3014 = vmatprep.subr.mxu0 0.0
        %3015 = vmatpush1.msra.mxu0 0.0
        %3016 = vmatprep.subr.mxu0 0.0
        %3017 = vmatpush1.msra.mxu0 0.0
        %3018 = vmatprep.subr.mxu0 0.0
        %3019 = vmatpush1.msra.mxu0 0.0
        %3020 = vmatprep.subr.mxu0 0.0
        %3021 = vmatpush1.msra.mxu0 0.0
        %3022 = vmatprep.subr.mxu0 0.0
        %3023 = vmatpush1.msra.mxu0 0.0
        %3024 = vmatprep.subr.mxu0 0.0
        %3025 = vmatpush1.msra.mxu0 0.0
        %3026 = vmatprep.subr.mxu0 0.0
        %3027 = vmatpush1.msra.mxu0 0.0
        %3028 = vmatprep.subr.mxu0 %v2435
        %3029 = vmatpush1.msra.mxu0 %v2434
        %3030 = vmatprep.subr.mxu0 %v2419
        %3031 = vmatpush1.msra.mxu0 %v2418
        %3032 = vmatprep.subr.mxu0 %v2403
        %3033 = vmatpush1.msra.mxu0 %v2402
        %3034 = vmatprep.subr.mxu0 %v2387
        %3035 = vmatpush1.msra.mxu0 %v2386
        %3036 = vmatprep.subr.mxu0 0.0
        %3037 = vmatpush2.msra.mxu0 0.0
        %3038 = vmatprep.subr.mxu0 0.0
        %3039 = vmatpush2.msra.mxu0 0.0
        %3040 = vmatprep.subr.mxu0 0.0
        %3041 = vmatpush2.msra.mxu0 0.0
        %3042 = vmatprep.subr.mxu0 0.0
        %3043 = vmatpush2.msra.mxu0 0.0
        %3044 = vmatprep.subr.mxu0 0.0
        %3045 = vmatpush2.msra.mxu0 0.0
        %3046 = vmatprep.subr.mxu0 0.0
        %3047 = vmatpush2.msra.mxu0 0.0
        %3048 = vmatprep.subr.mxu0 0.0
        %3049 = vmatpush2.msra.mxu0 0.0
        %3050 = vmatprep.subr.mxu0 0.0
        %3051 = vmatpush2.msra.mxu0 0.0
        %3052 = vmatprep.subr.mxu0 0.0
        %3053 = vmatpush2.msra.mxu0 0.0
        %3054 = vmatprep.subr.mxu0 0.0
        %3055 = vmatpush2.msra.mxu0 0.0
        %3056 = vmatprep.subr.mxu0 0.0
        %3057 = vmatpush2.msra.mxu0 0.0
        %3058 = vmatprep.subr.mxu0 0.0
        %3059 = vmatpush2.msra.mxu0 0.0
        %3060 = vmatprep.subr.mxu0 0.0
        %3061 = vmatpush2.msra.mxu0 0.0
        %3062 = vmatprep.subr.mxu0 0.0
        %3063 = vmatpush2.msra.mxu0 0.0
        %3064 = vmatprep.subr.mxu0 0.0
        %3065 = vmatpush2.msra.mxu0 0.0
        %3066 = vmatprep.subr.mxu0 0.0
        %3067 = vmatpush2.msra.mxu0 0.0
        %3068 = vmatprep.mubr.f32.mxu0 0.0
        %3069 = vmatmul.mubr.f32.gmra.mxu0 %v2459
        %v3070 = vpop.f32.mrf.mxu0
        %v3071 = vadd.f32 %v2444, %v3070
        %v3072 = vpop.f32.mrf.mxu0
        %v3073 = vadd.f32 %v2444, %v3072
        %3074 = vmatprep.mubr.f32.mxu0 0.0
        %3075 = vmatmul.mubr.f32.gmra.mxu0 %v2462
        %v3076 = vpop.f32.mrf.mxu0
        %v3077 = vadd.f32 %v2448, %v3076
        %v3078 = vpop.f32.mrf.mxu0
        %v3079 = vadd.f32 %v2448, %v3078
        %3080 = vmatprep.mubr.f32.mxu0 0.0
        %3081 = vmatmul.mubr.f32.gmra.mxu0 %v2465
        %v3082 = vpop.f32.mrf.mxu0
        %v3083 = vadd.f32 %v2452, %v3082
        %v3084 = vpop.f32.mrf.mxu0
        %v3085 = vadd.f32 %v2452, %v3084
        %3086 = vmatprep.mubr.f32.mxu0 0.0
        %3087 = vmatmul.mubr.f32.gmra.mxu0 %v2468
        %v3088 = vpop.f32.mrf.mxu0
        %v3089 = vadd.f32 %v2456, %v3088
        %v3090 = vpop.f32.mrf.mxu0
        %v3091 = vadd.f32 %v2456, %v3090
        %3092 = vdwg.mxu0
        %3093 = vmatprep.subr.mxu0 0.0
        %3094 = vmatpush1.msra.mxu0 0.0
        %3095 = vmatprep.subr.mxu0 0.0
        %3096 = vmatpush1.msra.mxu0 0.0
        %3097 = vmatprep.subr.mxu0 0.0
        %3098 = vmatpush1.msra.mxu0 0.0
        %3099 = vmatprep.subr.mxu0 0.0
        %3100 = vmatpush1.msra.mxu0 0.0
        %3101 = vmatprep.subr.mxu0 0.0
        %3102 = vmatpush1.msra.mxu0 0.0
        %3103 = vmatprep.subr.mxu0 0.0
        %3104 = vmatpush1.msra.mxu0 0.0
        %3105 = vmatprep.subr.mxu0 0.0
        %3106 = vmatpush1.msra.mxu0 0.0
        %3107 = vmatprep.subr.mxu0 0.0
        %3108 = vmatpush1.msra.mxu0 0.0
        %3109 = vmatprep.subr.mxu0 0.0
        %3110 = vmatpush1.msra.mxu0 0.0
        %3111 = vmatprep.subr.mxu0 0.0
        %3112 = vmatpush1.msra.mxu0 0.0
        %3113 = vmatprep.subr.mxu0 0.0
        %3114 = vmatpush1.msra.mxu0 0.0
        %3115 = vmatprep.subr.mxu0 0.0
        %3116 = vmatpush1.msra.mxu0 0.0
        %3117 = vmatprep.subr.mxu0 %v2437
        %3118 = vmatpush1.msra.mxu0 %v2436
        %3119 = vmatprep.subr.mxu0 %v2421
        %3120 = vmatpush1.msra.mxu0 %v2420
        %3121 = vmatprep.subr.mxu0 %v2405
        %3122 = vmatpush1.msra.mxu0 %v2404
        %3123 = vmatprep.subr.mxu0 %v2389
        %3124 = vmatpush1.msra.mxu0 %v2388
        %3125 = vmatprep.subr.mxu0 0.0
        %3126 = vmatpush2.msra.mxu0 0.0
        %3127 = vmatprep.subr.mxu0 0.0
        %3128 = vmatpush2.msra.mxu0 0.0
        %3129 = vmatprep.subr.mxu0 0.0
        %3130 = vmatpush2.msra.mxu0 0.0
        %3131 = vmatprep.subr.mxu0 0.0
        %3132 = vmatpush2.msra.mxu0 0.0
        %3133 = vmatprep.subr.mxu0 0.0
        %3134 = vmatpush2.msra.mxu0 0.0
        %3135 = vmatprep.subr.mxu0 0.0
        %3136 = vmatpush2.msra.mxu0 0.0
        %3137 = vmatprep.subr.mxu0 0.0
        %3138 = vmatpush2.msra.mxu0 0.0
        %3139 = vmatprep.subr.mxu0 0.0
        %3140 = vmatpush2.msra.mxu0 0.0
        %3141 = vmatprep.subr.mxu0 0.0
        %3142 = vmatpush2.msra.mxu0 0.0
        %3143 = vmatprep.subr.mxu0 0.0
        %3144 = vmatpush2.msra.mxu0 0.0
        %3145 = vmatprep.subr.mxu0 0.0
        %3146 = vmatpush2.msra.mxu0 0.0
        %3147 = vmatprep.subr.mxu0 0.0
        %3148 = vmatpush2.msra.mxu0 0.0
        %3149 = vmatprep.subr.mxu0 0.0
        %3150 = vmatpush2.msra.mxu0 0.0
        %3151 = vmatprep.subr.mxu0 0.0
        %3152 = vmatpush2.msra.mxu0 0.0
        %3153 = vmatprep.subr.mxu0 0.0
        %3154 = vmatpush2.msra.mxu0 0.0
        %3155 = vmatprep.subr.mxu0 0.0
        %3156 = vmatpush2.msra.mxu0 0.0
        %3157 = vmatprep.mubr.f32.mxu0 0.0
        %3158 = vmatmul.mubr.f32.gmra.mxu0 %v2459
        %v3159 = vpop.f32.mrf.mxu0
        %v3160 = vadd.f32 %v2444, %v3159
        %v3161 = vpop.f32.mrf.mxu0
        %v3162 = vadd.f32 %v2444, %v3161
        %3163 = vmatprep.mubr.f32.mxu0 0.0
        %3164 = vmatmul.mubr.f32.gmra.mxu0 %v2462
        %v3165 = vpop.f32.mrf.mxu0
        %v3166 = vadd.f32 %v2448, %v3165
        %v3167 = vpop.f32.mrf.mxu0
        %v3168 = vadd.f32 %v2448, %v3167
        %3169 = vmatprep.mubr.f32.mxu0 0.0
        %3170 = vmatmul.mubr.f32.gmra.mxu0 %v2465
        %v3171 = vpop.f32.mrf.mxu0
        %v3172 = vadd.f32 %v2452, %v3171
        %v3173 = vpop.f32.mrf.mxu0
        %v3174 = vadd.f32 %v2452, %v3173
        %3175 = vmatprep.mubr.f32.mxu0 0.0
        %3176 = vmatmul.mubr.f32.gmra.mxu0 %v2468
        %v3177 = vpop.f32.mrf.mxu0
        %v3178 = vadd.f32 %v2456, %v3177
        %v3179 = vpop.f32.mrf.mxu0
        %v3180 = vadd.f32 %v2456, %v3179
        %3181 = vdwg.mxu0
        %v3182 = vxor.u32 %v2537, 2147483648
        %v3183 = vxor.u32 %v2539, 2147483648
        %v3184 = vxor.u32 %v2626, 2147483648
        %v3185 = vxor.u32 %v2628, 2147483648
        %v3186 = vxor.u32 %v2715, 2147483648
        %v3187 = vxor.u32 %v2717, 2147483648
        %v3188 = vxor.u32 %v2804, 2147483648
        %v3189 = vxor.u32 %v2806, 2147483648
        %v3190 = vxor.u32 %v2893, 2147483648
        %v3191 = vxor.u32 %v2895, 2147483648
        %v3192 = vxor.u32 %v2982, 2147483648
        %v3193 = vxor.u32 %v2984, 2147483648
        %v3194 = vxor.u32 %v3071, 2147483648
        %v3195 = vxor.u32 %v3073, 2147483648
        %v3196 = vxor.u32 %v3160, 2147483648
        %v3197 = vxor.u32 %v3162, 2147483648
        %v3198 = vxor.u32 %v2543, 2147483648
        %v3199 = vxor.u32 %v2545, 2147483648
        %v3200 = vxor.u32 %v2632, 2147483648
        %v3201 = vxor.u32 %v2634, 2147483648
        %v3202 = vxor.u32 %v2721, 2147483648
        %v3203 = vxor.u32 %v2723, 2147483648
        %v3204 = vxor.u32 %v2810, 2147483648
        %v3205 = vxor.u32 %v2812, 2147483648
        %v3206 = vxor.u32 %v2899, 2147483648
        %v3207 = vxor.u32 %v2901, 2147483648
        %v3208 = vxor.u32 %v2988, 2147483648
        %v3209 = vxor.u32 %v2990, 2147483648
        %v3210 = vxor.u32 %v3077, 2147483648
        %v3211 = vxor.u32 %v3079, 2147483648
        %v3212 = vxor.u32 %v3166, 2147483648
        %v3213 = vxor.u32 %v3168, 2147483648
        %v3214 = vxor.u32 %v2549, 2147483648
        %v3215 = vxor.u32 %v2551, 2147483648
        %v3216 = vxor.u32 %v2638, 2147483648
        %v3217 = vxor.u32 %v2640, 2147483648
        %v3218 = vxor.u32 %v2727, 2147483648
        %v3219 = vxor.u32 %v2729, 2147483648
        %v3220 = vxor.u32 %v2816, 2147483648
        %v3221 = vxor.u32 %v2818, 2147483648
        %v3222 = vxor.u32 %v2905, 2147483648
        %v3223 = vxor.u32 %v2907, 2147483648
        %v3224 = vxor.u32 %v2994, 2147483648
        %v3225 = vxor.u32 %v2996, 2147483648
        %v3226 = vxor.u32 %v3083, 2147483648
        %v3227 = vxor.u32 %v3085, 2147483648
        %v3228 = vxor.u32 %v3172, 2147483648
        %v3229 = vxor.u32 %v3174, 2147483648
        %v3230 = vxor.u32 %v2555, 2147483648
        %v3231 = vxor.u32 %v2557, 2147483648
        %v3232 = vxor.u32 %v2644, 2147483648
        %v3233 = vxor.u32 %v2646, 2147483648
        %v3234 = vxor.u32 %v2733, 2147483648
        %v3235 = vxor.u32 %v2735, 2147483648
        %v3236 = vxor.u32 %v2822, 2147483648
        %v3237 = vxor.u32 %v2824, 2147483648
        %v3238 = vxor.u32 %v2911, 2147483648
        %v3239 = vxor.u32 %v2913, 2147483648
        %v3240 = vxor.u32 %v3000, 2147483648
        %v3241 = vxor.u32 %v3002, 2147483648
        %v3242 = vxor.u32 %v3089, 2147483648
        %v3243 = vxor.u32 %v3091, 2147483648
        %v3244 = vxor.u32 %v3178, 2147483648
        %v3245 = vxor.u32 %v3180, 2147483648
        %v3246 = vmul.f32 %v3182, 1.442695
        %v3247 = vpow.pop %v3246
        %v3248 = vmul.f32 %v3183, 1.442695
        %v3249 = vpow.pop %v3248
        %v3250 = vmul.f32 %v3184, 1.442695
        %v3251 = vpow.pop %v3250
        %v3252 = vmul.f32 %v3185, 1.442695
        %v3253 = vpow.pop %v3252
        %v3254 = vmul.f32 %v3186, 1.442695
        %v3255 = vpow.pop %v3254
        %v3256 = vmul.f32 %v3187, 1.442695
        %v3257 = vpow.pop %v3256
        %v3258 = vmul.f32 %v3188, 1.442695
        %v3259 = vpow.pop %v3258
        %v3260 = vmul.f32 %v3189, 1.442695
        %v3261 = vpow.pop %v3260
        %v3262 = vmul.f32 %v3190, 1.442695
        %v3263 = vpow.pop %v3262
        %v3264 = vmul.f32 %v3191, 1.442695
        %v3265 = vpow.pop %v3264
        %v3266 = vmul.f32 %v3192, 1.442695
        %v3267 = vpow.pop %v3266
        %v3268 = vmul.f32 %v3193, 1.442695
        %v3269 = vpow.pop %v3268
        %v3270 = vmul.f32 %v3194, 1.442695
        %v3271 = vpow.pop %v3270
        %v3272 = vmul.f32 %v3195, 1.442695
        %v3273 = vpow.pop %v3272
        %v3274 = vmul.f32 %v3196, 1.442695
        %v3275 = vpow.pop %v3274
        %v3276 = vmul.f32 %v3197, 1.442695
        %v3277 = vpow.pop %v3276
        %v3278 = vmul.f32 %v3198, 1.442695
        %v3279 = vpow.pop %v3278
        %v3280 = vmul.f32 %v3199, 1.442695
        %v3281 = vpow.pop %v3280
        %v3282 = vmul.f32 %v3200, 1.442695
        %v3283 = vpow.pop %v3282
        %v3284 = vmul.f32 %v3201, 1.442695
        %v3285 = vpow.pop %v3284
        %v3286 = vmul.f32 %v3202, 1.442695
        %v3287 = vpow.pop %v3286
        %v3288 = vmul.f32 %v3203, 1.442695
        %v3289 = vpow.pop %v3288
        %v3290 = vmul.f32 %v3204, 1.442695
        %v3291 = vpow.pop %v3290
        %v3292 = vmul.f32 %v3205, 1.442695
        %v3293 = vpow.pop %v3292
        %v3294 = vmul.f32 %v3206, 1.442695
        %v3295 = vpow.pop %v3294
        %v3296 = vmul.f32 %v3207, 1.442695
        %v3297 = vpow.pop %v3296
        %v3298 = vmul.f32 %v3208, 1.442695
        %v3299 = vpow.pop %v3298
        %v3300 = vmul.f32 %v3209, 1.442695
        %v3301 = vpow.pop %v3300
        %v3302 = vmul.f32 %v3210, 1.442695
        %v3303 = vpow.pop %v3302
        %v3304 = vmul.f32 %v3211, 1.442695
        %v3305 = vpow.pop %v3304
        %v3306 = vmul.f32 %v3212, 1.442695
        %v3307 = vpow.pop %v3306
        %v3308 = vmul.f32 %v3213, 1.442695
        %v3309 = vpow.pop %v3308
        %v3310 = vmul.f32 %v3214, 1.442695
        %v3311 = vpow.pop %v3310
        %v3312 = vmul.f32 %v3215, 1.442695
        %v3313 = vpow.pop %v3312
        %v3314 = vmul.f32 %v3216, 1.442695
        %v3315 = vpow.pop %v3314
        %v3316 = vmul.f32 %v3217, 1.442695
        %v3317 = vpow.pop %v3316
        %v3318 = vmul.f32 %v3218, 1.442695
        %v3319 = vpow.pop %v3318
        %v3320 = vmul.f32 %v3219, 1.442695
        %v3321 = vpow.pop %v3320
        %v3322 = vmul.f32 %v3220, 1.442695
        %v3323 = vpow.pop %v3322
        %v3324 = vmul.f32 %v3221, 1.442695
        %v3325 = vpow.pop %v3324
        %v3326 = vmul.f32 %v3222, 1.442695
        %v3327 = vpow.pop %v3326
        %v3328 = vmul.f32 %v3223, 1.442695
        %v3329 = vpow.pop %v3328
        %v3330 = vmul.f32 %v3224, 1.442695
        %v3331 = vpow.pop %v3330
        %v3332 = vmul.f32 %v3225, 1.442695
        %v3333 = vpow.pop %v3332
        %v3334 = vmul.f32 %v3226, 1.442695
        %v3335 = vpow.pop %v3334
        %v3336 = vmul.f32 %v3227, 1.442695
        %v3337 = vpow.pop %v3336
        %v3338 = vmul.f32 %v3228, 1.442695
        %v3339 = vpow.pop %v3338
        %v3340 = vmul.f32 %v3229, 1.442695
        %v3341 = vpow.pop %v3340
        %v3342 = vmul.f32 %v3230, 1.442695
        %v3343 = vpow.pop %v3342
        %v3344 = vmul.f32 %v3231, 1.442695
        %v3345 = vpow.pop %v3344
        %v3346 = vmul.f32 %v3232, 1.442695
        %v3347 = vpow.pop %v3346
        %v3348 = vmul.f32 %v3233, 1.442695
        %v3349 = vpow.pop %v3348
        %v3350 = vmul.f32 %v3234, 1.442695
        %v3351 = vpow.pop %v3350
        %v3352 = vmul.f32 %v3235, 1.442695
        %v3353 = vpow.pop %v3352
        %v3354 = vmul.f32 %v3236, 1.442695
        %v3355 = vpow.pop %v3354
        %v3356 = vmul.f32 %v3237, 1.442695
        %v3357 = vpow.pop %v3356
        %v3358 = vmul.f32 %v3238, 1.442695
        %v3359 = vpow.pop %v3358
        %v3360 = vmul.f32 %v3239, 1.442695
        %v3361 = vpow.pop %v3360
        %v3362 = vmul.f32 %v3240, 1.442695
        %v3363 = vpow.pop %v3362
        %v3364 = vmul.f32 %v3241, 1.442695
        %v3365 = vpow.pop %v3364
        %v3366 = vmul.f32 %v3242, 1.442695
        %v3367 = vpow.pop %v3366
        %v3368 = vmul.f32 %v3243, 1.442695
        %v3369 = vpow.pop %v3368
        %v3370 = vmul.f32 %v3244, 1.442695
        %v3371 = vpow.pop %v3370
        %v3372 = vmul.f32 %v3245, 1.442695
        %v3373 = vpow.pop %v3372
        %v3374 = vadd.f32 %v3247, 1.0
        %v3375 = vadd.f32 %v3249, 1.0
        %v3376 = vadd.f32 %v3251, 1.0
        %v3377 = vadd.f32 %v3253, 1.0
        %v3378 = vadd.f32 %v3255, 1.0
        %v3379 = vadd.f32 %v3257, 1.0
        %v3380 = vadd.f32 %v3259, 1.0
        %v3381 = vadd.f32 %v3261, 1.0
        %v3382 = vadd.f32 %v3263, 1.0
        %v3383 = vadd.f32 %v3265, 1.0
        %v3384 = vadd.f32 %v3267, 1.0
        %v3385 = vadd.f32 %v3269, 1.0
        %v3386 = vadd.f32 %v3271, 1.0
        %v3387 = vadd.f32 %v3273, 1.0
        %v3388 = vadd.f32 %v3275, 1.0
        %v3389 = vadd.f32 %v3277, 1.0
        %v3390 = vadd.f32 %v3279, 1.0
        %v3391 = vadd.f32 %v3281, 1.0
        %v3392 = vadd.f32 %v3283, 1.0
        %v3393 = vadd.f32 %v3285, 1.0
        %v3394 = vadd.f32 %v3287, 1.0
        %v3395 = vadd.f32 %v3289, 1.0
        %v3396 = vadd.f32 %v3291, 1.0
        %v3397 = vadd.f32 %v3293, 1.0
        %v3398 = vadd.f32 %v3295, 1.0
        %v3399 = vadd.f32 %v3297, 1.0
        %v3400 = vadd.f32 %v3299, 1.0
        %v3401 = vadd.f32 %v3301, 1.0
        %v3402 = vadd.f32 %v3303, 1.0
        %v3403 = vadd.f32 %v3305, 1.0
        %v3404 = vadd.f32 %v3307, 1.0
        %v3405 = vadd.f32 %v3309, 1.0
        %v3406 = vadd.f32 %v3311, 1.0
        %v3407 = vadd.f32 %v3313, 1.0
        %v3408 = vadd.f32 %v3315, 1.0
        %v3409 = vadd.f32 %v3317, 1.0
        %v3410 = vadd.f32 %v3319, 1.0
        %v3411 = vadd.f32 %v3321, 1.0
        %v3412 = vadd.f32 %v3323, 1.0
        %v3413 = vadd.f32 %v3325, 1.0
        %v3414 = vadd.f32 %v3327, 1.0
        %v3415 = vadd.f32 %v3329, 1.0
        %v3416 = vadd.f32 %v3331, 1.0
        %v3417 = vadd.f32 %v3333, 1.0
        %v3418 = vadd.f32 %v3335, 1.0
        %v3419 = vadd.f32 %v3337, 1.0
        %v3420 = vadd.f32 %v3339, 1.0
        %v3421 = vadd.f32 %v3341, 1.0
        %v3422 = vadd.f32 %v3343, 1.0
        %v3423 = vadd.f32 %v3345, 1.0
        %v3424 = vadd.f32 %v3347, 1.0
        %v3425 = vadd.f32 %v3349, 1.0
        %v3426 = vadd.f32 %v3351, 1.0
        %v3427 = vadd.f32 %v3353, 1.0
        %v3428 = vadd.f32 %v3355, 1.0
        %v3429 = vadd.f32 %v3357, 1.0
        %v3430 = vadd.f32 %v3359, 1.0
        %v3431 = vadd.f32 %v3361, 1.0
        %v3432 = vadd.f32 %v3363, 1.0
        %v3433 = vadd.f32 %v3365, 1.0
        %v3434 = vadd.f32 %v3367, 1.0
        %v3435 = vadd.f32 %v3369, 1.0
        %v3436 = vadd.f32 %v3371, 1.0
        %v3437 = vadd.f32 %v3373, 1.0
        %v3438 = vrcp.pop %v3374
        %v3439 = vmul.f32 1.0, %v3438
        %v3440 = vrcp.pop %v3375
        %v3441 = vmul.f32 1.0, %v3440
        %v3442 = vrcp.pop %v3376
        %v3443 = vmul.f32 1.0, %v3442
        %v3444 = vrcp.pop %v3377
        %v3445 = vmul.f32 1.0, %v3444
        %v3446 = vrcp.pop %v3378
        %v3447 = vmul.f32 1.0, %v3446
        %v3448 = vrcp.pop %v3379
        %v3449 = vmul.f32 1.0, %v3448
        %v3450 = vrcp.pop %v3380
        %v3451 = vmul.f32 1.0, %v3450
        %v3452 = vrcp.pop %v3381
        %v3453 = vmul.f32 1.0, %v3452
        %v3454 = vrcp.pop %v3382
        %v3455 = vmul.f32 1.0, %v3454
        %v3456 = vrcp.pop %v3383
        %v3457 = vmul.f32 1.0, %v3456
        %v3458 = vrcp.pop %v3384
        %v3459 = vmul.f32 1.0, %v3458
        %v3460 = vrcp.pop %v3385
        %v3461 = vmul.f32 1.0, %v3460
        %v3462 = vrcp.pop %v3386
        %v3463 = vmul.f32 1.0, %v3462
        %v3464 = vrcp.pop %v3387
        %v3465 = vmul.f32 1.0, %v3464
        %v3466 = vrcp.pop %v3388
        %v3467 = vmul.f32 1.0, %v3466
        %v3468 = vrcp.pop %v3389
        %v3469 = vmul.f32 1.0, %v3468
        %v3470 = vrcp.pop %v3390
        %v3471 = vmul.f32 1.0, %v3470
        %v3472 = vrcp.pop %v3391
        %v3473 = vmul.f32 1.0, %v3472
        %v3474 = vrcp.pop %v3392
        %v3475 = vmul.f32 1.0, %v3474
        %v3476 = vrcp.pop %v3393
        %v3477 = vmul.f32 1.0, %v3476
        %v3478 = vrcp.pop %v3394
        %v3479 = vmul.f32 1.0, %v3478
        %v3480 = vrcp.pop %v3395
        %v3481 = vmul.f32 1.0, %v3480
        %v3482 = vrcp.pop %v3396
        %v3483 = vmul.f32 1.0, %v3482
        %v3484 = vrcp.pop %v3397
        %v3485 = vmul.f32 1.0, %v3484
        %v3486 = vrcp.pop %v3398
        %v3487 = vmul.f32 1.0, %v3486
        %v3488 = vrcp.pop %v3399
        %v3489 = vmul.f32 1.0, %v3488
        %v3490 = vrcp.pop %v3400
        %v3491 = vmul.f32 1.0, %v3490
        %v3492 = vrcp.pop %v3401
        %v3493 = vmul.f32 1.0, %v3492
        %v3494 = vrcp.pop %v3402
        %v3495 = vmul.f32 1.0, %v3494
        %v3496 = vrcp.pop %v3403
        %v3497 = vmul.f32 1.0, %v3496
        %v3498 = vrcp.pop %v3404
        %v3499 = vmul.f32 1.0, %v3498
        %v3500 = vrcp.pop %v3405
        %v3501 = vmul.f32 1.0, %v3500
        %v3502 = vrcp.pop %v3406
        %v3503 = vmul.f32 1.0, %v3502
        %v3504 = vrcp.pop %v3407
        %v3505 = vmul.f32 1.0, %v3504
        %v3506 = vrcp.pop %v3408
        %v3507 = vmul.f32 1.0, %v3506
        %v3508 = vrcp.pop %v3409
        %v3509 = vmul.f32 1.0, %v3508
        %v3510 = vrcp.pop %v3410
        %v3511 = vmul.f32 1.0, %v3510
        %v3512 = vrcp.pop %v3411
        %v3513 = vmul.f32 1.0, %v3512
        %v3514 = vrcp.pop %v3412
        %v3515 = vmul.f32 1.0, %v3514
        %v3516 = vrcp.pop %v3413
        %v3517 = vmul.f32 1.0, %v3516
        %v3518 = vrcp.pop %v3414
        %v3519 = vmul.f32 1.0, %v3518
        %v3520 = vrcp.pop %v3415
        %v3521 = vmul.f32 1.0, %v3520
        %v3522 = vrcp.pop %v3416
        %v3523 = vmul.f32 1.0, %v3522
        %v3524 = vrcp.pop %v3417
        %v3525 = vmul.f32 1.0, %v3524
        %v3526 = vrcp.pop %v3418
        %v3527 = vmul.f32 1.0, %v3526
        %v3528 = vrcp.pop %v3419
        %v3529 = vmul.f32 1.0, %v3528
        %v3530 = vrcp.pop %v3420
        %v3531 = vmul.f32 1.0, %v3530
        %v3532 = vrcp.pop %v3421
        %v3533 = vmul.f32 1.0, %v3532
        %v3534 = vrcp.pop %v3422
        %v3535 = vmul.f32 1.0, %v3534
        %v3536 = vrcp.pop %v3423
        %v3537 = vmul.f32 1.0, %v3536
        %v3538 = vrcp.pop %v3424
        %v3539 = vmul.f32 1.0, %v3538
        %v3540 = vrcp.pop %v3425
        %v3541 = vmul.f32 1.0, %v3540
        %v3542 = vrcp.pop %v3426
        %v3543 = vmul.f32 1.0, %v3542
        %v3544 = vrcp.pop %v3427
        %v3545 = vmul.f32 1.0, %v3544
        %v3546 = vrcp.pop %v3428
        %v3547 = vmul.f32 1.0, %v3546
        %v3548 = vrcp.pop %v3429
        %v3549 = vmul.f32 1.0, %v3548
        %v3550 = vrcp.pop %v3430
        %v3551 = vmul.f32 1.0, %v3550
        %v3552 = vrcp.pop %v3431
        %v3553 = vmul.f32 1.0, %v3552
        %v3554 = vrcp.pop %v3432
        %v3555 = vmul.f32 1.0, %v3554
        %v3556 = vrcp.pop %v3433
        %v3557 = vmul.f32 1.0, %v3556
        %v3558 = vrcp.pop %v3434
        %v3559 = vmul.f32 1.0, %v3558
        %v3560 = vrcp.pop %v3435
        %v3561 = vmul.f32 1.0, %v3560
        %v3562 = vrcp.pop %v3436
        %v3563 = vmul.f32 1.0, %v3562
        %v3564 = vrcp.pop %v3437
        %v3565 = vmul.f32 1.0, %v3564
        %v3566 = vld [vmem:[%s1 + $0xa0] sm:$0xff]
        %v3567 = vld [vmem:[%s1 + $0xa8] sm:$0xff]
        %v3568 = vld [vmem:[%s1 + $0xb0] sm:$0xff]
        %v3569 = vld [vmem:[%s1 + $0xb8] sm:$0xff]
        %v3571 = vsel %vm841, %v3566, 0
        %v3574 = vsel %vm841, %v3567, 0
        %v3577 = vsel %vm841, %v3568, 0
        %v3580 = vsel %vm841, %v3569, 0
        %3582 = vmatprep.subr.mxu0 0.0
        %3583 = vmatpush1.msra.mxu0 0.0
        %3584 = vmatprep.subr.mxu0 0.0
        %3585 = vmatpush1.msra.mxu0 0.0
        %3586 = vmatprep.subr.mxu0 0.0
        %3587 = vmatpush1.msra.mxu0 0.0
        %3588 = vmatprep.subr.mxu0 0.0
        %3589 = vmatpush1.msra.mxu0 0.0
        %3590 = vmatprep.subr.mxu0 0.0
        %3591 = vmatpush1.msra.mxu0 0.0
        %3592 = vmatprep.subr.mxu0 0.0
        %3593 = vmatpush1.msra.mxu0 0.0
        %3594 = vmatprep.subr.mxu0 0.0
        %3595 = vmatpush1.msra.mxu0 0.0
        %3596 = vmatprep.subr.mxu0 0.0
        %3597 = vmatpush1.msra.mxu0 0.0
        %3598 = vmatprep.subr.mxu0 0.0
        %3599 = vmatpush1.msra.mxu0 0.0
        %3600 = vmatprep.subr.mxu0 0.0
        %3601 = vmatpush1.msra.mxu0 0.0
        %3602 = vmatprep.subr.mxu0 0.0
        %3603 = vmatpush1.msra.mxu0 0.0
        %3604 = vmatprep.subr.mxu0 0.0
        %3605 = vmatpush1.msra.mxu0 0.0
        %3606 = vmatprep.subr.mxu0 %v3537
        %3607 = vmatpush1.msra.mxu0 %v3535
        %3608 = vmatprep.subr.mxu0 %v3505
        %3609 = vmatpush1.msra.mxu0 %v3503
        %3610 = vmatprep.subr.mxu0 %v3473
        %3611 = vmatpush1.msra.mxu0 %v3471
        %3612 = vmatprep.subr.mxu0 %v3441
        %3613 = vmatpush1.msra.mxu0 %v3439
        %3614 = vmatprep.subr.mxu0 0.0
        %3615 = vmatpush2.msra.mxu0 0.0
        %3616 = vmatprep.subr.mxu0 0.0
        %3617 = vmatpush2.msra.mxu0 0.0
        %3618 = vmatprep.subr.mxu0 0.0
        %3619 = vmatpush2.msra.mxu0 0.0
        %3620 = vmatprep.subr.mxu0 0.0
        %3621 = vmatpush2.msra.mxu0 0.0
        %3622 = vmatprep.subr.mxu0 0.0
        %3623 = vmatpush2.msra.mxu0 0.0
        %3624 = vmatprep.subr.mxu0 0.0
        %3625 = vmatpush2.msra.mxu0 0.0
        %3626 = vmatprep.subr.mxu0 0.0
        %3627 = vmatpush2.msra.mxu0 0.0
        %3628 = vmatprep.subr.mxu0 0.0
        %3629 = vmatpush2.msra.mxu0 0.0
        %3630 = vmatprep.subr.mxu0 0.0
        %3631 = vmatpush2.msra.mxu0 0.0
        %3632 = vmatprep.subr.mxu0 0.0
        %3633 = vmatpush2.msra.mxu0 0.0
        %3634 = vmatprep.subr.mxu0 0.0
        %3635 = vmatpush2.msra.mxu0 0.0
        %3636 = vmatprep.subr.mxu0 0.0
        %3637 = vmatpush2.msra.mxu0 0.0
        %3638 = vmatprep.subr.mxu0 0.0
        %3639 = vmatpush2.msra.mxu0 0.0
        %3640 = vmatprep.subr.mxu0 0.0
        %3641 = vmatpush2.msra.mxu0 0.0
        %3642 = vmatprep.subr.mxu0 0.0
        %3643 = vmatpush2.msra.mxu0 0.0
        %3644 = vmatprep.subr.mxu0 0.0
        %3645 = vmatpush2.msra.mxu0 0.0
        %3646 = vmatprep.mubr.f32.mxu0 0.0
        %3647 = vmatmul.mubr.f32.gmra.mxu0 %v3571
        %v3648 = vpop.f32.mrf.mxu0
        %v3649 = vadd.f32 0.0, %v3648
        %v3650 = vpop.f32.mrf.mxu0
        %v3651 = vadd.f32 0.0, %v3650
        %3652 = vmatprep.mubr.f32.mxu0 0.0
        %3653 = vmatmul.mubr.f32.gmra.mxu0 %v3574
        %v3654 = vpop.f32.mrf.mxu0
        %v3655 = vadd.f32 0.0, %v3654
        %v3656 = vpop.f32.mrf.mxu0
        %v3657 = vadd.f32 0.0, %v3656
        %3658 = vmatprep.mubr.f32.mxu0 0.0
        %3659 = vmatmul.mubr.f32.gmra.mxu0 %v3577
        %v3660 = vpop.f32.mrf.mxu0
        %v3661 = vadd.f32 0.0, %v3660
        %v3662 = vpop.f32.mrf.mxu0
        %v3663 = vadd.f32 0.0, %v3662
        %3664 = vmatprep.mubr.f32.mxu0 0.0
        %3665 = vmatmul.mubr.f32.gmra.mxu0 %v3580
        %v3666 = vpop.f32.mrf.mxu0
        %v3667 = vadd.f32 0.0, %v3666
        %v3668 = vpop.f32.mrf.mxu0
        %v3669 = vadd.f32 0.0, %v3668
        %3670 = vdwg.mxu0
        %3671 = vmatprep.subr.mxu0 0.0
        %3672 = vmatpush1.msra.mxu0 0.0
        %3673 = vmatprep.subr.mxu0 0.0
        %3674 = vmatpush1.msra.mxu0 0.0
        %3675 = vmatprep.subr.mxu0 0.0
        %3676 = vmatpush1.msra.mxu0 0.0
        %3677 = vmatprep.subr.mxu0 0.0
        %3678 = vmatpush1.msra.mxu0 0.0
        %3679 = vmatprep.subr.mxu0 0.0
        %3680 = vmatpush1.msra.mxu0 0.0
        %3681 = vmatprep.subr.mxu0 0.0
        %3682 = vmatpush1.msra.mxu0 0.0
        %3683 = vmatprep.subr.mxu0 0.0
        %3684 = vmatpush1.msra.mxu0 0.0
        %3685 = vmatprep.subr.mxu0 0.0
        %3686 = vmatpush1.msra.mxu0 0.0
        %3687 = vmatprep.subr.mxu0 0.0
        %3688 = vmatpush1.msra.mxu0 0.0
        %3689 = vmatprep.subr.mxu0 0.0
        %3690 = vmatpush1.msra.mxu0 0.0
        %3691 = vmatprep.subr.mxu0 0.0
        %3692 = vmatpush1.msra.mxu0 0.0
        %3693 = vmatprep.subr.mxu0 0.0
        %3694 = vmatpush1.msra.mxu0 0.0
        %3695 = vmatprep.subr.mxu0 %v3541
        %3696 = vmatpush1.msra.mxu0 %v3539
        %3697 = vmatprep.subr.mxu0 %v3509
        %3698 = vmatpush1.msra.mxu0 %v3507
        %3699 = vmatprep.subr.mxu0 %v3477
        %3700 = vmatpush1.msra.mxu0 %v3475
        %3701 = vmatprep.subr.mxu0 %v3445
        %3702 = vmatpush1.msra.mxu0 %v3443
        %3703 = vmatprep.subr.mxu0 0.0
        %3704 = vmatpush2.msra.mxu0 0.0
        %3705 = vmatprep.subr.mxu0 0.0
        %3706 = vmatpush2.msra.mxu0 0.0
        %3707 = vmatprep.subr.mxu0 0.0
        %3708 = vmatpush2.msra.mxu0 0.0
        %3709 = vmatprep.subr.mxu0 0.0
        %3710 = vmatpush2.msra.mxu0 0.0
        %3711 = vmatprep.subr.mxu0 0.0
        %3712 = vmatpush2.msra.mxu0 0.0
        %3713 = vmatprep.subr.mxu0 0.0
        %3714 = vmatpush2.msra.mxu0 0.0
        %3715 = vmatprep.subr.mxu0 0.0
        %3716 = vmatpush2.msra.mxu0 0.0
        %3717 = vmatprep.subr.mxu0 0.0
        %3718 = vmatpush2.msra.mxu0 0.0
        %3719 = vmatprep.subr.mxu0 0.0
        %3720 = vmatpush2.msra.mxu0 0.0
        %3721 = vmatprep.subr.mxu0 0.0
        %3722 = vmatpush2.msra.mxu0 0.0
        %3723 = vmatprep.subr.mxu0 0.0
        %3724 = vmatpush2.msra.mxu0 0.0
        %3725 = vmatprep.subr.mxu0 0.0
        %3726 = vmatpush2.msra.mxu0 0.0
        %3727 = vmatprep.subr.mxu0 0.0
        %3728 = vmatpush2.msra.mxu0 0.0
        %3729 = vmatprep.subr.mxu0 0.0
        %3730 = vmatpush2.msra.mxu0 0.0
        %3731 = vmatprep.subr.mxu0 0.0
        %3732 = vmatpush2.msra.mxu0 0.0
        %3733 = vmatprep.subr.mxu0 0.0
        %3734 = vmatpush2.msra.mxu0 0.0
        %3735 = vmatprep.mubr.f32.mxu0 0.0
        %3736 = vmatmul.mubr.f32.gmra.mxu0 %v3571
        %v3737 = vpop.f32.mrf.mxu0
        %v3738 = vadd.f32 0.0, %v3737
        %v3739 = vpop.f32.mrf.mxu0
        %v3740 = vadd.f32 0.0, %v3739
        %3741 = vmatprep.mubr.f32.mxu0 0.0
        %3742 = vmatmul.mubr.f32.gmra.mxu0 %v3574
        %v3743 = vpop.f32.mrf.mxu0
        %v3744 = vadd.f32 0.0, %v3743
        %v3745 = vpop.f32.mrf.mxu0
        %v3746 = vadd.f32 0.0, %v3745
        %3747 = vmatprep.mubr.f32.mxu0 0.0
        %3748 = vmatmul.mubr.f32.gmra.mxu0 %v3577
        %v3749 = vpop.f32.mrf.mxu0
        %v3750 = vadd.f32 0.0, %v3749
        %v3751 = vpop.f32.mrf.mxu0
        %v3752 = vadd.f32 0.0, %v3751
        %3753 = vmatprep.mubr.f32.mxu0 0.0
        %3754 = vmatmul.mubr.f32.gmra.mxu0 %v3580
        %v3755 = vpop.f32.mrf.mxu0
        %v3756 = vadd.f32 0.0, %v3755
        %v3757 = vpop.f32.mrf.mxu0
        %v3758 = vadd.f32 0.0, %v3757
        %3759 = vdwg.mxu0
        %3760 = vmatprep.subr.mxu0 0.0
        %3761 = vmatpush1.msra.mxu0 0.0
        %3762 = vmatprep.subr.mxu0 0.0
        %3763 = vmatpush1.msra.mxu0 0.0
        %3764 = vmatprep.subr.mxu0 0.0
        %3765 = vmatpush1.msra.mxu0 0.0
        %3766 = vmatprep.subr.mxu0 0.0
        %3767 = vmatpush1.msra.mxu0 0.0
        %3768 = vmatprep.subr.mxu0 0.0
        %3769 = vmatpush1.msra.mxu0 0.0
        %3770 = vmatprep.subr.mxu0 0.0
        %3771 = vmatpush1.msra.mxu0 0.0
        %3772 = vmatprep.subr.mxu0 0.0
        %3773 = vmatpush1.msra.mxu0 0.0
        %3774 = vmatprep.subr.mxu0 0.0
        %3775 = vmatpush1.msra.mxu0 0.0
        %3776 = vmatprep.subr.mxu0 0.0
        %3777 = vmatpush1.msra.mxu0 0.0
        %3778 = vmatprep.subr.mxu0 0.0
        %3779 = vmatpush1.msra.mxu0 0.0
        %3780 = vmatprep.subr.mxu0 0.0
        %3781 = vmatpush1.msra.mxu0 0.0
        %3782 = vmatprep.subr.mxu0 0.0
        %3783 = vmatpush1.msra.mxu0 0.0
        %3784 = vmatprep.subr.mxu0 %v3545
        %3785 = vmatpush1.msra.mxu0 %v3543
        %3786 = vmatprep.subr.mxu0 %v3513
        %3787 = vmatpush1.msra.mxu0 %v3511
        %3788 = vmatprep.subr.mxu0 %v3481
        %3789 = vmatpush1.msra.mxu0 %v3479
        %3790 = vmatprep.subr.mxu0 %v3449
        %3791 = vmatpush1.msra.mxu0 %v3447
        %3792 = vmatprep.subr.mxu0 0.0
        %3793 = vmatpush2.msra.mxu0 0.0
        %3794 = vmatprep.subr.mxu0 0.0
        %3795 = vmatpush2.msra.mxu0 0.0
        %3796 = vmatprep.subr.mxu0 0.0
        %3797 = vmatpush2.msra.mxu0 0.0
        %3798 = vmatprep.subr.mxu0 0.0
        %3799 = vmatpush2.msra.mxu0 0.0
        %3800 = vmatprep.subr.mxu0 0.0
        %3801 = vmatpush2.msra.mxu0 0.0
        %3802 = vmatprep.subr.mxu0 0.0
        %3803 = vmatpush2.msra.mxu0 0.0
        %3804 = vmatprep.subr.mxu0 0.0
        %3805 = vmatpush2.msra.mxu0 0.0
        %3806 = vmatprep.subr.mxu0 0.0
        %3807 = vmatpush2.msra.mxu0 0.0
        %3808 = vmatprep.subr.mxu0 0.0
        %3809 = vmatpush2.msra.mxu0 0.0
        %3810 = vmatprep.subr.mxu0 0.0
        %3811 = vmatpush2.msra.mxu0 0.0
        %3812 = vmatprep.subr.mxu0 0.0
        %3813 = vmatpush2.msra.mxu0 0.0
        %3814 = vmatprep.subr.mxu0 0.0
        %3815 = vmatpush2.msra.mxu0 0.0
        %3816 = vmatprep.subr.mxu0 0.0
        %3817 = vmatpush2.msra.mxu0 0.0
        %3818 = vmatprep.subr.mxu0 0.0
        %3819 = vmatpush2.msra.mxu0 0.0
        %3820 = vmatprep.subr.mxu0 0.0
        %3821 = vmatpush2.msra.mxu0 0.0
        %3822 = vmatprep.subr.mxu0 0.0
        %3823 = vmatpush2.msra.mxu0 0.0
        %3824 = vmatprep.mubr.f32.mxu0 0.0
        %3825 = vmatmul.mubr.f32.gmra.mxu0 %v3571
        %v3826 = vpop.f32.mrf.mxu0
        %v3827 = vadd.f32 0.0, %v3826
        %v3828 = vpop.f32.mrf.mxu0
        %v3829 = vadd.f32 0.0, %v3828
        %3830 = vmatprep.mubr.f32.mxu0 0.0
        %3831 = vmatmul.mubr.f32.gmra.mxu0 %v3574
        %v3832 = vpop.f32.mrf.mxu0
        %v3833 = vadd.f32 0.0, %v3832
        %v3834 = vpop.f32.mrf.mxu0
        %v3835 = vadd.f32 0.0, %v3834
        %3836 = vmatprep.mubr.f32.mxu0 0.0
        %3837 = vmatmul.mubr.f32.gmra.mxu0 %v3577
        %v3838 = vpop.f32.mrf.mxu0
        %v3839 = vadd.f32 0.0, %v3838
        %v3840 = vpop.f32.mrf.mxu0
        %v3841 = vadd.f32 0.0, %v3840
        %3842 = vmatprep.mubr.f32.mxu0 0.0
        %3843 = vmatmul.mubr.f32.gmra.mxu0 %v3580
        %v3844 = vpop.f32.mrf.mxu0
        %v3845 = vadd.f32 0.0, %v3844
        %v3846 = vpop.f32.mrf.mxu0
        %v3847 = vadd.f32 0.0, %v3846
        %3848 = vdwg.mxu0
        %3849 = vmatprep.subr.mxu0 0.0
        %3850 = vmatpush1.msra.mxu0 0.0
        %3851 = vmatprep.subr.mxu0 0.0
        %3852 = vmatpush1.msra.mxu0 0.0
        %3853 = vmatprep.subr.mxu0 0.0
        %3854 = vmatpush1.msra.mxu0 0.0
        %3855 = vmatprep.subr.mxu0 0.0
        %3856 = vmatpush1.msra.mxu0 0.0
        %3857 = vmatprep.subr.mxu0 0.0
        %3858 = vmatpush1.msra.mxu0 0.0
        %3859 = vmatprep.subr.mxu0 0.0
        %3860 = vmatpush1.msra.mxu0 0.0
        %3861 = vmatprep.subr.mxu0 0.0
        %3862 = vmatpush1.msra.mxu0 0.0
        %3863 = vmatprep.subr.mxu0 0.0
        %3864 = vmatpush1.msra.mxu0 0.0
        %3865 = vmatprep.subr.mxu0 0.0
        %3866 = vmatpush1.msra.mxu0 0.0
        %3867 = vmatprep.subr.mxu0 0.0
        %3868 = vmatpush1.msra.mxu0 0.0
        %3869 = vmatprep.subr.mxu0 0.0
        %3870 = vmatpush1.msra.mxu0 0.0
        %3871 = vmatprep.subr.mxu0 0.0
        %3872 = vmatpush1.msra.mxu0 0.0
        %3873 = vmatprep.subr.mxu0 %v3549
        %3874 = vmatpush1.msra.mxu0 %v3547
        %3875 = vmatprep.subr.mxu0 %v3517
        %3876 = vmatpush1.msra.mxu0 %v3515
        %3877 = vmatprep.subr.mxu0 %v3485
        %3878 = vmatpush1.msra.mxu0 %v3483
        %3879 = vmatprep.subr.mxu0 %v3453
        %3880 = vmatpush1.msra.mxu0 %v3451
        %3881 = vmatprep.subr.mxu0 0.0
        %3882 = vmatpush2.msra.mxu0 0.0
        %3883 = vmatprep.subr.mxu0 0.0
        %3884 = vmatpush2.msra.mxu0 0.0
        %3885 = vmatprep.subr.mxu0 0.0
        %3886 = vmatpush2.msra.mxu0 0.0
        %3887 = vmatprep.subr.mxu0 0.0
        %3888 = vmatpush2.msra.mxu0 0.0
        %3889 = vmatprep.subr.mxu0 0.0
        %3890 = vmatpush2.msra.mxu0 0.0
        %3891 = vmatprep.subr.mxu0 0.0
        %3892 = vmatpush2.msra.mxu0 0.0
        %3893 = vmatprep.subr.mxu0 0.0
        %3894 = vmatpush2.msra.mxu0 0.0
        %3895 = vmatprep.subr.mxu0 0.0
        %3896 = vmatpush2.msra.mxu0 0.0
        %3897 = vmatprep.subr.mxu0 0.0
        %3898 = vmatpush2.msra.mxu0 0.0
        %3899 = vmatprep.subr.mxu0 0.0
        %3900 = vmatpush2.msra.mxu0 0.0
        %3901 = vmatprep.subr.mxu0 0.0
        %3902 = vmatpush2.msra.mxu0 0.0
        %3903 = vmatprep.subr.mxu0 0.0
        %3904 = vmatpush2.msra.mxu0 0.0
        %3905 = vmatprep.subr.mxu0 0.0
        %3906 = vmatpush2.msra.mxu0 0.0
        %3907 = vmatprep.subr.mxu0 0.0
        %3908 = vmatpush2.msra.mxu0 0.0
        %3909 = vmatprep.subr.mxu0 0.0
        %3910 = vmatpush2.msra.mxu0 0.0
        %3911 = vmatprep.subr.mxu0 0.0
        %3912 = vmatpush2.msra.mxu0 0.0
        %3913 = vmatprep.mubr.f32.mxu0 0.0
        %3914 = vmatmul.mubr.f32.gmra.mxu0 %v3571
        %v3915 = vpop.f32.mrf.mxu0
        %v3916 = vadd.f32 0.0, %v3915
        %v3917 = vpop.f32.mrf.mxu0
        %v3918 = vadd.f32 0.0, %v3917
        %3919 = vmatprep.mubr.f32.mxu0 0.0
        %3920 = vmatmul.mubr.f32.gmra.mxu0 %v3574
        %v3921 = vpop.f32.mrf.mxu0
        %v3922 = vadd.f32 0.0, %v3921
        %v3923 = vpop.f32.mrf.mxu0
        %v3924 = vadd.f32 0.0, %v3923
        %3925 = vmatprep.mubr.f32.mxu0 0.0
        %3926 = vmatmul.mubr.f32.gmra.mxu0 %v3577
        %v3927 = vpop.f32.mrf.mxu0
        %v3928 = vadd.f32 0.0, %v3927
        %v3929 = vpop.f32.mrf.mxu0
        %v3930 = vadd.f32 0.0, %v3929
        %3931 = vmatprep.mubr.f32.mxu0 0.0
        %3932 = vmatmul.mubr.f32.gmra.mxu0 %v3580
        %v3933 = vpop.f32.mrf.mxu0
        %v3934 = vadd.f32 0.0, %v3933
        %v3935 = vpop.f32.mrf.mxu0
        %v3936 = vadd.f32 0.0, %v3935
        %3937 = vdwg.mxu0
        %3938 = vmatprep.subr.mxu0 0.0
        %3939 = vmatpush1.msra.mxu0 0.0
        %3940 = vmatprep.subr.mxu0 0.0
        %3941 = vmatpush1.msra.mxu0 0.0
        %3942 = vmatprep.subr.mxu0 0.0
        %3943 = vmatpush1.msra.mxu0 0.0
        %3944 = vmatprep.subr.mxu0 0.0
        %3945 = vmatpush1.msra.mxu0 0.0
        %3946 = vmatprep.subr.mxu0 0.0
        %3947 = vmatpush1.msra.mxu0 0.0
        %3948 = vmatprep.subr.mxu0 0.0
        %3949 = vmatpush1.msra.mxu0 0.0
        %3950 = vmatprep.subr.mxu0 0.0
        %3951 = vmatpush1.msra.mxu0 0.0
        %3952 = vmatprep.subr.mxu0 0.0
        %3953 = vmatpush1.msra.mxu0 0.0
        %3954 = vmatprep.subr.mxu0 0.0
        %3955 = vmatpush1.msra.mxu0 0.0
        %3956 = vmatprep.subr.mxu0 0.0
        %3957 = vmatpush1.msra.mxu0 0.0
        %3958 = vmatprep.subr.mxu0 0.0
        %3959 = vmatpush1.msra.mxu0 0.0
        %3960 = vmatprep.subr.mxu0 0.0
        %3961 = vmatpush1.msra.mxu0 0.0
        %3962 = vmatprep.subr.mxu0 %v3553
        %3963 = vmatpush1.msra.mxu0 %v3551
        %3964 = vmatprep.subr.mxu0 %v3521
        %3965 = vmatpush1.msra.mxu0 %v3519
        %3966 = vmatprep.subr.mxu0 %v3489
        %3967 = vmatpush1.msra.mxu0 %v3487
        %3968 = vmatprep.subr.mxu0 %v3457
        %3969 = vmatpush1.msra.mxu0 %v3455
        %3970 = vmatprep.subr.mxu0 0.0
        %3971 = vmatpush2.msra.mxu0 0.0
        %3972 = vmatprep.subr.mxu0 0.0
        %3973 = vmatpush2.msra.mxu0 0.0
        %3974 = vmatprep.subr.mxu0 0.0
        %3975 = vmatpush2.msra.mxu0 0.0
        %3976 = vmatprep.subr.mxu0 0.0
        %3977 = vmatpush2.msra.mxu0 0.0
        %3978 = vmatprep.subr.mxu0 0.0
        %3979 = vmatpush2.msra.mxu0 0.0
        %3980 = vmatprep.subr.mxu0 0.0
        %3981 = vmatpush2.msra.mxu0 0.0
        %3982 = vmatprep.subr.mxu0 0.0
        %3983 = vmatpush2.msra.mxu0 0.0
        %3984 = vmatprep.subr.mxu0 0.0
        %3985 = vmatpush2.msra.mxu0 0.0
        %3986 = vmatprep.subr.mxu0 0.0
        %3987 = vmatpush2.msra.mxu0 0.0
        %3988 = vmatprep.subr.mxu0 0.0
        %3989 = vmatpush2.msra.mxu0 0.0
        %3990 = vmatprep.subr.mxu0 0.0
        %3991 = vmatpush2.msra.mxu0 0.0
        %3992 = vmatprep.subr.mxu0 0.0
        %3993 = vmatpush2.msra.mxu0 0.0
        %3994 = vmatprep.subr.mxu0 0.0
        %3995 = vmatpush2.msra.mxu0 0.0
        %3996 = vmatprep.subr.mxu0 0.0
        %3997 = vmatpush2.msra.mxu0 0.0
        %3998 = vmatprep.subr.mxu0 0.0
        %3999 = vmatpush2.msra.mxu0 0.0
        %4000 = vmatprep.subr.mxu0 0.0
        %4001 = vmatpush2.msra.mxu0 0.0
        %4002 = vmatprep.mubr.f32.mxu0 0.0
        %4003 = vmatmul.mubr.f32.gmra.mxu0 %v3571
        %v4004 = vpop.f32.mrf.mxu0
        %v4005 = vadd.f32 0.0, %v4004
        %v4006 = vpop.f32.mrf.mxu0
        %v4007 = vadd.f32 0.0, %v4006
        %4008 = vmatprep.mubr.f32.mxu0 0.0
        %4009 = vmatmul.mubr.f32.gmra.mxu0 %v3574
        %v4010 = vpop.f32.mrf.mxu0
        %v4011 = vadd.f32 0.0, %v4010
        %v4012 = vpop.f32.mrf.mxu0
        %v4013 = vadd.f32 0.0, %v4012
        %4014 = vmatprep.mubr.f32.mxu0 0.0
        %4015 = vmatmul.mubr.f32.gmra.mxu0 %v3577
        %v4016 = vpop.f32.mrf.mxu0
        %v4017 = vadd.f32 0.0, %v4016
        %v4018 = vpop.f32.mrf.mxu0
        %v4019 = vadd.f32 0.0, %v4018
        %4020 = vmatprep.mubr.f32.mxu0 0.0
        %4021 = vmatmul.mubr.f32.gmra.mxu0 %v3580
        %v4022 = vpop.f32.mrf.mxu0
        %v4023 = vadd.f32 0.0, %v4022
        %v4024 = vpop.f32.mrf.mxu0
        %v4025 = vadd.f32 0.0, %v4024
        %4026 = vdwg.mxu0
        %4027 = vmatprep.subr.mxu0 0.0
        %4028 = vmatpush1.msra.mxu0 0.0
        %4029 = vmatprep.subr.mxu0 0.0
        %4030 = vmatpush1.msra.mxu0 0.0
        %4031 = vmatprep.subr.mxu0 0.0
        %4032 = vmatpush1.msra.mxu0 0.0
        %4033 = vmatprep.subr.mxu0 0.0
        %4034 = vmatpush1.msra.mxu0 0.0
        %4035 = vmatprep.subr.mxu0 0.0
        %4036 = vmatpush1.msra.mxu0 0.0
        %4037 = vmatprep.subr.mxu0 0.0
        %4038 = vmatpush1.msra.mxu0 0.0
        %4039 = vmatprep.subr.mxu0 0.0
        %4040 = vmatpush1.msra.mxu0 0.0
        %4041 = vmatprep.subr.mxu0 0.0
        %4042 = vmatpush1.msra.mxu0 0.0
        %4043 = vmatprep.subr.mxu0 0.0
        %4044 = vmatpush1.msra.mxu0 0.0
        %4045 = vmatprep.subr.mxu0 0.0
        %4046 = vmatpush1.msra.mxu0 0.0
        %4047 = vmatprep.subr.mxu0 0.0
        %4048 = vmatpush1.msra.mxu0 0.0
        %4049 = vmatprep.subr.mxu0 0.0
        %4050 = vmatpush1.msra.mxu0 0.0
        %4051 = vmatprep.subr.mxu0 %v3557
        %4052 = vmatpush1.msra.mxu0 %v3555
        %4053 = vmatprep.subr.mxu0 %v3525
        %4054 = vmatpush1.msra.mxu0 %v3523
        %4055 = vmatprep.subr.mxu0 %v3493
        %4056 = vmatpush1.msra.mxu0 %v3491
        %4057 = vmatprep.subr.mxu0 %v3461
        %4058 = vmatpush1.msra.mxu0 %v3459
        %4059 = vmatprep.subr.mxu0 0.0
        %4060 = vmatpush2.msra.mxu0 0.0
        %4061 = vmatprep.subr.mxu0 0.0
        %4062 = vmatpush2.msra.mxu0 0.0
        %4063 = vmatprep.subr.mxu0 0.0
        %4064 = vmatpush2.msra.mxu0 0.0
        %4065 = vmatprep.subr.mxu0 0.0
        %4066 = vmatpush2.msra.mxu0 0.0
        %4067 = vmatprep.subr.mxu0 0.0
        %4068 = vmatpush2.msra.mxu0 0.0
        %4069 = vmatprep.subr.mxu0 0.0
        %4070 = vmatpush2.msra.mxu0 0.0
        %4071 = vmatprep.subr.mxu0 0.0
        %4072 = vmatpush2.msra.mxu0 0.0
        %4073 = vmatprep.subr.mxu0 0.0
        %4074 = vmatpush2.msra.mxu0 0.0
        %4075 = vmatprep.subr.mxu0 0.0
        %4076 = vmatpush2.msra.mxu0 0.0
        %4077 = vmatprep.subr.mxu0 0.0
        %4078 = vmatpush2.msra.mxu0 0.0
        %4079 = vmatprep.subr.mxu0 0.0
        %4080 = vmatpush2.msra.mxu0 0.0
        %4081 = vmatprep.subr.mxu0 0.0
        %4082 = vmatpush2.msra.mxu0 0.0
        %4083 = vmatprep.subr.mxu0 0.0
        %4084 = vmatpush2.msra.mxu0 0.0
        %4085 = vmatprep.subr.mxu0 0.0
        %4086 = vmatpush2.msra.mxu0 0.0
        %4087 = vmatprep.subr.mxu0 0.0
        %4088 = vmatpush2.msra.mxu0 0.0
        %4089 = vmatprep.subr.mxu0 0.0
        %4090 = vmatpush2.msra.mxu0 0.0
        %4091 = vmatprep.mubr.f32.mxu0 0.0
        %4092 = vmatmul.mubr.f32.gmra.mxu0 %v3571
        %v4093 = vpop.f32.mrf.mxu0
        %v4094 = vadd.f32 0.0, %v4093
        %v4095 = vpop.f32.mrf.mxu0
        %v4096 = vadd.f32 0.0, %v4095
        %4097 = vmatprep.mubr.f32.mxu0 0.0
        %4098 = vmatmul.mubr.f32.gmra.mxu0 %v3574
        %v4099 = vpop.f32.mrf.mxu0
        %v4100 = vadd.f32 0.0, %v4099
        %v4101 = vpop.f32.mrf.mxu0
        %v4102 = vadd.f32 0.0, %v4101
        %4103 = vmatprep.mubr.f32.mxu0 0.0
        %4104 = vmatmul.mubr.f32.gmra.mxu0 %v3577
        %v4105 = vpop.f32.mrf.mxu0
        %v4106 = vadd.f32 0.0, %v4105
        %v4107 = vpop.f32.mrf.mxu0
        %v4108 = vadd.f32 0.0, %v4107
        %4109 = vmatprep.mubr.f32.mxu0 0.0
        %4110 = vmatmul.mubr.f32.gmra.mxu0 %v3580
        %v4111 = vpop.f32.mrf.mxu0
        %v4112 = vadd.f32 0.0, %v4111
        %v4113 = vpop.f32.mrf.mxu0
        %v4114 = vadd.f32 0.0, %v4113
        %4115 = vdwg.mxu0
        %4116 = vmatprep.subr.mxu0 0.0
        %4117 = vmatpush1.msra.mxu0 0.0
        %4118 = vmatprep.subr.mxu0 0.0
        %4119 = vmatpush1.msra.mxu0 0.0
        %4120 = vmatprep.subr.mxu0 0.0
        %4121 = vmatpush1.msra.mxu0 0.0
        %4122 = vmatprep.subr.mxu0 0.0
        %4123 = vmatpush1.msra.mxu0 0.0
        %4124 = vmatprep.subr.mxu0 0.0
        %4125 = vmatpush1.msra.mxu0 0.0
        %4126 = vmatprep.subr.mxu0 0.0
        %4127 = vmatpush1.msra.mxu0 0.0
        %4128 = vmatprep.subr.mxu0 0.0
        %4129 = vmatpush1.msra.mxu0 0.0
        %4130 = vmatprep.subr.mxu0 0.0
        %4131 = vmatpush1.msra.mxu0 0.0
        %4132 = vmatprep.subr.mxu0 0.0
        %4133 = vmatpush1.msra.mxu0 0.0
        %4134 = vmatprep.subr.mxu0 0.0
        %4135 = vmatpush1.msra.mxu0 0.0
        %4136 = vmatprep.subr.mxu0 0.0
        %4137 = vmatpush1.msra.mxu0 0.0
        %4138 = vmatprep.subr.mxu0 0.0
        %4139 = vmatpush1.msra.mxu0 0.0
        %4140 = vmatprep.subr.mxu0 %v3561
        %4141 = vmatpush1.msra.mxu0 %v3559
        %4142 = vmatprep.subr.mxu0 %v3529
        %4143 = vmatpush1.msra.mxu0 %v3527
        %4144 = vmatprep.subr.mxu0 %v3497
        %4145 = vmatpush1.msra.mxu0 %v3495
        %4146 = vmatprep.subr.mxu0 %v3465
        %4147 = vmatpush1.msra.mxu0 %v3463
        %4148 = vmatprep.subr.mxu0 0.0
        %4149 = vmatpush2.msra.mxu0 0.0
        %4150 = vmatprep.subr.mxu0 0.0
        %4151 = vmatpush2.msra.mxu0 0.0
        %4152 = vmatprep.subr.mxu0 0.0
        %4153 = vmatpush2.msra.mxu0 0.0
        %4154 = vmatprep.subr.mxu0 0.0
        %4155 = vmatpush2.msra.mxu0 0.0
        %4156 = vmatprep.subr.mxu0 0.0
        %4157 = vmatpush2.msra.mxu0 0.0
        %4158 = vmatprep.subr.mxu0 0.0
        %4159 = vmatpush2.msra.mxu0 0.0
        %4160 = vmatprep.subr.mxu0 0.0
        %4161 = vmatpush2.msra.mxu0 0.0
        %4162 = vmatprep.subr.mxu0 0.0
        %4163 = vmatpush2.msra.mxu0 0.0
        %4164 = vmatprep.subr.mxu0 0.0
        %4165 = vmatpush2.msra.mxu0 0.0
        %4166 = vmatprep.subr.mxu0 0.0
        %4167 = vmatpush2.msra.mxu0 0.0
        %4168 = vmatprep.subr.mxu0 0.0
        %4169 = vmatpush2.msra.mxu0 0.0
        %4170 = vmatprep.subr.mxu0 0.0
        %4171 = vmatpush2.msra.mxu0 0.0
        %4172 = vmatprep.subr.mxu0 0.0
        %4173 = vmatpush2.msra.mxu0 0.0
        %4174 = vmatprep.subr.mxu0 0.0
        %4175 = vmatpush2.msra.mxu0 0.0
        %4176 = vmatprep.subr.mxu0 0.0
        %4177 = vmatpush2.msra.mxu0 0.0
        %4178 = vmatprep.subr.mxu0 0.0
        %4179 = vmatpush2.msra.mxu0 0.0
        %4180 = vmatprep.mubr.f32.mxu0 0.0
        %4181 = vmatmul.mubr.f32.gmra.mxu0 %v3571
        %v4182 = vpop.f32.mrf.mxu0
        %v4183 = vadd.f32 0.0, %v4182
        %v4184 = vpop.f32.mrf.mxu0
        %v4185 = vadd.f32 0.0, %v4184
        %4186 = vmatprep.mubr.f32.mxu0 0.0
        %4187 = vmatmul.mubr.f32.gmra.mxu0 %v3574
        %v4188 = vpop.f32.mrf.mxu0
        %v4189 = vadd.f32 0.0, %v4188
        %v4190 = vpop.f32.mrf.mxu0
        %v4191 = vadd.f32 0.0, %v4190
        %4192 = vmatprep.mubr.f32.mxu0 0.0
        %4193 = vmatmul.mubr.f32.gmra.mxu0 %v3577
        %v4194 = vpop.f32.mrf.mxu0
        %v4195 = vadd.f32 0.0, %v4194
        %v4196 = vpop.f32.mrf.mxu0
        %v4197 = vadd.f32 0.0, %v4196
        %4198 = vmatprep.mubr.f32.mxu0 0.0
        %4199 = vmatmul.mubr.f32.gmra.mxu0 %v3580
        %v4200 = vpop.f32.mrf.mxu0
        %v4201 = vadd.f32 0.0, %v4200
        %v4202 = vpop.f32.mrf.mxu0
        %v4203 = vadd.f32 0.0, %v4202
        %4204 = vdwg.mxu0
        %4205 = vmatprep.subr.mxu0 0.0
        %4206 = vmatpush1.msra.mxu0 0.0
        %4207 = vmatprep.subr.mxu0 0.0
        %4208 = vmatpush1.msra.mxu0 0.0
        %4209 = vmatprep.subr.mxu0 0.0
        %4210 = vmatpush1.msra.mxu0 0.0
        %4211 = vmatprep.subr.mxu0 0.0
        %4212 = vmatpush1.msra.mxu0 0.0
        %4213 = vmatprep.subr.mxu0 0.0
        %4214 = vmatpush1.msra.mxu0 0.0
        %4215 = vmatprep.subr.mxu0 0.0
        %4216 = vmatpush1.msra.mxu0 0.0
        %4217 = vmatprep.subr.mxu0 0.0
        %4218 = vmatpush1.msra.mxu0 0.0
        %4219 = vmatprep.subr.mxu0 0.0
        %4220 = vmatpush1.msra.mxu0 0.0
        %4221 = vmatprep.subr.mxu0 0.0
        %4222 = vmatpush1.msra.mxu0 0.0
        %4223 = vmatprep.subr.mxu0 0.0
        %4224 = vmatpush1.msra.mxu0 0.0
        %4225 = vmatprep.subr.mxu0 0.0
        %4226 = vmatpush1.msra.mxu0 0.0
        %4227 = vmatprep.subr.mxu0 0.0
        %4228 = vmatpush1.msra.mxu0 0.0
        %4229 = vmatprep.subr.mxu0 %v3565
        %4230 = vmatpush1.msra.mxu0 %v3563
        %4231 = vmatprep.subr.mxu0 %v3533
        %4232 = vmatpush1.msra.mxu0 %v3531
        %4233 = vmatprep.subr.mxu0 %v3501
        %4234 = vmatpush1.msra.mxu0 %v3499
        %4235 = vmatprep.subr.mxu0 %v3469
        %4236 = vmatpush1.msra.mxu0 %v3467
        %4237 = vmatprep.subr.mxu0 0.0
        %4238 = vmatpush2.msra.mxu0 0.0
        %4239 = vmatprep.subr.mxu0 0.0
        %4240 = vmatpush2.msra.mxu0 0.0
        %4241 = vmatprep.subr.mxu0 0.0
        %4242 = vmatpush2.msra.mxu0 0.0
        %4243 = vmatprep.subr.mxu0 0.0
        %4244 = vmatpush2.msra.mxu0 0.0
        %4245 = vmatprep.subr.mxu0 0.0
        %4246 = vmatpush2.msra.mxu0 0.0
        %4247 = vmatprep.subr.mxu0 0.0
        %4248 = vmatpush2.msra.mxu0 0.0
        %4249 = vmatprep.subr.mxu0 0.0
        %4250 = vmatpush2.msra.mxu0 0.0
        %4251 = vmatprep.subr.mxu0 0.0
        %4252 = vmatpush2.msra.mxu0 0.0
        %4253 = vmatprep.subr.mxu0 0.0
        %4254 = vmatpush2.msra.mxu0 0.0
        %4255 = vmatprep.subr.mxu0 0.0
        %4256 = vmatpush2.msra.mxu0 0.0
        %4257 = vmatprep.subr.mxu0 0.0
        %4258 = vmatpush2.msra.mxu0 0.0
        %4259 = vmatprep.subr.mxu0 0.0
        %4260 = vmatpush2.msra.mxu0 0.0
        %4261 = vmatprep.subr.mxu0 0.0
        %4262 = vmatpush2.msra.mxu0 0.0
        %4263 = vmatprep.subr.mxu0 0.0
        %4264 = vmatpush2.msra.mxu0 0.0
        %4265 = vmatprep.subr.mxu0 0.0
        %4266 = vmatpush2.msra.mxu0 0.0
        %4267 = vmatprep.subr.mxu0 0.0
        %4268 = vmatpush2.msra.mxu0 0.0
        %4269 = vmatprep.mubr.f32.mxu0 0.0
        %4270 = vmatmul.mubr.f32.gmra.mxu0 %v3571
        %v4271 = vpop.f32.mrf.mxu0
        %v4272 = vadd.f32 0.0, %v4271
        %v4273 = vpop.f32.mrf.mxu0
        %v4274 = vadd.f32 0.0, %v4273
        %4275 = vmatprep.mubr.f32.mxu0 0.0
        %4276 = vmatmul.mubr.f32.gmra.mxu0 %v3574
        %v4277 = vpop.f32.mrf.mxu0
        %v4278 = vadd.f32 0.0, %v4277
        %v4279 = vpop.f32.mrf.mxu0
        %v4280 = vadd.f32 0.0, %v4279
        %4281 = vmatprep.mubr.f32.mxu0 0.0
        %4282 = vmatmul.mubr.f32.gmra.mxu0 %v3577
        %v4283 = vpop.f32.mrf.mxu0
        %v4284 = vadd.f32 0.0, %v4283
        %v4285 = vpop.f32.mrf.mxu0
        %v4286 = vadd.f32 0.0, %v4285
        %4287 = vmatprep.mubr.f32.mxu0 0.0
        %4288 = vmatmul.mubr.f32.gmra.mxu0 %v3580
        %v4289 = vpop.f32.mrf.mxu0
        %v4290 = vadd.f32 0.0, %v4289
        %v4291 = vpop.f32.mrf.mxu0
        %v4292 = vadd.f32 0.0, %v4291
        %4293 = vdwg.mxu0
        %v4294 = vxor.u32 %v3649, 2147483648
        %v4295 = vxor.u32 %v3651, 2147483648
        %v4296 = vxor.u32 %v3738, 2147483648
        %v4297 = vxor.u32 %v3740, 2147483648
        %v4298 = vxor.u32 %v3827, 2147483648
        %v4299 = vxor.u32 %v3829, 2147483648
        %v4300 = vxor.u32 %v3916, 2147483648
        %v4301 = vxor.u32 %v3918, 2147483648
        %v4302 = vxor.u32 %v4005, 2147483648
        %v4303 = vxor.u32 %v4007, 2147483648
        %v4304 = vxor.u32 %v4094, 2147483648
        %v4305 = vxor.u32 %v4096, 2147483648
        %v4306 = vxor.u32 %v4183, 2147483648
        %v4307 = vxor.u32 %v4185, 2147483648
        %v4308 = vxor.u32 %v4272, 2147483648
        %v4309 = vxor.u32 %v4274, 2147483648
        %v4310 = vxor.u32 %v3655, 2147483648
        %v4311 = vxor.u32 %v3657, 2147483648
        %v4312 = vxor.u32 %v3744, 2147483648
        %v4313 = vxor.u32 %v3746, 2147483648
        %v4314 = vxor.u32 %v3833, 2147483648
        %v4315 = vxor.u32 %v3835, 2147483648
        %v4316 = vxor.u32 %v3922, 2147483648
        %v4317 = vxor.u32 %v3924, 2147483648
        %v4318 = vxor.u32 %v4011, 2147483648
        %v4319 = vxor.u32 %v4013, 2147483648
        %v4320 = vxor.u32 %v4100, 2147483648
        %v4321 = vxor.u32 %v4102, 2147483648
        %v4322 = vxor.u32 %v4189, 2147483648
        %v4323 = vxor.u32 %v4191, 2147483648
        %v4324 = vxor.u32 %v4278, 2147483648
        %v4325 = vxor.u32 %v4280, 2147483648
        %v4326 = vxor.u32 %v3661, 2147483648
        %v4327 = vxor.u32 %v3663, 2147483648
        %v4328 = vxor.u32 %v3750, 2147483648
        %v4329 = vxor.u32 %v3752, 2147483648
        %v4330 = vxor.u32 %v3839, 2147483648
        %v4331 = vxor.u32 %v3841, 2147483648
        %v4332 = vxor.u32 %v3928, 2147483648
        %v4333 = vxor.u32 %v3930, 2147483648
        %v4334 = vxor.u32 %v4017, 2147483648
        %v4335 = vxor.u32 %v4019, 2147483648
        %v4336 = vxor.u32 %v4106, 2147483648
        %v4337 = vxor.u32 %v4108, 2147483648
        %v4338 = vxor.u32 %v4195, 2147483648
        %v4339 = vxor.u32 %v4197, 2147483648
        %v4340 = vxor.u32 %v4284, 2147483648
        %v4341 = vxor.u32 %v4286, 2147483648
        %v4342 = vxor.u32 %v3667, 2147483648
        %v4343 = vxor.u32 %v3669, 2147483648
        %v4344 = vxor.u32 %v3756, 2147483648
        %v4345 = vxor.u32 %v3758, 2147483648
        %v4346 = vxor.u32 %v3845, 2147483648
        %v4347 = vxor.u32 %v3847, 2147483648
        %v4348 = vxor.u32 %v3934, 2147483648
        %v4349 = vxor.u32 %v3936, 2147483648
        %v4350 = vxor.u32 %v4023, 2147483648
        %v4351 = vxor.u32 %v4025, 2147483648
        %v4352 = vxor.u32 %v4112, 2147483648
        %v4353 = vxor.u32 %v4114, 2147483648
        %v4354 = vxor.u32 %v4201, 2147483648
        %v4355 = vxor.u32 %v4203, 2147483648
        %v4356 = vxor.u32 %v4290, 2147483648
        %v4357 = vxor.u32 %v4292, 2147483648
        %v4358 = vmul.f32 %v4294, 1.442695
        %v4359 = vpow.pop %v4358
        %v4360 = vmul.f32 %v4295, 1.442695
        %v4361 = vpow.pop %v4360
        %v4362 = vmul.f32 %v4296, 1.442695
        %v4363 = vpow.pop %v4362
        %v4364 = vmul.f32 %v4297, 1.442695
        %v4365 = vpow.pop %v4364
        %v4366 = vmul.f32 %v4298, 1.442695
        %v4367 = vpow.pop %v4366
        %v4368 = vmul.f32 %v4299, 1.442695
        %v4369 = vpow.pop %v4368
        %v4370 = vmul.f32 %v4300, 1.442695
        %v4371 = vpow.pop %v4370
        %v4372 = vmul.f32 %v4301, 1.442695
        %v4373 = vpow.pop %v4372
        %v4374 = vmul.f32 %v4302, 1.442695
        %v4375 = vpow.pop %v4374
        %v4376 = vmul.f32 %v4303, 1.442695
        %v4377 = vpow.pop %v4376
        %v4378 = vmul.f32 %v4304, 1.442695
        %v4379 = vpow.pop %v4378
        %v4380 = vmul.f32 %v4305, 1.442695
        %v4381 = vpow.pop %v4380
        %v4382 = vmul.f32 %v4306, 1.442695
        %v4383 = vpow.pop %v4382
        %v4384 = vmul.f32 %v4307, 1.442695
        %v4385 = vpow.pop %v4384
        %v4386 = vmul.f32 %v4308, 1.442695
        %v4387 = vpow.pop %v4386
        %v4388 = vmul.f32 %v4309, 1.442695
        %v4389 = vpow.pop %v4388
        %v4390 = vmul.f32 %v4310, 1.442695
        %v4391 = vpow.pop %v4390
        %v4392 = vmul.f32 %v4311, 1.442695
        %v4393 = vpow.pop %v4392
        %v4394 = vmul.f32 %v4312, 1.442695
        %v4395 = vpow.pop %v4394
        %v4396 = vmul.f32 %v4313, 1.442695
        %v4397 = vpow.pop %v4396
        %v4398 = vmul.f32 %v4314, 1.442695
        %v4399 = vpow.pop %v4398
        %v4400 = vmul.f32 %v4315, 1.442695
        %v4401 = vpow.pop %v4400
        %v4402 = vmul.f32 %v4316, 1.442695
        %v4403 = vpow.pop %v4402
        %v4404 = vmul.f32 %v4317, 1.442695
        %v4405 = vpow.pop %v4404
        %v4406 = vmul.f32 %v4318, 1.442695
        %v4407 = vpow.pop %v4406
        %v4408 = vmul.f32 %v4319, 1.442695
        %v4409 = vpow.pop %v4408
        %v4410 = vmul.f32 %v4320, 1.442695
        %v4411 = vpow.pop %v4410
        %v4412 = vmul.f32 %v4321, 1.442695
        %v4413 = vpow.pop %v4412
        %v4414 = vmul.f32 %v4322, 1.442695
        %v4415 = vpow.pop %v4414
        %v4416 = vmul.f32 %v4323, 1.442695
        %v4417 = vpow.pop %v4416
        %v4418 = vmul.f32 %v4324, 1.442695
        %v4419 = vpow.pop %v4418
        %v4420 = vmul.f32 %v4325, 1.442695
        %v4421 = vpow.pop %v4420
        %v4422 = vmul.f32 %v4326, 1.442695
        %v4423 = vpow.pop %v4422
        %v4424 = vmul.f32 %v4327, 1.442695
        %v4425 = vpow.pop %v4424
        %v4426 = vmul.f32 %v4328, 1.442695
        %v4427 = vpow.pop %v4426
        %v4428 = vmul.f32 %v4329, 1.442695
        %v4429 = vpow.pop %v4428
        %v4430 = vmul.f32 %v4330, 1.442695
        %v4431 = vpow.pop %v4430
        %v4432 = vmul.f32 %v4331, 1.442695
        %v4433 = vpow.pop %v4432
        %v4434 = vmul.f32 %v4332, 1.442695
        %v4435 = vpow.pop %v4434
        %v4436 = vmul.f32 %v4333, 1.442695
        %v4437 = vpow.pop %v4436
        %v4438 = vmul.f32 %v4334, 1.442695
        %v4439 = vpow.pop %v4438
        %v4440 = vmul.f32 %v4335, 1.442695
        %v4441 = vpow.pop %v4440
        %v4442 = vmul.f32 %v4336, 1.442695
        %v4443 = vpow.pop %v4442
        %v4444 = vmul.f32 %v4337, 1.442695
        %v4445 = vpow.pop %v4444
        %v4446 = vmul.f32 %v4338, 1.442695
        %v4447 = vpow.pop %v4446
        %v4448 = vmul.f32 %v4339, 1.442695
        %v4449 = vpow.pop %v4448
        %v4450 = vmul.f32 %v4340, 1.442695
        %v4451 = vpow.pop %v4450
        %v4452 = vmul.f32 %v4341, 1.442695
        %v4453 = vpow.pop %v4452
        %v4454 = vmul.f32 %v4342, 1.442695
        %v4455 = vpow.pop %v4454
        %v4456 = vmul.f32 %v4343, 1.442695
        %v4457 = vpow.pop %v4456
        %v4458 = vmul.f32 %v4344, 1.442695
        %v4459 = vpow.pop %v4458
        %v4460 = vmul.f32 %v4345, 1.442695
        %v4461 = vpow.pop %v4460
        %v4462 = vmul.f32 %v4346, 1.442695
        %v4463 = vpow.pop %v4462
        %v4464 = vmul.f32 %v4347, 1.442695
        %v4465 = vpow.pop %v4464
        %v4466 = vmul.f32 %v4348, 1.442695
        %v4467 = vpow.pop %v4466
        %v4468 = vmul.f32 %v4349, 1.442695
        %v4469 = vpow.pop %v4468
        %v4470 = vmul.f32 %v4350, 1.442695
        %v4471 = vpow.pop %v4470
        %v4472 = vmul.f32 %v4351, 1.442695
        %v4473 = vpow.pop %v4472
        %v4474 = vmul.f32 %v4352, 1.442695
        %v4475 = vpow.pop %v4474
        %v4476 = vmul.f32 %v4353, 1.442695
        %v4477 = vpow.pop %v4476
        %v4478 = vmul.f32 %v4354, 1.442695
        %v4479 = vpow.pop %v4478
        %v4480 = vmul.f32 %v4355, 1.442695
        %v4481 = vpow.pop %v4480
        %v4482 = vmul.f32 %v4356, 1.442695
        %v4483 = vpow.pop %v4482
        %v4484 = vmul.f32 %v4357, 1.442695
        %v4485 = vpow.pop %v4484
        %v4486 = vadd.f32 %v4359, 1.0
        %v4487 = vadd.f32 %v4361, 1.0
        %v4488 = vadd.f32 %v4363, 1.0
        %v4489 = vadd.f32 %v4365, 1.0
        %v4490 = vadd.f32 %v4367, 1.0
        %v4491 = vadd.f32 %v4369, 1.0
        %v4492 = vadd.f32 %v4371, 1.0
        %v4493 = vadd.f32 %v4373, 1.0
        %v4494 = vadd.f32 %v4375, 1.0
        %v4495 = vadd.f32 %v4377, 1.0
        %v4496 = vadd.f32 %v4379, 1.0
        %v4497 = vadd.f32 %v4381, 1.0
        %v4498 = vadd.f32 %v4383, 1.0
        %v4499 = vadd.f32 %v4385, 1.0
        %v4500 = vadd.f32 %v4387, 1.0
        %v4501 = vadd.f32 %v4389, 1.0
        %v4502 = vadd.f32 %v4391, 1.0
        %v4503 = vadd.f32 %v4393, 1.0
        %v4504 = vadd.f32 %v4395, 1.0
        %v4505 = vadd.f32 %v4397, 1.0
        %v4506 = vadd.f32 %v4399, 1.0
        %v4507 = vadd.f32 %v4401, 1.0
        %v4508 = vadd.f32 %v4403, 1.0
        %v4509 = vadd.f32 %v4405, 1.0
        %v4510 = vadd.f32 %v4407, 1.0
        %v4511 = vadd.f32 %v4409, 1.0
        %v4512 = vadd.f32 %v4411, 1.0
        %v4513 = vadd.f32 %v4413, 1.0
        %v4514 = vadd.f32 %v4415, 1.0
        %v4515 = vadd.f32 %v4417, 1.0
        %v4516 = vadd.f32 %v4419, 1.0
        %v4517 = vadd.f32 %v4421, 1.0
        %v4518 = vadd.f32 %v4423, 1.0
        %v4519 = vadd.f32 %v4425, 1.0
        %v4520 = vadd.f32 %v4427, 1.0
        %v4521 = vadd.f32 %v4429, 1.0
        %v4522 = vadd.f32 %v4431, 1.0
        %v4523 = vadd.f32 %v4433, 1.0
        %v4524 = vadd.f32 %v4435, 1.0
        %v4525 = vadd.f32 %v4437, 1.0
        %v4526 = vadd.f32 %v4439, 1.0
        %v4527 = vadd.f32 %v4441, 1.0
        %v4528 = vadd.f32 %v4443, 1.0
        %v4529 = vadd.f32 %v4445, 1.0
        %v4530 = vadd.f32 %v4447, 1.0
        %v4531 = vadd.f32 %v4449, 1.0
        %v4532 = vadd.f32 %v4451, 1.0
        %v4533 = vadd.f32 %v4453, 1.0
        %v4534 = vadd.f32 %v4455, 1.0
        %v4535 = vadd.f32 %v4457, 1.0
        %v4536 = vadd.f32 %v4459, 1.0
        %v4537 = vadd.f32 %v4461, 1.0
        %v4538 = vadd.f32 %v4463, 1.0
        %v4539 = vadd.f32 %v4465, 1.0
        %v4540 = vadd.f32 %v4467, 1.0
        %v4541 = vadd.f32 %v4469, 1.0
        %v4542 = vadd.f32 %v4471, 1.0
        %v4543 = vadd.f32 %v4473, 1.0
        %v4544 = vadd.f32 %v4475, 1.0
        %v4545 = vadd.f32 %v4477, 1.0
        %v4546 = vadd.f32 %v4479, 1.0
        %v4547 = vadd.f32 %v4481, 1.0
        %v4548 = vadd.f32 %v4483, 1.0
        %v4549 = vadd.f32 %v4485, 1.0
        %v4550 = vrcp.pop %v4486
        %v4551 = vmul.f32 1.0, %v4550
        %v4552 = vrcp.pop %v4487
        %v4553 = vmul.f32 1.0, %v4552
        %v4554 = vrcp.pop %v4488
        %v4555 = vmul.f32 1.0, %v4554
        %v4556 = vrcp.pop %v4489
        %v4557 = vmul.f32 1.0, %v4556
        %v4558 = vrcp.pop %v4490
        %v4559 = vmul.f32 1.0, %v4558
        %v4560 = vrcp.pop %v4491
        %v4561 = vmul.f32 1.0, %v4560
        %v4562 = vrcp.pop %v4492
        %v4563 = vmul.f32 1.0, %v4562
        %v4564 = vrcp.pop %v4493
        %v4565 = vmul.f32 1.0, %v4564
        %v4566 = vrcp.pop %v4494
        %v4567 = vmul.f32 1.0, %v4566
        %v4568 = vrcp.pop %v4495
        %v4569 = vmul.f32 1.0, %v4568
        %v4570 = vrcp.pop %v4496
        %v4571 = vmul.f32 1.0, %v4570
        %v4572 = vrcp.pop %v4497
        %v4573 = vmul.f32 1.0, %v4572
        %v4574 = vrcp.pop %v4498
        %v4575 = vmul.f32 1.0, %v4574
        %v4576 = vrcp.pop %v4499
        %v4577 = vmul.f32 1.0, %v4576
        %v4578 = vrcp.pop %v4500
        %v4579 = vmul.f32 1.0, %v4578
        %v4580 = vrcp.pop %v4501
        %v4581 = vmul.f32 1.0, %v4580
        %v4582 = vrcp.pop %v4502
        %v4583 = vmul.f32 1.0, %v4582
        %v4584 = vrcp.pop %v4503
        %v4585 = vmul.f32 1.0, %v4584
        %v4586 = vrcp.pop %v4504
        %v4587 = vmul.f32 1.0, %v4586
        %v4588 = vrcp.pop %v4505
        %v4589 = vmul.f32 1.0, %v4588
        %v4590 = vrcp.pop %v4506
        %v4591 = vmul.f32 1.0, %v4590
        %v4592 = vrcp.pop %v4507
        %v4593 = vmul.f32 1.0, %v4592
        %v4594 = vrcp.pop %v4508
        %v4595 = vmul.f32 1.0, %v4594
        %v4596 = vrcp.pop %v4509
        %v4597 = vmul.f32 1.0, %v4596
        %v4598 = vrcp.pop %v4510
        %v4599 = vmul.f32 1.0, %v4598
        %v4600 = vrcp.pop %v4511
        %v4601 = vmul.f32 1.0, %v4600
        %v4602 = vrcp.pop %v4512
        %v4603 = vmul.f32 1.0, %v4602
        %v4604 = vrcp.pop %v4513
        %v4605 = vmul.f32 1.0, %v4604
        %v4606 = vrcp.pop %v4514
        %v4607 = vmul.f32 1.0, %v4606
        %v4608 = vrcp.pop %v4515
        %v4609 = vmul.f32 1.0, %v4608
        %v4610 = vrcp.pop %v4516
        %v4611 = vmul.f32 1.0, %v4610
        %v4612 = vrcp.pop %v4517
        %v4613 = vmul.f32 1.0, %v4612
        %v4614 = vrcp.pop %v4518
        %v4615 = vmul.f32 1.0, %v4614
        %v4616 = vrcp.pop %v4519
        %v4617 = vmul.f32 1.0, %v4616
        %v4618 = vrcp.pop %v4520
        %v4619 = vmul.f32 1.0, %v4618
        %v4620 = vrcp.pop %v4521
        %v4621 = vmul.f32 1.0, %v4620
        %v4622 = vrcp.pop %v4522
        %v4623 = vmul.f32 1.0, %v4622
        %v4624 = vrcp.pop %v4523
        %v4625 = vmul.f32 1.0, %v4624
        %v4626 = vrcp.pop %v4524
        %v4627 = vmul.f32 1.0, %v4626
        %v4628 = vrcp.pop %v4525
        %v4629 = vmul.f32 1.0, %v4628
        %v4630 = vrcp.pop %v4526
        %v4631 = vmul.f32 1.0, %v4630
        %v4632 = vrcp.pop %v4527
        %v4633 = vmul.f32 1.0, %v4632
        %v4634 = vrcp.pop %v4528
        %v4635 = vmul.f32 1.0, %v4634
        %v4636 = vrcp.pop %v4529
        %v4637 = vmul.f32 1.0, %v4636
        %v4638 = vrcp.pop %v4530
        %v4639 = vmul.f32 1.0, %v4638
        %v4640 = vrcp.pop %v4531
        %v4641 = vmul.f32 1.0, %v4640
        %v4642 = vrcp.pop %v4532
        %v4643 = vmul.f32 1.0, %v4642
        %v4644 = vrcp.pop %v4533
        %v4645 = vmul.f32 1.0, %v4644
        %v4646 = vrcp.pop %v4534
        %v4647 = vmul.f32 1.0, %v4646
        %v4648 = vrcp.pop %v4535
        %v4649 = vmul.f32 1.0, %v4648
        %v4650 = vrcp.pop %v4536
        %v4651 = vmul.f32 1.0, %v4650
        %v4652 = vrcp.pop %v4537
        %v4653 = vmul.f32 1.0, %v4652
        %v4654 = vrcp.pop %v4538
        %v4655 = vmul.f32 1.0, %v4654
        %v4656 = vrcp.pop %v4539
        %v4657 = vmul.f32 1.0, %v4656
        %v4658 = vrcp.pop %v4540
        %v4659 = vmul.f32 1.0, %v4658
        %v4660 = vrcp.pop %v4541
        %v4661 = vmul.f32 1.0, %v4660
        %v4662 = vrcp.pop %v4542
        %v4663 = vmul.f32 1.0, %v4662
        %v4664 = vrcp.pop %v4543
        %v4665 = vmul.f32 1.0, %v4664
        %v4666 = vrcp.pop %v4544
        %v4667 = vmul.f32 1.0, %v4666
        %v4668 = vrcp.pop %v4545
        %v4669 = vmul.f32 1.0, %v4668
        %v4670 = vrcp.pop %v4546
        %v4671 = vmul.f32 1.0, %v4670
        %v4672 = vrcp.pop %v4547
        %v4673 = vmul.f32 1.0, %v4672
        %v4674 = vrcp.pop %v4548
        %v4675 = vmul.f32 1.0, %v4674
        %v4676 = vrcp.pop %v4549
        %v4677 = vmul.f32 1.0, %v4676
        %v4678 = vlaneseq
        %v4679 = vshrl.u32 %v4678, 7
        %v4680 = vadd.s32 %v4679, 8
        %v4681 = vadd.s32 %v4679, 16
        %v4682 = vadd.s32 %v4679, 24
        %vm4683 = vcmp.lt.s32.totalorder %v4679, 27
        %vm4684 = vcmp.lt.s32.totalorder %v4680, 27
        %vm4685 = vcmp.lt.s32.totalorder %v4681, 27
        %vm4686 = vcmp.lt.s32.totalorder %v4682, 27
        %vm4687 = vcmp.lt.s32.totalorder %v4679, 30
        %vm4688 = vcmp.lt.s32.totalorder %v4680, 30
        %vm4689 = vcmp.lt.s32.totalorder %v4681, 30
        %vm4690 = vcmp.lt.s32.totalorder %v4682, 30
        %v4691 = vsel %vm4687, %v4551, 0.0
        %v4692 = vsel %vm4687, %v4553, 0.0
        %v4693 = vsel %vm4687, %v4555, 0.0
        %v4694 = vsel %vm4687, %v4557, 0.0
        %v4695 = vsel %vm4687, %v4559, 0.0
        %v4696 = vsel %vm4687, %v4561, 0.0
        %v4697 = vsel %vm4687, %v4563, 0.0
        %v4698 = vsel %vm4687, %v4565, 0.0
        %v4699 = vsel %vm4687, %v4567, 0.0
        %v4700 = vsel %vm4687, %v4569, 0.0
        %v4701 = vsel %vm4687, %v4571, 0.0
        %v4702 = vsel %vm4687, %v4573, 0.0
        %v4703 = vsel %vm4687, %v4575, 0.0
        %v4704 = vsel %vm4687, %v4577, 0.0
        %v4705 = vsel %vm4687, %v4579, 0.0
        %v4706 = vsel %vm4687, %v4581, 0.0
        %v4707 = vsel %vm4688, %v4583, 0.0
        %v4708 = vsel %vm4688, %v4585, 0.0
        %v4709 = vsel %vm4688, %v4587, 0.0
        %v4710 = vsel %vm4688, %v4589, 0.0
        %v4711 = vsel %vm4688, %v4591, 0.0
        %v4712 = vsel %vm4688, %v4593, 0.0
        %v4713 = vsel %vm4688, %v4595, 0.0
        %v4714 = vsel %vm4688, %v4597, 0.0
        %v4715 = vsel %vm4688, %v4599, 0.0
        %v4716 = vsel %vm4688, %v4601, 0.0
        %v4717 = vsel %vm4688, %v4603, 0.0
        %v4718 = vsel %vm4688, %v4605, 0.0
        %v4719 = vsel %vm4688, %v4607, 0.0
        %v4720 = vsel %vm4688, %v4609, 0.0
        %v4721 = vsel %vm4688, %v4611, 0.0
        %v4722 = vsel %vm4688, %v4613, 0.0
        %v4723 = vsel %vm4689, %v4615, 0.0
        %v4724 = vsel %vm4689, %v4617, 0.0
        %v4725 = vsel %vm4689, %v4619, 0.0
        %v4726 = vsel %vm4689, %v4621, 0.0
        %v4727 = vsel %vm4689, %v4623, 0.0
        %v4728 = vsel %vm4689, %v4625, 0.0
        %v4729 = vsel %vm4689, %v4627, 0.0
        %v4730 = vsel %vm4689, %v4629, 0.0
        %v4731 = vsel %vm4689, %v4631, 0.0
        %v4732 = vsel %vm4689, %v4633, 0.0
        %v4733 = vsel %vm4689, %v4635, 0.0
        %v4734 = vsel %vm4689, %v4637, 0.0
        %v4735 = vsel %vm4689, %v4639, 0.0
        %v4736 = vsel %vm4689, %v4641, 0.0
        %v4737 = vsel %vm4689, %v4643, 0.0
        %v4738 = vsel %vm4689, %v4645, 0.0
        %v4739 = vsel %vm4690, %v4647, 0.0
        %v4740 = vsel %vm4690, %v4649, 0.0
        %v4741 = vsel %vm4690, %v4651, 0.0
        %v4742 = vsel %vm4690, %v4653, 0.0
        %v4743 = vsel %vm4690, %v4655, 0.0
        %v4744 = vsel %vm4690, %v4657, 0.0
        %v4745 = vsel %vm4690, %v4659, 0.0
        %v4746 = vsel %vm4690, %v4661, 0.0
        %v4747 = vsel %vm4690, %v4663, 0.0
        %v4748 = vsel %vm4690, %v4665, 0.0
        %v4749 = vsel %vm4690, %v4667, 0.0
        %v4750 = vsel %vm4690, %v4669, 0.0
        %v4751 = vsel %vm4690, %v4671, 0.0
        %v4752 = vsel %vm4690, %v4673, 0.0
        %v4753 = vsel %vm4690, %v4675, 0.0
        %v4754 = vsel %vm4690, %v4677, 0.0
        %v4755 = vsel %vm4683, %v3439, %v4691
        %v4756 = vsel %vm4683, %v3441, %v4692
        %v4757 = vsel %vm4683, %v3443, %v4693
        %v4758 = vsel %vm4683, %v3445, %v4694
        %v4759 = vsel %vm4683, %v3447, %v4695
        %v4760 = vsel %vm4683, %v3449, %v4696
        %v4761 = vsel %vm4683, %v3451, %v4697
        %v4762 = vsel %vm4683, %v3453, %v4698
        %v4763 = vsel %vm4683, %v3455, %v4699
        %v4764 = vsel %vm4683, %v3457, %v4700
        %v4765 = vsel %vm4683, %v3459, %v4701
        %v4766 = vsel %vm4683, %v3461, %v4702
        %v4767 = vsel %vm4683, %v3463, %v4703
        %v4768 = vsel %vm4683, %v3465, %v4704
        %v4769 = vsel %vm4683, %v3467, %v4705
        %v4770 = vsel %vm4683, %v3469, %v4706
        %v4771 = vsel %vm4684, %v3471, %v4707
        %v4772 = vsel %vm4684, %v3473, %v4708
        %v4773 = vsel %vm4684, %v3475, %v4709
        %v4774 = vsel %vm4684, %v3477, %v4710
        %v4775 = vsel %vm4684, %v3479, %v4711
        %v4776 = vsel %vm4684, %v3481, %v4712
        %v4777 = vsel %vm4684, %v3483, %v4713
        %v4778 = vsel %vm4684, %v3485, %v4714
        %v4779 = vsel %vm4684, %v3487, %v4715
        %v4780 = vsel %vm4684, %v3489, %v4716
        %v4781 = vsel %vm4684, %v3491, %v4717
        %v4782 = vsel %vm4684, %v3493, %v4718
        %v4783 = vsel %vm4684, %v3495, %v4719
        %v4784 = vsel %vm4684, %v3497, %v4720
        %v4785 = vsel %vm4684, %v3499, %v4721
        %v4786 = vsel %vm4684, %v3501, %v4722
        %v4787 = vsel %vm4685, %v3503, %v4723
        %v4788 = vsel %vm4685, %v3505, %v4724
        %v4789 = vsel %vm4685, %v3507, %v4725
        %v4790 = vsel %vm4685, %v3509, %v4726
        %v4791 = vsel %vm4685, %v3511, %v4727
        %v4792 = vsel %vm4685, %v3513, %v4728
        %v4793 = vsel %vm4685, %v3515, %v4729
        %v4794 = vsel %vm4685, %v3517, %v4730
        %v4795 = vsel %vm4685, %v3519, %v4731
        %v4796 = vsel %vm4685, %v3521, %v4732
        %v4797 = vsel %vm4685, %v3523, %v4733
        %v4798 = vsel %vm4685, %v3525, %v4734
        %v4799 = vsel %vm4685, %v3527, %v4735
        %v4800 = vsel %vm4685, %v3529, %v4736
        %v4801 = vsel %vm4685, %v3531, %v4737
        %v4802 = vsel %vm4685, %v3533, %v4738
        %v4803 = vsel %vm4686, %v3535, %v4739
        %v4804 = vsel %vm4686, %v3537, %v4740
        %v4805 = vsel %vm4686, %v3539, %v4741
        %v4806 = vsel %vm4686, %v3541, %v4742
        %v4807 = vsel %vm4686, %v3543, %v4743
        %v4808 = vsel %vm4686, %v3545, %v4744
        %v4809 = vsel %vm4686, %v3547, %v4745
        %v4810 = vsel %vm4686, %v3549, %v4746
        %v4811 = vsel %vm4686, %v3551, %v4747
        %v4812 = vsel %vm4686, %v3553, %v4748
        %v4813 = vsel %vm4686, %v3555, %v4749
        %v4814 = vsel %vm4686, %v3557, %v4750
        %v4815 = vsel %vm4686, %v3559, %v4751
        %v4816 = vsel %vm4686, %v3561, %v4752
        %v4817 = vsel %vm4686, %v3563, %v4753
        %v4818 = vsel %vm4686, %v3565, %v4754
        %v4819 = vpack.c.bf16 %v4771, %v4755
        %v4820 = vpack.c.bf16 %v4772, %v4756
        %v4821 = vpack.c.bf16 %v4773, %v4757
        %v4822 = vpack.c.bf16 %v4774, %v4758
        %v4823 = vpack.c.bf16 %v4775, %v4759
        %v4824 = vpack.c.bf16 %v4776, %v4760
        %v4825 = vpack.c.bf16 %v4777, %v4761
        %v4826 = vpack.c.bf16 %v4778, %v4762
        %v4827 = vpack.c.bf16 %v4779, %v4763
        %v4828 = vpack.c.bf16 %v4780, %v4764
        %v4829 = vpack.c.bf16 %v4781, %v4765
        %v4830 = vpack.c.bf16 %v4782, %v4766
        %v4831 = vpack.c.bf16 %v4783, %v4767
        %v4832 = vpack.c.bf16 %v4784, %v4768
        %v4833 = vpack.c.bf16 %v4785, %v4769
        %v4834 = vpack.c.bf16 %v4786, %v4770
        %v4835 = vpack.c.bf16 %v4803, %v4787
        %v4836 = vpack.c.bf16 %v4804, %v4788
        %v4837 = vpack.c.bf16 %v4805, %v4789
        %v4838 = vpack.c.bf16 %v4806, %v4790
        %v4839 = vpack.c.bf16 %v4807, %v4791
        %v4840 = vpack.c.bf16 %v4808, %v4792
        %v4841 = vpack.c.bf16 %v4809, %v4793
        %v4842 = vpack.c.bf16 %v4810, %v4794
        %v4843 = vpack.c.bf16 %v4811, %v4795
        %v4844 = vpack.c.bf16 %v4812, %v4796
        %v4845 = vpack.c.bf16 %v4813, %v4797
        %v4846 = vpack.c.bf16 %v4814, %v4798
        %v4847 = vpack.c.bf16 %v4815, %v4799
        %v4848 = vpack.c.bf16 %v4816, %v4800
        %v4849 = vpack.c.bf16 %v4817, %v4801
        %v4850 = vpack.c.bf16 %v4818, %v4802
        %v4883 = vunpack.c.l.b16 %v4819
        %v4884 = vunpack.c.l.b16 %v4820
        %v4885 = vunpack.c.l.b16 %v4821
        %v4886 = vunpack.c.l.b16 %v4822
        %v4887 = vunpack.c.l.b16 %v4823
        %v4888 = vunpack.c.l.b16 %v4824
        %v4889 = vunpack.c.l.b16 %v4825
        %v4890 = vunpack.c.l.b16 %v4826
        %v4891 = vunpack.c.l.b16 %v4827
        %v4892 = vunpack.c.l.b16 %v4828
        %v4893 = vunpack.c.l.b16 %v4829
        %v4894 = vunpack.c.l.b16 %v4830
        %v4895 = vunpack.c.l.b16 %v4831
        %v4896 = vunpack.c.l.b16 %v4832
        %v4897 = vunpack.c.l.b16 %v4833
        %v4898 = vunpack.c.l.b16 %v4834
        %v4899 = vunpack.c.h.b16 %v4819
        %v4900 = vunpack.c.h.b16 %v4820
        %v4901 = vunpack.c.h.b16 %v4821
        %v4902 = vunpack.c.h.b16 %v4822
        %v4903 = vunpack.c.h.b16 %v4823
        %v4904 = vunpack.c.h.b16 %v4824
        %v4905 = vunpack.c.h.b16 %v4825
        %v4906 = vunpack.c.h.b16 %v4826
        %v4907 = vunpack.c.h.b16 %v4827
        %v4908 = vunpack.c.h.b16 %v4828
        %v4909 = vunpack.c.h.b16 %v4829
        %v4910 = vunpack.c.h.b16 %v4830
        %v4911 = vunpack.c.h.b16 %v4831
        %v4912 = vunpack.c.h.b16 %v4832
        %v4913 = vunpack.c.h.b16 %v4833
        %v4914 = vunpack.c.h.b16 %v4834
        %v4915 = vunpack.c.l.b16 %v4835
        %v4916 = vunpack.c.l.b16 %v4836
        %v4917 = vunpack.c.l.b16 %v4837
        %v4918 = vunpack.c.l.b16 %v4838
        %v4919 = vunpack.c.l.b16 %v4839
        %v4920 = vunpack.c.l.b16 %v4840
        %v4921 = vunpack.c.l.b16 %v4841
        %v4922 = vunpack.c.l.b16 %v4842
        %v4923 = vunpack.c.l.b16 %v4843
        %v4924 = vunpack.c.l.b16 %v4844
        %v4925 = vunpack.c.l.b16 %v4845
        %v4926 = vunpack.c.l.b16 %v4846
        %v4927 = vunpack.c.l.b16 %v4847
        %v4928 = vunpack.c.l.b16 %v4848
        %v4929 = vunpack.c.l.b16 %v4849
        %v4930 = vunpack.c.l.b16 %v4850
        %v4931 = vunpack.c.h.b16 %v4835
        %v4932 = vunpack.c.h.b16 %v4836
        %v4933 = vunpack.c.h.b16 %v4837
        %v4934 = vunpack.c.h.b16 %v4838
        %v4935 = vunpack.c.h.b16 %v4839
        %v4936 = vunpack.c.h.b16 %v4840
        %v4937 = vunpack.c.h.b16 %v4841
        %v4938 = vunpack.c.h.b16 %v4842
        %v4939 = vunpack.c.h.b16 %v4843
        %v4940 = vunpack.c.h.b16 %v4844
        %v4941 = vunpack.c.h.b16 %v4845
        %v4942 = vunpack.c.h.b16 %v4846
        %v4943 = vunpack.c.h.b16 %v4847
        %v4944 = vunpack.c.h.b16 %v4848
        %v4945 = vunpack.c.h.b16 %v4849
        %v4946 = vunpack.c.h.b16 %v4850
        %v4947 = vpack.c.b16 %v4884, %v4883
        %v4948 = vpack.c.b16 %v4886, %v4885
        %v4949 = vpack.c.b16 %v4888, %v4887
        %v4950 = vpack.c.b16 %v4890, %v4889
        %v4951 = vpack.c.b16 %v4892, %v4891
        %v4952 = vpack.c.b16 %v4894, %v4893
        %v4953 = vpack.c.b16 %v4896, %v4895
        %v4954 = vpack.c.b16 %v4898, %v4897
        %v4955 = vpack.c.b16 %v4900, %v4899
        %v4956 = vpack.c.b16 %v4902, %v4901
        %v4957 = vpack.c.b16 %v4904, %v4903
        %v4958 = vpack.c.b16 %v4906, %v4905
        %v4959 = vpack.c.b16 %v4908, %v4907
        %v4960 = vpack.c.b16 %v4910, %v4909
        %v4961 = vpack.c.b16 %v4912, %v4911
        %v4962 = vpack.c.b16 %v4914, %v4913
        %v4963 = vpack.c.b16 %v4916, %v4915
        %v4964 = vpack.c.b16 %v4918, %v4917
        %v4965 = vpack.c.b16 %v4920, %v4919
        %v4966 = vpack.c.b16 %v4922, %v4921
        %v4967 = vpack.c.b16 %v4924, %v4923
        %v4968 = vpack.c.b16 %v4926, %v4925
        %v4969 = vpack.c.b16 %v4928, %v4927
        %v4970 = vpack.c.b16 %v4930, %v4929
        %v4971 = vpack.c.b16 %v4932, %v4931
        %v4972 = vpack.c.b16 %v4934, %v4933
        %v4973 = vpack.c.b16 %v4936, %v4935
        %v4974 = vpack.c.b16 %v4938, %v4937
        %v4975 = vpack.c.b16 %v4940, %v4939
        %v4976 = vpack.c.b16 %v4942, %v4941
        %v4977 = vpack.c.b16 %v4944, %v4943
        %v4978 = vpack.c.b16 %v4946, %v4945
        %5011 = vst [vmem:[%s133] sm:$0xff] %v4947
        %5012 = vst [vmem:[%s133 + $0x8] sm:$0xff] %v4948
        %5013 = vst [vmem:[%s133 + $0x10] sm:$0xff] %v4949
        %5014 = vst [vmem:[%s133 + $0x18] sm:$0xff] %v4950
        %5015 = vst [vmem:[%s133 + $0x20] sm:$0xff] %v4951
        %5016 = vst [vmem:[%s133 + $0x28] sm:$0xff] %v4952
        %5017 = vst [vmem:[%s133 + $0x30] sm:$0xff] %v4953
        %5018 = vst [vmem:[%s133 + $0x38] sm:$0xff] %v4954
        %5019 = vst [vmem:[%s133 + $0x40] sm:$0xff] %v4955
        %5020 = vst [vmem:[%s133 + $0x48] sm:$0xff] %v4956
        %5021 = vst [vmem:[%s133 + $0x50] sm:$0xff] %v4957
        %5022 = vst [vmem:[%s133 + $0x58] sm:$0xff] %v4958
        %5023 = vst [vmem:[%s133 + $0x60] sm:$0xff] %v4959
        %5024 = vst [vmem:[%s133 + $0x68] sm:$0xff] %v4960
        %5025 = vst [vmem:[%s133 + $0x70] sm:$0xff] %v4961
        %5026 = vst [vmem:[%s133 + $0x78] sm:$0xff] %v4962
        %5027 = vst [vmem:[%s133 + $0x80] sm:$0xff] %v4963
        %5028 = vst [vmem:[%s133 + $0x88] sm:$0xff] %v4964
        %5029 = vst [vmem:[%s133 + $0x90] sm:$0xff] %v4965
        %5030 = vst [vmem:[%s133 + $0x98] sm:$0xff] %v4966
        %5031 = vst [vmem:[%s133 + $0xa0] sm:$0xff] %v4967
        %5032 = vst [vmem:[%s133 + $0xa8] sm:$0xff] %v4968
        %5033 = vst [vmem:[%s133 + $0xb0] sm:$0xff] %v4969
        %5034 = vst [vmem:[%s133 + $0xb8] sm:$0xff] %v4970
        %5035 = vst [vmem:[%s133 + $0xc0] sm:$0xff] %v4971
        %5036 = vst [vmem:[%s133 + $0xc8] sm:$0xff] %v4972
        %5037 = vst [vmem:[%s133 + $0xd0] sm:$0xff] %v4973
        %5038 = vst [vmem:[%s133 + $0xd8] sm:$0xff] %v4974
        %5039 = vst [vmem:[%s133 + $0xe0] sm:$0xff] %v4975
        %5040 = vst [vmem:[%s133 + $0xe8] sm:$0xff] %v4976
        %5041 = vst [vmem:[%s133 + $0xf0] sm:$0xff] %v4977
        %5042 = vst [vmem:[%s133 + $0xf8] sm:$0xff] %v4978
        %s5043 = sand.u32 %s68, 1
        %s5044 = sand.u32 %s68, 1
        %s5045 = smul.addr %s5044, 256
        %s5046 = scalar_lea.vmem [#allocation2], %s5045
        // Predicated region
        $region29: #{mlp_forward.1} parent=27 // pred_check
          %p5047 = pneg %p78
        $region30: #{mlp_forward.1} parent=27 // pred_check_branch
          %5049 = sbr.rel (%p5047) target = $region32
        $region31: #{mlp_forward.1} parent=27 // pred_region
          %s5050 = smul.u32 16, %s13
          %s5051 = smul.addr %s5050, 4
          %s5052 = scalar_lea.vmem %s2, %s5051
          // Predicated region
          $region33: #{mlp_forward.1} parent=31 // pred_check
            _
          $region34: #{mlp_forward.1} parent=31 // pred_check_branch
            %5054 = sbr.rel (0) target = $region36
          $region35: #{mlp_forward.1} parent=31 // pred_region
            // Predicated region
            $region37: #{mlp_forward.1} parent=35 // pred_check
              _
            $region38: #{mlp_forward.1} parent=35 // pred_check_branch
              %5056 = sbr.rel (0) target = $region40
            $region39: #{mlp_forward.1} parent=35 // pred_region
              loop: start=0, step=1, limit=1
              $region41: #{mlp_forward.1} parent=39 // loop_pre_header
                _
              $region42: #{mlp_forward.1} parent=39 // loop_header
                %s5058 = sphi 0, %s5062
                %p5059 = scmp.ge.s32.totalorder %s5058, 1
                %s5063 = sphi %s5046, %s5046
                %s5064 = sphi %s5052, %s5052
              $region43: #{mlp_forward.1} parent=39 // loop_header_branch
                %5061 = sbr.rel (%p5059) target = $region47
              $region44: #{mlp_forward.1} parent=39 // loop_body
                %v5065 = vld [vmem:[%s5063] sm:$0xff]
                %5066 = vst [vmem:[%s5064] sm:$0xff] %v5065
                %v5067 = vld [vmem:[%s5063 + $0x8] sm:$0xff]
                %5068 = vst [vmem:[%s5064 + $0x8] sm:$0xff] %v5067
                %v5069 = vld [vmem:[%s5063 + $0x10] sm:$0xff]
                %5070 = vst [vmem:[%s5064 + $0x10] sm:$0xff] %v5069
                %v5071 = vld [vmem:[%s5063 + $0x18] sm:$0xff]
                %5072 = vst [vmem:[%s5064 + $0x18] sm:$0xff] %v5071
                %v5073 = vld [vmem:[%s5063 + $0x20] sm:$0xff]
                %5074 = vst [vmem:[%s5064 + $0x20] sm:$0xff] %v5073
                %v5075 = vld [vmem:[%s5063 + $0x28] sm:$0xff]
                %5076 = vst [vmem:[%s5064 + $0x28] sm:$0xff] %v5075
                %v5077 = vld [vmem:[%s5063 + $0x30] sm:$0xff]
                %5078 = vst [vmem:[%s5064 + $0x30] sm:$0xff] %v5077
                %v5079 = vld [vmem:[%s5063 + $0x38] sm:$0xff]
                %5080 = vst [vmem:[%s5064 + $0x38] sm:$0xff] %v5079
                %v5081 = vld [vmem:[%s5063 + $0x40] sm:$0xff]
                %5082 = vst [vmem:[%s5064 + $0x80] sm:$0xff] %v5081
                %v5083 = vld [vmem:[%s5063 + $0x48] sm:$0xff]
                %5084 = vst [vmem:[%s5064 + $0x88] sm:$0xff] %v5083
                %v5085 = vld [vmem:[%s5063 + $0x50] sm:$0xff]
                %5086 = vst [vmem:[%s5064 + $0x90] sm:$0xff] %v5085
                %v5087 = vld [vmem:[%s5063 + $0x58] sm:$0xff]
                %5088 = vst [vmem:[%s5064 + $0x98] sm:$0xff] %v5087
                %v5089 = vld [vmem:[%s5063 + $0x60] sm:$0xff]
                %5090 = vst [vmem:[%s5064 + $0xa0] sm:$0xff] %v5089
                %v5091 = vld [vmem:[%s5063 + $0x68] sm:$0xff]
                %5092 = vst [vmem:[%s5064 + $0xa8] sm:$0xff] %v5091
                %v5093 = vld [vmem:[%s5063 + $0x70] sm:$0xff]
                %5094 = vst [vmem:[%s5064 + $0xb0] sm:$0xff] %v5093
                %v5095 = vld [vmem:[%s5063 + $0x78] sm:$0xff]
                %5096 = vst [vmem:[%s5064 + $0xb8] sm:$0xff] %v5095
                %v5097 = vld [vmem:[%s5063 + $0x80] sm:$0xff]
                %5098 = vst [vmem:[%s5064 + $0x100] sm:$0xff] %v5097
                %v5099 = vld [vmem:[%s5063 + $0x88] sm:$0xff]
                %5100 = vst [vmem:[%s5064 + $0x108] sm:$0xff] %v5099
                %v5101 = vld [vmem:[%s5063 + $0x90] sm:$0xff]
                %5102 = vst [vmem:[%s5064 + $0x110] sm:$0xff] %v5101
                %v5103 = vld [vmem:[%s5063 + $0x98] sm:$0xff]
                %5104 = vst [vmem:[%s5064 + $0x118] sm:$0xff] %v5103
                %v5105 = vld [vmem:[%s5063 + $0xa0] sm:$0xff]
                %5106 = vst [vmem:[%s5064 + $0x120] sm:$0xff] %v5105
                %v5107 = vld [vmem:[%s5063 + $0xa8] sm:$0xff]
                %5108 = vst [vmem:[%s5064 + $0x128] sm:$0xff] %v5107
                %v5109 = vld [vmem:[%s5063 + $0xb0] sm:$0xff]
                %5110 = vst [vmem:[%s5064 + $0x130] sm:$0xff] %v5109
                %v5111 = vld [vmem:[%s5063 + $0xb8] sm:$0xff]
                %5112 = vst [vmem:[%s5064 + $0x138] sm:$0xff] %v5111
                %v5113 = vld [vmem:[%s5063 + $0xc0] sm:$0xff]
                %5114 = vst [vmem:[%s5064 + $0x180] sm:$0xff] %v5113
                %v5115 = vld [vmem:[%s5063 + $0xc8] sm:$0xff]
                %5116 = vst [vmem:[%s5064 + $0x188] sm:$0xff] %v5115
                %v5117 = vld [vmem:[%s5063 + $0xd0] sm:$0xff]
                %5118 = vst [vmem:[%s5064 + $0x190] sm:$0xff] %v5117
                %v5119 = vld [vmem:[%s5063 + $0xd8] sm:$0xff]
                %5120 = vst [vmem:[%s5064 + $0x198] sm:$0xff] %v5119
                %v5121 = vld [vmem:[%s5063 + $0xe0] sm:$0xff]
                %5122 = vst [vmem:[%s5064 + $0x1a0] sm:$0xff] %v5121
                %v5123 = vld [vmem:[%s5063 + $0xe8] sm:$0xff]
                %5124 = vst [vmem:[%s5064 + $0x1a8] sm:$0xff] %v5123
                %v5125 = vld [vmem:[%s5063 + $0xf0] sm:$0xff]
                %5126 = vst [vmem:[%s5064 + $0x1b0] sm:$0xff] %v5125
                %v5127 = vld [vmem:[%s5063 + $0xf8] sm:$0xff]
                %5128 = vst [vmem:[%s5064 + $0x1b8] sm:$0xff] %v5127
              $region45: #{mlp_forward.1} parent=39 // loop_footer
                %s5062 = sadd.s32 1, %s5058
              $region46: #{mlp_forward.1} parent=39 // loop_footer_branch
                %5057 = sbr.rel target = $region42
              $region47: #{mlp_forward.1} parent=39 // loop_exit
                _
            $region40: #{mlp_forward.1} parent=35 // pred_fallthru
              _
            // Predicated region
            $region48: #{mlp_forward.1} parent=35 // pred_check
              _
            $region49: #{mlp_forward.1} parent=35 // pred_check_branch
              %5130 = sbr.rel target = $region51
            $region50: #{mlp_forward.1} parent=35 // pred_region
              _
            $region51: #{mlp_forward.1} parent=35 // pred_fallthru
              _
          $region36: #{mlp_forward.1} parent=31 // pred_fallthru
            _
          %5131 = vnop
        $region32: #{mlp_forward.1} parent=27 // pred_fallthru
          _
      $region28: #{mlp_forward.1} parent=5 // pred_fallthru
        _
      %p5132 = scmp.le.s32.totalorder 2, %s8
      // Predicated region
      $region52: #{mlp_forward.1} parent=5 // pred_check
        %p5133 = pneg %p5132
      $region53: #{mlp_forward.1} parent=5 // pred_check_branch
        %5135 = sbr.rel (%p5133) target = $region55
      $region54: #{mlp_forward.1} parent=5 // pred_region
        %s5136 = ssub.s32 %s8, 2
        // Predicated region
        $region56: #{mlp_forward.1} parent=54 // pred_check
          %p5137 = pneg %p84
        $region57: #{mlp_forward.1} parent=54 // pred_check_branch
          %5139 = sbr.rel (%p5137) target = $region59
        $region58: #{mlp_forward.1} parent=54 // pred_region
          %s5140 = sand.u32 %s69, 1
          %s5141 = sand.u32 %s69, 1
          %s5142 = smul.addr %s5141, 256
          %s5143 = scalar_lea.vmem [#allocation2], %s5142
        $region59: #{mlp_forward.1} parent=54 // pred_fallthru
          _
      $region55: #{mlp_forward.1} parent=5 // pred_fallthru
        _
    $region6: #{mlp_forward.1} parent=1 // loop_footer
      %s12 = sadd.s32 1, %s8
    $region7: #{mlp_forward.1} parent=1 // loop_footer_branch
      %7 = sbr.rel target = $region3
    $region8: #{mlp_forward.1} parent=1 // loop_exit
      _

</llo_original>
